<compile_context>
chip_gen: v5e
topology: v5e:2x2
jax: 0.10.0
libtpu: 0.0.40
codegen_flags: <defaults>
</compile_context>

<pallas_src>
import functools
import math

import jax
import jax.numpy as jnp
from jax.experimental import pallas as pl
from jax.experimental.pallas import tpu as pltpu

# ---------------- configuration (small, synthetic) ----------------
B = 2            # batch (num complexes)
N = 16           # ligand atoms (padded)
M = 16           # pocket atoms (padded)
BN = B * N
BM = B * M
N_ATOM_TYPES = 16
N_BOND_TYPES = 5
N_EXTRA_ATOM_FEATS = 2          # [time, rel_time]
D_INV = 32       # invariant hidden size
D_EQUI = 4       # n_coord_sets

T_PER_AR_ACTION = 0.25
MAX_ACTION_T = 0.75
MAX_INTERP_TIME = 0.5
NUM_INFERENCE_STEPS = 4
STEP_SIZE = 1.0 / NUM_INFERENCE_STEPS

FEAT_DIM = N_ATOM_TYPES + N_EXTRA_ATOM_FEATS  # 18

# ---- atom_static column layout ----
A_ONEHOT = 0
A_GEN_T = N_ATOM_TYPES
A_END_T = N_ATOM_TYPES + 1
A_MASK = N_ATOM_TYPES + 2
A_BID = N_ATOM_TYPES + 3
A_W = N_ATOM_TYPES + 4           # 20

# ---- row_static lane layout (folded path): [lmask | lbid | pmask | pbid] ----
R_LMASK = 0
R_LBID = BN
R_PMASK = 2 * BN
R_PBID = 2 * BN + BM
R_W = 2 * BN + 2 * BM            # 128 (lane dense)

# ---- fused [equi | gate | pad] head width ----
EG_W = 8

# ---- packed output lane layout ----
O_XT = 0
O_X1 = 3
O_HE = 6
O_INV = O_HE + D_EQUI            # 10
OUT_USED = O_INV + D_INV         # 42
OUT_W = 128                      # lane dense output slab


# ---------------- shared decoder + fused Euler loop (runs on one row block) ----------------
def _decoder_core(coords0, onehot, gen_t, end_t, lmask, lbid,
                  lmask_row, lbid_row, pmask_row, pbid_row, pinv,
                  w_emb_atom_ref, w_time_rel_ref, a1_ref, wv_ref, a2w_ref,
                  wv2_ref, w_out_ref, w_eg_ref,
                  t0, *, step_size, num_steps):
    """Shared per-row-block decoder.  Returns the packed [rows, OUT_W] output slab."""
    f32 = jnp.float32
    bf16 = jnp.bfloat16
    rows = coords0.shape[0]

    # ---- step-invariant precompute (hoisted out of the Euler loop) ----
    adj = lmask * lmask_row                       # ligand-ligand adjacency (self-connected)
    cadj = lmask * pmask_row                      # ligand-pocket adjacency
    if lbid is not None:                          # folded batch -> block-diagonalize by batch id
        adj = adj * (lbid == lbid_row).astype(f32)
        cadj = cadj * (lbid == pbid_row).astype(f32)
    bias = jnp.where(adj > 0, 0.0, -1e9)
    cbias = jnp.where(cadj > 0, 0.0, -1e9)
    deg = jnp.maximum(jnp.sum(adj, axis=-1, keepdims=True), 1.0)
    adj_norm = adj / deg                          # neighbour mean becomes one matmul per step

    # Pocket projections are time-invariant: value projection + folded cross-attn keys.
    pinv16 = pinv.astype(bf16)
    v2_16 = jnp.dot(pinv16, wv2_ref[...], preferred_element_type=f32).astype(bf16)     # [P, D]
    a2_16 = jnp.dot(a2w_ref[...], pinv16.T, preferred_element_type=f32).astype(bf16)   # [D, P]

    # Invariant feature embedding base; only the rank-1 t / rel_t terms change per step.
    h0_base = jnp.dot(onehot.astype(bf16), w_emb_atom_ref[...],
                      preferred_element_type=f32)                                       # [rows, D]
    wtr = w_time_rel_ref[...]                     # f32, VPU-only
    w_time = wtr[0:1, :]
    w_rel = wtr[1:2, :]

    coords = coords0
    pred = jnp.zeros_like(coords0)
    h_out = jnp.zeros((rows, D_INV), f32)
    h_e = jnp.zeros((rows, D_EQUI), f32)

    # ---- fused Euler-integration loop (fully unrolled; num_steps is a static int) ----
    for i in range(num_steps):
        t = t0 + i * step_size                    # traced f32 scalar (t0 lives in SMEM)

        # _step(): relative interpolation times (linear ramp approx of _compute_rel_time).
        rel_t = jnp.clip((t - gen_t) * (1.0 / MAX_INTERP_TIME), 0.0, 1.0)               # [rows,1]
        h0 = jnp.maximum(h0_base + t * w_time + rel_t * w_rel, 0.0)
        h0_16 = h0.astype(bf16)

        # ligand self-attention masked by adjacency; Wq Wk^T (pre-scaled) folded into a1
        qa = jnp.dot(h0_16, a1_ref[...], preferred_element_type=f32)
        s = jnp.dot(qa.astype(bf16), h0_16.T, preferred_element_type=f32) + bias
        s = s - jnp.max(s, axis=-1, keepdims=True)
        p = jnp.exp(s)
        p = p * pl.reciprocal(jnp.sum(p, axis=-1, keepdims=True), approx=True)
        v = jnp.dot(h0_16, wv_ref[...], preferred_element_type=f32)
        h1 = h0 + jnp.dot(p.astype(bf16), v.astype(bf16), preferred_element_type=f32)

        # cross attention: query projection folded into precomputed pocket keys (a2)
        s2 = jnp.dot(h1.astype(bf16), a2_16, preferred_element_type=f32) + cbias
        s2 = s2 - jnp.max(s2, axis=-1, keepdims=True)
        p2 = jnp.exp(s2)
        p2 = p2 * pl.reciprocal(jnp.sum(p2, axis=-1, keepdims=True), approx=True)
        h2 = (h1 + jnp.dot(p2.astype(bf16), v2_16, preferred_element_type=f32)) * lmask
        h2_16 = h2.astype(bf16)

        # heads: invariant output (lane-0 aligned) + fused [equi | gate] block
        h_out = jnp.dot(h2_16, w_out_ref[...], preferred_element_type=f32) * lmask
        h_eg = jnp.dot(h2_16, w_eg_ref[...], preferred_element_type=f32)                # [rows, 8]
        h_e = h_eg[:, 0:D_EQUI]
        gate = jax.nn.sigmoid(h_eg[:, D_EQUI:D_EQUI + 1])

        # gated coordinate prediction \hat{x}_1 (f32 MXU for coordinate fidelity)
        neigh = jnp.dot(adj_norm, coords, preferred_element_type=f32)
        pred = (coords + gate * (neigh - coords)) * lmask

        # Integrator.step: Euler ODE step; atoms past their end time are frozen.
        # TODO(synk): exact Integrator.step semantics are external; flow-matching Euler
        #             update with per-atom end times is used here.
        active = (end_t > t).astype(f32)
        denom = jnp.maximum(end_t - t, step_size)
        coords = (coords + active * (step_size * (pred - coords) / denom)) * lmask

    # ---- single lane-dense packed output slab ----
    pad = jnp.zeros((rows, OUT_W - OUT_USED), f32)
    return jnp.concatenate([coords, pred, h_e, h_out, pad], axis=-1)


def _split_atom_static(atom):
    onehot = atom[:, A_ONEHOT:A_ONEHOT + N_ATOM_TYPES]
    gen_t = atom[:, A_GEN_T:A_GEN_T + 1]
    end_t = atom[:, A_END_T:A_END_T + 1]
    lmask = atom[:, A_MASK:A_MASK + 1]
    lbid = atom[:, A_BID:A_BID + 1]
    return onehot, gen_t, end_t, lmask, lbid


# ---------------- kernel wrappers ----------------
def _cgflow_kernel_folded(t0_ref, coords0_ref, atom_ref, row_ref, pinv_ref,
                          w_emb_atom_ref, w_time_rel_ref, a1_ref, wv_ref,
                          a2w_ref, wv2_ref, w_out_ref, w_eg_ref, out_ref,
                          *, step_size, num_steps):
    """Folded-batch form: one call, batch folded into BN rows (v5e / v6e)."""
    onehot, gen_t, end_t, lmask, lbid = _split_atom_static(atom_ref[...])
    row = row_ref[...]
    lmask_row = row[:, R_LMASK:R_LMASK + BN]
    lbid_row = row[:, R_LBID:R_LBID + BN]
    pmask_row = row[:, R_PMASK:R_PMASK + BM]
    pbid_row = row[:, R_PBID:R_PBID + BM]
    out_ref[...] = _decoder_core(
        coords0_ref[...], onehot, gen_t, end_t, lmask, lbid,
        lmask_row, lbid_row, pmask_row, pbid_row, pinv_ref[...],
        w_emb_atom_ref, w_time_rel_ref, a1_ref, wv_ref, a2w_ref, wv2_ref,
        w_out_ref, w_eg_ref, t0_ref[0, 0],
        step_size=step_size, num_steps=num_steps)


def _cgflow_kernel_percomplex(t0_ref, coords0_ref, atom_ref, lrow_ref, prow_ref, pinv_ref,
                              w_emb_atom_ref, w_time_rel_ref, a1_ref, wv_ref,
                              a2w_ref, wv2_ref, w_out_ref, w_eg_ref, out_ref,
                              *, step_size, num_steps):
    """Per-complex form: grid=(B,) 'parallel' so each complex runs on one v7x TensorCore."""
    onehot, gen_t, end_t, lmask, _ = _split_atom_static(atom_ref[...])
    out_ref[...] = _decoder_core(
        coords0_ref[...], onehot, gen_t, end_t, lmask, None,
        lrow_ref[0], None, prow_ref[0], None, pinv_ref[...],
        w_emb_atom_ref, w_time_rel_ref, a1_ref, wv_ref, a2w_ref, wv2_ref,
        w_out_ref, w_eg_ref, t0_ref[0, 0],
        step_size=step_size, num_steps=num_steps)


def _cost_estimate(num_steps, args):
    flops = num_steps * 9 * 2 * BN * D_INV * D_INV
    transcendentals = num_steps * (BN * BN + BN * BM + 2 * BN)
    bytes_accessed = sum(int(a.size) * a.dtype.itemsize for a in args) + BN * OUT_W * 4
    return pl.CostEstimate(flops=int(flops), transcendentals=int(transcendentals),
                           bytes_accessed=int(bytes_accessed))


def cgflow_call_folded(t0_arr, coords0, atom_static, row_static, pinv, weights, *, num_steps):
    kernel = functools.partial(_cgflow_kernel_folded, step_size=STEP_SIZE,
                               num_steps=int(num_steps))
    args = (coords0, atom_static, row_static, pinv) + tuple(weights)
    vmem = pl.BlockSpec(memory_space=pltpu.MemorySpace.VMEM)
    smem = pl.BlockSpec(memory_space=pltpu.MemorySpace.SMEM)
    return pl.pallas_call(
        kernel,
        out_shape=jax.ShapeDtypeStruct((BN, OUT_W), jnp.float32),
        in_specs=[smem] + [vmem] * len(args),
        out_specs=vmem,
        cost_estimate=_cost_estimate(num_steps, args),
    )(t0_arr, *args)


def cgflow_call_percomplex(t0_arr, coords0, atom_static, lrow, prow, pinv, weights, *, num_steps):
    kernel = functools.partial(_cgflow_kernel_percomplex, step_size=STEP_SIZE,
                               num_steps=int(num_steps))
    args = (coords0, atom_static, lrow, prow, pinv) + tuple(weights)
    rows2 = lambda b: (b, 0)
    const2 = lambda b: (0, 0)
    in_specs = [
        pl.BlockSpec(memory_space=pltpu.MemorySpace.SMEM),       # t0 scalar
        pl.BlockSpec((N, 3), rows2),                             # coords0  [BN, 3]
        pl.BlockSpec((N, A_W), rows2),                           # atom_static [BN, A_W]
        pl.BlockSpec((1, 1, N), lambda b: (b, 0, 0)),            # ligand row mask [B,1,N]
        pl.BlockSpec((1, 1, M), lambda b: (b, 0, 0)),            # pocket row mask [B,1,M]
        pl.BlockSpec((M, D_INV), rows2),                         # pocket invs [BM, D_INV]
    ] + [pl.BlockSpec(w.shape, const2) for w in weights]
    return pl.pallas_call(
        kernel,
        out_shape=jax.ShapeDtypeStruct((BN, OUT_W), jnp.float32),
        grid=(B,),
        in_specs=in_specs,
        out_specs=pl.BlockSpec((N, OUT_W), rows2),
        compiler_params=pltpu.CompilerParams(dimension_semantics=("parallel",)),
        cost_estimate=_cost_estimate(num_steps, args),
    )(t0_arr, *args)


# ---------------- weights (synthetic SEMLA decoder stand-in) ----------------
def make_params(key):
    def init(k, shape, scale=0.2):
        return scale * jax.random.normal(k, shape, dtype=jnp.float32)
    ks = jax.random.split(key, 10)
    return {
        "w_emb":  init(ks[0], (FEAT_DIM, D_INV)),
        "wq":     init(ks[1], (D_INV, D_INV)),
        "wk":     init(ks[2], (D_INV, D_INV)),
        "wv":     init(ks[3], (D_INV, D_INV)),
        "wq2":    init(ks[4], (D_INV, D_INV)),
        "wk2":    init(ks[5], (D_INV, D_INV)),
        "wv2":    init(ks[6], (D_INV, D_INV)),
        "w_gate": init(ks[7], (D_INV, 1)),
        "w_equi": init(ks[8], (D_INV, D_EQUI)),
        "w_out":  init(ks[9], (D_INV, D_INV)),
    }


def pack_weights(params):
    """Pre-fold / pre-scale decoder weights (done ONCE, outside the per-call path).

    Returns (w_emb_atom, w_time_rel, a1, wv, a2w, wv2, w_out, w_eg) where
      a1  = (Wq  Wk^T ) / sqrt(D)   ->  s  = (h0 @ a1) @ h0^T
      a2w = (Wq2 Wk2^T) / sqrt(D)   ->  s2 = h1 @ (a2w @ pinv^T)
      w_eg = [W_equi | W_gate | 0-pad]  (8 lanes; gate at lane D_EQUI)
    All MXU operands are bfloat16; the time/rel embedding rows stay f32 (VPU only).
    """
    f32 = jnp.float32
    bf16 = jnp.bfloat16
    scale = 1.0 / math.sqrt(D_INV)
    a1 = (params["wq"] @ params["wk"].T) * scale
    a2w = (params["wq2"] @ params["wk2"].T) * scale
    w_eg = jnp.concatenate(
        [params["w_equi"], params["w_gate"], jnp.zeros((D_INV, EG_W - D_EQUI - 1), f32)], axis=1)
    w_emb_atom = params["w_emb"][:N_ATOM_TYPES, :]
    w_time_rel = params["w_emb"][N_ATOM_TYPES:N_ATOM_TYPES + 2, :].astype(f32)
    return (w_emb_atom.astype(bf16), w_time_rel, a1.astype(bf16), params["wv"].astype(bf16),
            a2w.astype(bf16), params["wv2"].astype(bf16), params["w_out"].astype(bf16),
            w_eg.astype(bf16))


# ---------------- plain-JAX glue mirroring CGFlowInference.run/_step/forward ----------------
@functools.lru_cache(maxsize=1)
def _prefer_percomplex_grid():
    # v7x has 2 TensorCores/chip: run one complex per core via a parallel grid.
    # v5e/v6e have a single TC, where the folded single-call form avoids per-step overhead.
    try:
        kind = jax.devices()[0].device_kind.lower()
    except Exception:
        return False
    return B > 1 and ("v7" in kind or "tpu7" in kind)


@functools.partial(jax.jit, static_argnames=("num_steps", "use_grid"))
def _cgflow_run_jit(coords, atomics, lig_mask, pocket_mask, pocket_invs, gen_steps,
                    t0, weights, *, num_steps, use_grid):
    f32 = jnp.float32
    coords0 = coords.astype(f32).reshape(BN, 3)
    lmask = lig_mask.astype(f32).reshape(BN)
    pmask = pocket_mask.astype(f32).reshape(BM)
    pinv = pocket_invs.astype(jnp.bfloat16).reshape(BM, D_INV)

    # gen_times = clamp(gen_steps * t_per_ar_action, max=max_action_t)
    gen_times = jnp.minimum(gen_steps.astype(f32) * T_PER_AR_ACTION,
                            MAX_ACTION_T).reshape(BN, 1)
    # end_times = clamp(gen_times + max_interp_time, max=1.0)
    end_times = jnp.minimum(gen_times + MAX_INTERP_TIME, 1.0)
    onehot = jax.nn.one_hot(atomics.reshape(BN), N_ATOM_TYPES, dtype=f32)
    lbid = jnp.repeat(jnp.arange(B, dtype=f32), N).reshape(BN, 1)
    atom_static = jnp.concatenate(
        [onehot, gen_times, end_times, lmask.reshape(BN, 1), lbid], axis=-1)

    t0_arr = jnp.asarray(t0, dtype=f32).reshape(1, 1)

    if use_grid:
        lrow = lmask.reshape(B, 1, N)
        prow = pmask.reshape(B, 1, M)
        out = cgflow_call_percomplex(t0_arr, coords0, atom_static, lrow, prow, pinv,
                                     weights, num_steps=num_steps)
    else:
        pbid = jnp.repeat(jnp.arange(B, dtype=f32), M)
        row_static = jnp.concatenate(
            [lmask.reshape(1, BN), lbid.reshape(1, BN),
             pmask.reshape(1, BM), pbid.reshape(1, BM)], axis=-1)       # [1, 128]
        out = cgflow_call_folded(t0_arr, coords0, atom_static, row_static, pinv,
                                 weights, num_steps=num_steps)

    xt = out[:, O_XT:O_XT + 3].reshape(B, N, 3)
    x1_hat = out[:, O_X1:O_X1 + 3].reshape(B, N, 3)
    h_e = out[:, O_HE:O_HE + D_EQUI].reshape(B, N, D_EQUI)
    z_inv = out[:, O_INV:O_INV + D_INV].reshape(B, N, D_INV)
    # Z_equi reconstructed outside the kernel (keeps the kernel output lane-dense).
    z_equi = x1_hat[:, :, :, None] * h_e[:, :, None, :]                 # [B, N, 3, D_EQUI]
    return xt, x1_hat, z_equi, z_inv


def cgflow_run(curr, pocket, gen_steps, weights, curr_step=0, is_last=True, return_traj=False):
    """Mirrors CGFlowInference.run: iterated _step from curr_time to end_time (fused in-kernel)."""
    curr_time = curr_step * T_PER_AR_ACTION
    end_time = 1.0 if is_last else (curr_step + 1) * T_PER_AR_ACTION
    num_steps = max(1, round((end_time - curr_time) / STEP_SIZE))
    t0 = jnp.asarray(curr_time, dtype=jnp.float32)

    use_grid = _prefer_percomplex_grid()
    run_args = (curr["coords"], curr["atomics"], curr["mask"], pocket["mask"],
                pocket["invs"], gen_steps, t0, weights)
    try:
        xt, x1_hat, z_equi, z_inv = _cgflow_run_jit(
            *run_args, num_steps=num_steps, use_grid=use_grid)
    except Exception:
        if not use_grid:
            raise
        # Safety net: fall back to the folded single-call form if the per-core grid
        # variant fails to lower on this TPU generation.
        xt, x1_hat, z_equi, z_inv = _cgflow_run_jit(
            *run_args, num_steps=num_steps, use_grid=False)

    # TODO(synk): return_traj=True (intermediate frames) would need per-step output writes;
    #             the fused kernel emits only the final (x_t, \hat{x}_1) frame.
    trajectory = [(xt, x1_hat)]
    return trajectory, (z_equi, z_inv)


if __name__ == "__main__":
    key = jax.random.PRNGKey(0)
    k_p, k_c, k_a, k_pe, k_pi, k_g = jax.random.split(key, 6)

    params = make_params(k_p)
    weights = pack_weights(params)     # hoisted out of the per-call path

    curr = {
        "coords": jax.random.normal(k_c, (B, N, 3), dtype=jnp.float32),
        "atomics": jax.random.randint(k_a, (B, N), 0, N_ATOM_TYPES),
        "bonds": jnp.zeros((B, N, N), dtype=jnp.int32),   # "no-change" bond strategy
        "mask": jnp.ones((B, N), dtype=jnp.bool_).at[:, N - 2:].set(False),
    }
    # pocket already encoded (encode_pocket output); PocketEncoder itself is external.
    pocket = {
        "equis": jax.random.normal(k_pe, (B, M, 3, D_EQUI), dtype=jnp.float32),
        "invs": jax.random.normal(k_pi, (B, M, D_INV), dtype=jnp.float32),
        "mask": jnp.ones((B, M), dtype=jnp.bool_),
    }
    gen_steps = jax.random.randint(k_g, (B, N), 0, 3)

    trajectory, (z_equi, z_inv) = cgflow_run(
        curr, pocket, gen_steps, weights, curr_step=0, is_last=True, return_traj=False)

    xt, x1_hat = trajectory[-1]
    jax.block_until_ready((xt, x1_hat, z_equi, z_inv))

    assert xt.shape == (B, N, 3)
    assert x1_hat.shape == (B, N, 3)
    assert z_equi.shape == (B, N, 3, D_EQUI)
    assert z_inv.shape == (B, N, D_INV)
    assert bool(jnp.all(jnp.isfinite(xt)))
    assert bool(jnp.all(jnp.isfinite(x1_hat)))
    assert bool(jnp.all(jnp.isfinite(z_inv)))
    print("KERNEL_OK")
</pallas_src>

<mosaic_0001>
module attributes {stable_mosaic.version = 11 : i64} {
  func.func @_cgflow_kernel_folded(%arg0: memref<1x1xf32, #tpu.memory_space<smem>>, %arg1: memref<32x3xf32, #tpu.memory_space<vmem>>, %arg2: memref<32x20xf32, #tpu.memory_space<vmem>>, %arg3: memref<1x128xf32, #tpu.memory_space<vmem>>, %arg4: memref<32x32xbf16, #tpu.memory_space<vmem>>, %arg5: memref<16x32xbf16, #tpu.memory_space<vmem>>, %arg6: memref<2x32xf32, #tpu.memory_space<vmem>>, %arg7: memref<32x32xbf16, #tpu.memory_space<vmem>>, %arg8: memref<32x32xbf16, #tpu.memory_space<vmem>>, %arg9: memref<32x32xbf16, #tpu.memory_space<vmem>>, %arg10: memref<32x32xbf16, #tpu.memory_space<vmem>>, %arg11: memref<32x32xbf16, #tpu.memory_space<vmem>>, %arg12: memref<32x8xbf16, #tpu.memory_space<vmem>>, %arg13: memref<32x128xf32, #tpu.memory_space<vmem>>) attributes {dimension_semantics = [], scalar_prefetch = 0 : i64, scratch_operands = 0 : i64, tpu.core_type = #tpu.core_type<tc>} {
    %c0 = arith.constant 0 : index
    %c0_0 = arith.constant 0 : index
    %0 = vector.load %arg2[%c0, %c0_0] : memref<32x20xf32, #tpu.memory_space<vmem>>, vector<32x20xf32>
    %1 = vector.extract_strided_slice %0 {offsets = [0, 0], sizes = [32, 16], strides = [1, 1]} : vector<32x20xf32> to vector<32x16xf32>
    %2 = vector.extract_strided_slice %0 {offsets = [0, 16], sizes = [32, 1], strides = [1, 1]} : vector<32x20xf32> to vector<32x1xf32>
    %3 = vector.extract_strided_slice %0 {offsets = [0, 17], sizes = [32, 1], strides = [1, 1]} : vector<32x20xf32> to vector<32x1xf32>
    %4 = vector.extract_strided_slice %0 {offsets = [0, 18], sizes = [32, 1], strides = [1, 1]} : vector<32x20xf32> to vector<32x1xf32>
    %5 = vector.extract_strided_slice %0 {offsets = [0, 19], sizes = [32, 1], strides = [1, 1]} : vector<32x20xf32> to vector<32x1xf32>
    %c0_1 = arith.constant 0 : index
    %c0_2 = arith.constant 0 : index
    %6 = vector.load %arg3[%c0_1, %c0_2] : memref<1x128xf32, #tpu.memory_space<vmem>>, vector<1x128xf32>
    %7 = vector.extract_strided_slice %6 {offsets = [0, 0], sizes = [1, 32], strides = [1, 1]} : vector<1x128xf32> to vector<1x32xf32>
    %8 = vector.extract_strided_slice %6 {offsets = [0, 32], sizes = [1, 32], strides = [1, 1]} : vector<1x128xf32> to vector<1x32xf32>
    %9 = vector.extract_strided_slice %6 {offsets = [0, 64], sizes = [1, 32], strides = [1, 1]} : vector<1x128xf32> to vector<1x32xf32>
    %10 = vector.extract_strided_slice %6 {offsets = [0, 96], sizes = [1, 32], strides = [1, 1]} : vector<1x128xf32> to vector<1x32xf32>
    %c0_3 = arith.constant 0 : index
    %c0_4 = arith.constant 0 : index
    %11 = vector.load %arg1[%c0_3, %c0_4] : memref<32x3xf32, #tpu.memory_space<vmem>>, vector<32x3xf32>
    %c0_5 = arith.constant 0 : index
    %c0_6 = arith.constant 0 : index
    %12 = vector.load %arg4[%c0_5, %c0_6] : memref<32x32xbf16, #tpu.memory_space<vmem>>, vector<32x32xbf16>
    %c0_7 = arith.constant 0 : index
    %c0_8 = arith.constant 0 : index
    %13 = memref.load %arg0[%c0_7, %c0_8] : memref<1x1xf32, #tpu.memory_space<smem>>
    %14 = vector.broadcast %4 : vector<32x1xf32> to vector<32x32xf32>
    %15 = vector.broadcast %7 : vector<1x32xf32> to vector<32x32xf32>
    %16 = arith.mulf %14, %15 : vector<32x32xf32>
    %17 = vector.broadcast %4 : vector<32x1xf32> to vector<32x32xf32>
    %18 = vector.broadcast %9 : vector<1x32xf32> to vector<32x32xf32>
    %19 = arith.mulf %17, %18 : vector<32x32xf32>
    %20 = vector.broadcast %5 : vector<32x1xf32> to vector<32x32xf32>
    %21 = vector.broadcast %8 : vector<1x32xf32> to vector<32x32xf32>
    %22 = arith.cmpf oeq, %20, %21 : vector<32x32xf32>
    %23 = arith.extui %22 : vector<32x32xi1> to vector<32x32xi32>
    %24 = arith.sitofp %23 : vector<32x32xi32> to vector<32x32xf32>
    %25 = arith.mulf %16, %24 : vector<32x32xf32>
    %26 = vector.broadcast %5 : vector<32x1xf32> to vector<32x32xf32>
    %27 = vector.broadcast %10 : vector<1x32xf32> to vector<32x32xf32>
    %28 = arith.cmpf oeq, %26, %27 : vector<32x32xf32>
    %29 = arith.extui %28 : vector<32x32xi1> to vector<32x32xi32>
    %30 = arith.sitofp %29 : vector<32x32xi32> to vector<32x32xf32>
    %31 = arith.mulf %19, %30 : vector<32x32xf32>
    %cst = arith.constant 0.000000e+00 : f32
    %32 = vector.broadcast %cst : f32 to vector<32x32xf32>
    %33 = arith.cmpf ogt, %25, %32 : vector<32x32xf32>
    %cst_9 = arith.constant 0.000000e+00 : f32
    %cst_10 = arith.constant -1.000000e+09 : f32
    %34 = vector.broadcast %cst_9 : f32 to vector<32x32xf32>
    %35 = vector.broadcast %cst_10 : f32 to vector<32x32xf32>
    %36 = arith.select %33, %34, %35 : vector<32x32xi1>, vector<32x32xf32>
    %cst_11 = arith.constant 0.000000e+00 : f32
    %37 = vector.broadcast %cst_11 : f32 to vector<32x32xf32>
    %38 = arith.cmpf ogt, %31, %37 : vector<32x32xf32>
    %cst_12 = arith.constant 0.000000e+00 : f32
    %cst_13 = arith.constant -1.000000e+09 : f32
    %39 = vector.broadcast %cst_12 : f32 to vector<32x32xf32>
    %40 = vector.broadcast %cst_13 : f32 to vector<32x32xf32>
    %41 = arith.select %38, %39, %40 : vector<32x32xi1>, vector<32x32xf32>
    %cst_14 = arith.constant dense<0.000000e+00> : vector<32xf32>
    %42 = vector.multi_reduction <add>, %25, %cst_14 [1] : vector<32x32xf32> to vector<32xf32>
    %43 = vector.shape_cast %42 : vector<32xf32> to vector<32x1xf32>
    %cst_15 = arith.constant 1.000000e+00 : f32
    %44 = vector.broadcast %cst_15 : f32 to vector<32x1xf32>
    %45 = arith.maximumf %43, %44 : vector<32x1xf32>
    %46 = vector.broadcast %45 : vector<32x1xf32> to vector<32x32xf32>
    %47 = arith.divf %25, %46 : vector<32x32xf32>
    %c0_16 = arith.constant 0 : index
    %c0_17 = arith.constant 0 : index
    %48 = vector.load %arg10[%c0_16, %c0_17] : memref<32x32xbf16, #tpu.memory_space<vmem>>, vector<32x32xbf16>
    %cst_18 = arith.constant dense<0.000000e+00> : vector<32x32xf32>
    %49 = tpu.matmul %12, %48, %cst_18 {dimension_numbers = #tpu.dot_dimension_numbers<[1], [0], [0], [1], [0, 0, 1, 1], [], []>} : vector<32x32xbf16>, vector<32x32xbf16>, vector<32x32xf32> -> vector<32x32xf32>
    %50 = arith.truncf %49 : vector<32x32xf32> to vector<32x32xbf16>
    %c0_19 = arith.constant 0 : index
    %c0_20 = arith.constant 0 : index
    %51 = vector.load %arg9[%c0_19, %c0_20] : memref<32x32xbf16, #tpu.memory_space<vmem>>, vector<32x32xbf16>
    %52 = tpu.transpose %12, [1, 0] : vector<32x32xbf16> -> vector<32x32xbf16>
    %cst_21 = arith.constant dense<0.000000e+00> : vector<32x32xf32>
    %53 = tpu.matmul %51, %52, %cst_21 {dimension_numbers = #tpu.dot_dimension_numbers<[1], [0], [0], [1], [0, 0, 1, 1], [], []>} : vector<32x32xbf16>, vector<32x32xbf16>, vector<32x32xf32> -> vector<32x32xf32>
    %54 = arith.truncf %53 : vector<32x32xf32> to vector<32x32xbf16>
    %55 = arith.truncf %1 : vector<32x16xf32> to vector<32x16xbf16>
    %c0_22 = arith.constant 0 : index
    %c0_23 = arith.constant 0 : index
    %56 = vector.load %arg5[%c0_22, %c0_23] : memref<16x32xbf16, #tpu.memory_space<vmem>>, vector<16x32xbf16>
    %cst_24 = arith.constant dense<0.000000e+00> : vector<32x32xf32>
    %57 = tpu.matmul %55, %56, %cst_24 {dimension_numbers = #tpu.dot_dimension_numbers<[1], [0], [0], [1], [0, 0, 1, 1], [], []>} : vector<32x16xbf16>, vector<16x32xbf16>, vector<32x32xf32> -> vector<32x32xf32>
    %c0_25 = arith.constant 0 : index
    %c0_26 = arith.constant 0 : index
    %58 = vector.load %arg6[%c0_25, %c0_26] : memref<2x32xf32, #tpu.memory_space<vmem>>, vector<2x32xf32>
    %59 = vector.extract_strided_slice %58 {offsets = [0, 0], sizes = [1, 32], strides = [1, 1]} : vector<2x32xf32> to vector<1x32xf32>
    %60 = vector.extract_strided_slice %58 {offsets = [1, 0], sizes = [1, 32], strides = [1, 1]} : vector<2x32xf32> to vector<1x32xf32>
    %cst_27 = arith.constant 0.000000e+00 : f32
    %61 = arith.addf %13, %cst_27 : f32
    %62 = vector.broadcast %61 : f32 to vector<32x1xf32>
    %63 = arith.subf %62, %2 : vector<32x1xf32>
    %cst_28 = arith.constant 2.000000e+00 : f32
    %64 = vector.broadcast %cst_28 : f32 to vector<32x1xf32>
    %65 = arith.mulf %63, %64 : vector<32x1xf32>
    %cst_29 = arith.constant 0.000000e+00 : f32
    %cst_30 = arith.constant 1.000000e+00 : f32
    %66 = vector.broadcast %cst_29 : f32 to vector<32x1xf32>
    %67 = arith.maximumf %66, %65 : vector<32x1xf32>
    %68 = vector.broadcast %cst_30 : f32 to vector<32x1xf32>
    %69 = arith.minimumf %68, %67 : vector<32x1xf32>
    %70 = vector.broadcast %61 : f32 to vector<1x32xf32>
    %71 = arith.mulf %70, %59 : vector<1x32xf32>
    %72 = vector.broadcast %71 : vector<1x32xf32> to vector<32x32xf32>
    %73 = arith.addf %57, %72 : vector<32x32xf32>
    %74 = vector.broadcast %69 : vector<32x1xf32> to vector<32x32xf32>
    %75 = vector.broadcast %60 : vector<1x32xf32> to vector<32x32xf32>
    %76 = arith.mulf %74, %75 : vector<32x32xf32>
    %77 = arith.addf %73, %76 : vector<32x32xf32>
    %cst_31 = arith.constant 0.000000e+00 : f32
    %78 = vector.broadcast %cst_31 : f32 to vector<32x32xf32>
    %79 = arith.maximumf %77, %78 : vector<32x32xf32>
    %80 = arith.truncf %79 : vector<32x32xf32> to vector<32x32xbf16>
    %c0_32 = arith.constant 0 : index
    %c0_33 = arith.constant 0 : index
    %81 = vector.load %arg7[%c0_32, %c0_33] : memref<32x32xbf16, #tpu.memory_space<vmem>>, vector<32x32xbf16>
    %cst_34 = arith.constant dense<0.000000e+00> : vector<32x32xf32>
    %82 = tpu.matmul %80, %81, %cst_34 {dimension_numbers = #tpu.dot_dimension_numbers<[1], [0], [0], [1], [0, 0, 1, 1], [], []>} : vector<32x32xbf16>, vector<32x32xbf16>, vector<32x32xf32> -> vector<32x32xf32>
    %83 = arith.truncf %82 : vector<32x32xf32> to vector<32x32xbf16>
    %84 = tpu.transpose %80, [1, 0] : vector<32x32xbf16> -> vector<32x32xbf16>
    %cst_35 = arith.constant dense<0.000000e+00> : vector<32x32xf32>
    %85 = tpu.matmul %83, %84, %cst_35 {dimension_numbers = #tpu.dot_dimension_numbers<[1], [0], [0], [1], [0, 0, 1, 1], [], []>} : vector<32x32xbf16>, vector<32x32xbf16>, vector<32x32xf32> -> vector<32x32xf32>
    %86 = arith.addf %85, %36 : vector<32x32xf32>
    %cst_36 = arith.constant dense<0xFF800000> : vector<32xf32>
    %87 = vector.multi_reduction <maximumf>, %86, %cst_36 [1] : vector<32x32xf32> to vector<32xf32>
    %88 = vector.shape_cast %87 : vector<32xf32> to vector<32x1xf32>
    %89 = vector.broadcast %88 : vector<32x1xf32> to vector<32x32xf32>
    %90 = arith.subf %86, %89 : vector<32x32xf32>
    %91 = math.exp %90 : vector<32x32xf32>
    %cst_37 = arith.constant dense<0.000000e+00> : vector<32xf32>
    %92 = vector.multi_reduction <add>, %91, %cst_37 [1] : vector<32x32xf32> to vector<32xf32>
    %93 = vector.shape_cast %92 : vector<32xf32> to vector<32x1xf32>
    %94 = tpu.reciprocal %93 {approx = true} : vector<32x1xf32> -> vector<32x1xf32>
    %95 = vector.broadcast %94 : vector<32x1xf32> to vector<32x32xf32>
    %96 = arith.mulf %91, %95 : vector<32x32xf32>
    %c0_38 = arith.constant 0 : index
    %c0_39 = arith.constant 0 : index
    %97 = vector.load %arg8[%c0_38, %c0_39] : memref<32x32xbf16, #tpu.memory_space<vmem>>, vector<32x32xbf16>
    %cst_40 = arith.constant dense<0.000000e+00> : vector<32x32xf32>
    %98 = tpu.matmul %80, %97, %cst_40 {dimension_numbers = #tpu.dot_dimension_numbers<[1], [0], [0], [1], [0, 0, 1, 1], [], []>} : vector<32x32xbf16>, vector<32x32xbf16>, vector<32x32xf32> -> vector<32x32xf32>
    %99 = arith.truncf %96 : vector<32x32xf32> to vector<32x32xbf16>
    %100 = arith.truncf %98 : vector<32x32xf32> to vector<32x32xbf16>
    %cst_41 = arith.constant dense<0.000000e+00> : vector<32x32xf32>
    %101 = tpu.matmul %99, %100, %cst_41 {dimension_numbers = #tpu.dot_dimension_numbers<[1], [0], [0], [1], [0, 0, 1, 1], [], []>} : vector<32x32xbf16>, vector<32x32xbf16>, vector<32x32xf32> -> vector<32x32xf32>
    %102 = arith.addf %79, %101 : vector<32x32xf32>
    %103 = arith.truncf %102 : vector<32x32xf32> to vector<32x32xbf16>
    %cst_42 = arith.constant dense<0.000000e+00> : vector<32x32xf32>
    %104 = tpu.matmul %103, %54, %cst_42 {dimension_numbers = #tpu.dot_dimension_numbers<[1], [0], [0], [1], [0, 0, 1, 1], [], []>} : vector<32x32xbf16>, vector<32x32xbf16>, vector<32x32xf32> -> vector<32x32xf32>
    %105 = arith.addf %104, %41 : vector<32x32xf32>
    %cst_43 = arith.constant dense<0xFF800000> : vector<32xf32>
    %106 = vector.multi_reduction <maximumf>, %105, %cst_43 [1] : vector<32x32xf32> to vector<32xf32>
    %107 = vector.shape_cast %106 : vector<32xf32> to vector<32x1xf32>
    %108 = vector.broadcast %107 : vector<32x1xf32> to vector<32x32xf32>
    %109 = arith.subf %105, %108 : vector<32x32xf32>
    %110 = math.exp %109 : vector<32x32xf32>
    %cst_44 = arith.constant dense<0.000000e+00> : vector<32xf32>
    %111 = vector.multi_reduction <add>, %110, %cst_44 [1] : vector<32x32xf32> to vector<32xf32>
    %112 = vector.shape_cast %111 : vector<32xf32> to vector<32x1xf32>
    %113 = tpu.reciprocal %112 {approx = true} : vector<32x1xf32> -> vector<32x1xf32>
    %114 = vector.broadcast %113 : vector<32x1xf32> to vector<32x32xf32>
    %115 = arith.mulf %110, %114 : vector<32x32xf32>
    %116 = arith.truncf %115 : vector<32x32xf32> to vector<32x32xbf16>
    %cst_45 = arith.constant dense<0.000000e+00> : vector<32x32xf32>
    %117 = tpu.matmul %116, %50, %cst_45 {dimension_numbers = #tpu.dot_dimension_numbers<[1], [0], [0], [1], [0, 0, 1, 1], [], []>} : vector<32x32xbf16>, vector<32x32xbf16>, vector<32x32xf32> -> vector<32x32xf32>
    %118 = arith.addf %102, %117 : vector<32x32xf32>
    %119 = vector.broadcast %4 : vector<32x1xf32> to vector<32x32xf32>
    %120 = arith.mulf %118, %119 : vector<32x32xf32>
    %121 = arith.truncf %120 : vector<32x32xf32> to vector<32x32xbf16>
    %c0_46 = arith.constant 0 : index
    %c0_47 = arith.constant 0 : index
    %122 = vector.load %arg12[%c0_46, %c0_47] : memref<32x8xbf16, #tpu.memory_space<vmem>>, vector<32x8xbf16>
    %cst_48 = arith.constant dense<0.000000e+00> : vector<32x8xf32>
    %123 = tpu.matmul %121, %122, %cst_48 {dimension_numbers = #tpu.dot_dimension_numbers<[1], [0], [0], [1], [0, 0, 1, 1], [], []>} : vector<32x32xbf16>, vector<32x8xbf16>, vector<32x8xf32> -> vector<32x8xf32>
    %124 = vector.extract_strided_slice %123 {offsets = [0, 4], sizes = [32, 1], strides = [1, 1]} : vector<32x8xf32> to vector<32x1xf32>
    %125 = arith.negf %124 : vector<32x1xf32>
    %126 = math.exp %125 : vector<32x1xf32>
    %cst_49 = arith.constant 1.000000e+00 : f32
    %127 = vector.broadcast %cst_49 : f32 to vector<32x1xf32>
    %128 = arith.addf %127, %126 : vector<32x1xf32>
    %129 = arith.divf %127, %128 : vector<32x1xf32>
    %cst_50 = arith.constant dense<0.000000e+00> : vector<32x3xf32>
    %130 = tpu.matmul %47, %11, %cst_50 {dimension_numbers = #tpu.dot_dimension_numbers<[1], [0], [0], [1], [0, 0, 1, 1], [], []>} : vector<32x32xf32>, vector<32x3xf32>, vector<32x3xf32> -> vector<32x3xf32>
    %131 = arith.subf %130, %11 : vector<32x3xf32>
    %132 = vector.broadcast %129 : vector<32x1xf32> to vector<32x3xf32>
    %133 = arith.mulf %132, %131 : vector<32x3xf32>
    %134 = arith.addf %11, %133 : vector<32x3xf32>
    %135 = vector.broadcast %4 : vector<32x1xf32> to vector<32x3xf32>
    %136 = arith.mulf %134, %135 : vector<32x3xf32>
    %137 = vector.broadcast %61 : f32 to vector<32x1xf32>
    %138 = arith.cmpf ogt, %3, %137 : vector<32x1xf32>
    %139 = arith.extui %138 : vector<32x1xi1> to vector<32x1xi32>
    %140 = arith.sitofp %139 : vector<32x1xi32> to vector<32x1xf32>
    %141 = vector.broadcast %61 : f32 to vector<32x1xf32>
    %142 = arith.subf %3, %141 : vector<32x1xf32>
    %cst_51 = arith.constant 2.500000e-01 : f32
    %143 = vector.broadcast %cst_51 : f32 to vector<32x1xf32>
    %144 = arith.maximumf %142, %143 : vector<32x1xf32>
    %145 = arith.subf %136, %11 : vector<32x3xf32>
    %cst_52 = arith.constant 2.500000e-01 : f32
    %146 = vector.broadcast %cst_52 : f32 to vector<32x3xf32>
    %147 = arith.mulf %146, %145 : vector<32x3xf32>
    %148 = vector.broadcast %144 : vector<32x1xf32> to vector<32x3xf32>
    %149 = arith.divf %147, %148 : vector<32x3xf32>
    %150 = vector.broadcast %140 : vector<32x1xf32> to vector<32x3xf32>
    %151 = arith.mulf %150, %149 : vector<32x3xf32>
    %152 = arith.addf %11, %151 : vector<32x3xf32>
    %153 = vector.broadcast %4 : vector<32x1xf32> to vector<32x3xf32>
    %154 = arith.mulf %152, %153 : vector<32x3xf32>
    %cst_53 = arith.constant 2.500000e-01 : f32
    %155 = arith.addf %13, %cst_53 : f32
    %156 = vector.broadcast %155 : f32 to vector<32x1xf32>
    %157 = arith.subf %156, %2 : vector<32x1xf32>
    %cst_54 = arith.constant 2.000000e+00 : f32
    %158 = vector.broadcast %cst_54 : f32 to vector<32x1xf32>
    %159 = arith.mulf %157, %158 : vector<32x1xf32>
    %cst_55 = arith.constant 0.000000e+00 : f32
    %cst_56 = arith.constant 1.000000e+00 : f32
    %160 = vector.broadcast %cst_55 : f32 to vector<32x1xf32>
    %161 = arith.maximumf %160, %159 : vector<32x1xf32>
    %162 = vector.broadcast %cst_56 : f32 to vector<32x1xf32>
    %163 = arith.minimumf %162, %161 : vector<32x1xf32>
    %164 = vector.broadcast %155 : f32 to vector<1x32xf32>
    %165 = arith.mulf %164, %59 : vector<1x32xf32>
    %166 = vector.broadcast %165 : vector<1x32xf32> to vector<32x32xf32>
    %167 = arith.addf %57, %166 : vector<32x32xf32>
    %168 = vector.broadcast %163 : vector<32x1xf32> to vector<32x32xf32>
    %169 = vector.broadcast %60 : vector<1x32xf32> to vector<32x32xf32>
    %170 = arith.mulf %168, %169 : vector<32x32xf32>
    %171 = arith.addf %167, %170 : vector<32x32xf32>
    %cst_57 = arith.constant 0.000000e+00 : f32
    %172 = vector.broadcast %cst_57 : f32 to vector<32x32xf32>
    %173 = arith.maximumf %171, %172 : vector<32x32xf32>
    %174 = arith.truncf %173 : vector<32x32xf32> to vector<32x32xbf16>
    %c0_58 = arith.constant 0 : index
    %c0_59 = arith.constant 0 : index
    %175 = vector.load %arg7[%c0_58, %c0_59] : memref<32x32xbf16, #tpu.memory_space<vmem>>, vector<32x32xbf16>
    %cst_60 = arith.constant dense<0.000000e+00> : vector<32x32xf32>
    %176 = tpu.matmul %174, %175, %cst_60 {dimension_numbers = #tpu.dot_dimension_numbers<[1], [0], [0], [1], [0, 0, 1, 1], [], []>} : vector<32x32xbf16>, vector<32x32xbf16>, vector<32x32xf32> -> vector<32x32xf32>
    %177 = arith.truncf %176 : vector<32x32xf32> to vector<32x32xbf16>
    %178 = tpu.transpose %174, [1, 0] : vector<32x32xbf16> -> vector<32x32xbf16>
    %cst_61 = arith.constant dense<0.000000e+00> : vector<32x32xf32>
    %179 = tpu.matmul %177, %178, %cst_61 {dimension_numbers = #tpu.dot_dimension_numbers<[1], [0], [0], [1], [0, 0, 1, 1], [], []>} : vector<32x32xbf16>, vector<32x32xbf16>, vector<32x32xf32> -> vector<32x32xf32>
    %180 = arith.addf %179, %36 : vector<32x32xf32>
    %cst_62 = arith.constant dense<0xFF800000> : vector<32xf32>
    %181 = vector.multi_reduction <maximumf>, %180, %cst_62 [1] : vector<32x32xf32> to vector<32xf32>
    %182 = vector.shape_cast %181 : vector<32xf32> to vector<32x1xf32>
    %183 = vector.broadcast %182 : vector<32x1xf32> to vector<32x32xf32>
    %184 = arith.subf %180, %183 : vector<32x32xf32>
    %185 = math.exp %184 : vector<32x32xf32>
    %cst_63 = arith.constant dense<0.000000e+00> : vector<32xf32>
    %186 = vector.multi_reduction <add>, %185, %cst_63 [1] : vector<32x32xf32> to vector<32xf32>
    %187 = vector.shape_cast %186 : vector<32xf32> to vector<32x1xf32>
    %188 = tpu.reciprocal %187 {approx = true} : vector<32x1xf32> -> vector<32x1xf32>
    %189 = vector.broadcast %188 : vector<32x1xf32> to vector<32x32xf32>
    %190 = arith.mulf %185, %189 : vector<32x32xf32>
    %c0_64 = arith.constant 0 : index
    %c0_65 = arith.constant 0 : index
    %191 = vector.load %arg8[%c0_64, %c0_65] : memref<32x32xbf16, #tpu.memory_space<vmem>>, vector<32x32xbf16>
    %cst_66 = arith.constant dense<0.000000e+00> : vector<32x32xf32>
    %192 = tpu.matmul %174, %191, %cst_66 {dimension_numbers = #tpu.dot_dimension_numbers<[1], [0], [0], [1], [0, 0, 1, 1], [], []>} : vector<32x32xbf16>, vector<32x32xbf16>, vector<32x32xf32> -> vector<32x32xf32>
    %193 = arith.truncf %190 : vector<32x32xf32> to vector<32x32xbf16>
    %194 = arith.truncf %192 : vector<32x32xf32> to vector<32x32xbf16>
    %cst_67 = arith.constant dense<0.000000e+00> : vector<32x32xf32>
    %195 = tpu.matmul %193, %194, %cst_67 {dimension_numbers = #tpu.dot_dimension_numbers<[1], [0], [0], [1], [0, 0, 1, 1], [], []>} : vector<32x32xbf16>, vector<32x32xbf16>, vector<32x32xf32> -> vector<32x32xf32>
    %196 = arith.addf %173, %195 : vector<32x32xf32>
    %197 = arith.truncf %196 : vector<32x32xf32> to vector<32x32xbf16>
    %cst_68 = arith.constant dense<0.000000e+00> : vector<32x32xf32>
    %198 = tpu.matmul %197, %54, %cst_68 {dimension_numbers = #tpu.dot_dimension_numbers<[1], [0], [0], [1], [0, 0, 1, 1], [], []>} : vector<32x32xbf16>, vector<32x32xbf16>, vector<32x32xf32> -> vector<32x32xf32>
    %199 = arith.addf %198, %41 : vector<32x32xf32>
    %cst_69 = arith.constant dense<0xFF800000> : vector<32xf32>
    %200 = vector.multi_reduction <maximumf>, %199, %cst_69 [1] : vector<32x32xf32> to vector<32xf32>
    %201 = vector.shape_cast %200 : vector<32xf32> to vector<32x1xf32>
    %202 = vector.broadcast %201 : vector<32x1xf32> to vector<32x32xf32>
    %203 = arith.subf %199, %202 : vector<32x32xf32>
    %204 = math.exp %203 : vector<32x32xf32>
    %cst_70 = arith.constant dense<0.000000e+00> : vector<32xf32>
    %205 = vector.multi_reduction <add>, %204, %cst_70 [1] : vector<32x32xf32> to vector<32xf32>
    %206 = vector.shape_cast %205 : vector<32xf32> to vector<32x1xf32>
    %207 = tpu.reciprocal %206 {approx = true} : vector<32x1xf32> -> vector<32x1xf32>
    %208 = vector.broadcast %207 : vector<32x1xf32> to vector<32x32xf32>
    %209 = arith.mulf %204, %208 : vector<32x32xf32>
    %210 = arith.truncf %209 : vector<32x32xf32> to vector<32x32xbf16>
    %cst_71 = arith.constant dense<0.000000e+00> : vector<32x32xf32>
    %211 = tpu.matmul %210, %50, %cst_71 {dimension_numbers = #tpu.dot_dimension_numbers<[1], [0], [0], [1], [0, 0, 1, 1], [], []>} : vector<32x32xbf16>, vector<32x32xbf16>, vector<32x32xf32> -> vector<32x32xf32>
    %212 = arith.addf %196, %211 : vector<32x32xf32>
    %213 = vector.broadcast %4 : vector<32x1xf32> to vector<32x32xf32>
    %214 = arith.mulf %212, %213 : vector<32x32xf32>
    %215 = arith.truncf %214 : vector<32x32xf32> to vector<32x32xbf16>
    %c0_72 = arith.constant 0 : index
    %c0_73 = arith.constant 0 : index
    %216 = vector.load %arg12[%c0_72, %c0_73] : memref<32x8xbf16, #tpu.memory_space<vmem>>, vector<32x8xbf16>
    %cst_74 = arith.constant dense<0.000000e+00> : vector<32x8xf32>
    %217 = tpu.matmul %215, %216, %cst_74 {dimension_numbers = #tpu.dot_dimension_numbers<[1], [0], [0], [1], [0, 0, 1, 1], [], []>} : vector<32x32xbf16>, vector<32x8xbf16>, vector<32x8xf32> -> vector<32x8xf32>
    %218 = vector.extract_strided_slice %217 {offsets = [0, 4], sizes = [32, 1], strides = [1, 1]} : vector<32x8xf32> to vector<32x1xf32>
    %219 = arith.negf %218 : vector<32x1xf32>
    %220 = math.exp %219 : vector<32x1xf32>
    %cst_75 = arith.constant 1.000000e+00 : f32
    %221 = vector.broadcast %cst_75 : f32 to vector<32x1xf32>
    %222 = arith.addf %221, %220 : vector<32x1xf32>
    %223 = arith.divf %221, %222 : vector<32x1xf32>
    %cst_76 = arith.constant dense<0.000000e+00> : vector<32x3xf32>
    %224 = tpu.matmul %47, %154, %cst_76 {dimension_numbers = #tpu.dot_dimension_numbers<[1], [0], [0], [1], [0, 0, 1, 1], [], []>} : vector<32x32xf32>, vector<32x3xf32>, vector<32x3xf32> -> vector<32x3xf32>
    %225 = arith.subf %224, %154 : vector<32x3xf32>
    %226 = vector.broadcast %223 : vector<32x1xf32> to vector<32x3xf32>
    %227 = arith.mulf %226, %225 : vector<32x3xf32>
    %228 = arith.addf %154, %227 : vector<32x3xf32>
    %229 = vector.broadcast %4 : vector<32x1xf32> to vector<32x3xf32>
    %230 = arith.mulf %228, %229 : vector<32x3xf32>
    %231 = vector.broadcast %155 : f32 to vector<32x1xf32>
    %232 = arith.cmpf ogt, %3, %231 : vector<32x1xf32>
    %233 = arith.extui %232 : vector<32x1xi1> to vector<32x1xi32>
    %234 = arith.sitofp %233 : vector<32x1xi32> to vector<32x1xf32>
    %235 = vector.broadcast %155 : f32 to vector<32x1xf32>
    %236 = arith.subf %3, %235 : vector<32x1xf32>
    %cst_77 = arith.constant 2.500000e-01 : f32
    %237 = vector.broadcast %cst_77 : f32 to vector<32x1xf32>
    %238 = arith.maximumf %236, %237 : vector<32x1xf32>
    %239 = arith.subf %230, %154 : vector<32x3xf32>
    %cst_78 = arith.constant 2.500000e-01 : f32
    %240 = vector.broadcast %cst_78 : f32 to vector<32x3xf32>
    %241 = arith.mulf %240, %239 : vector<32x3xf32>
    %242 = vector.broadcast %238 : vector<32x1xf32> to vector<32x3xf32>
    %243 = arith.divf %241, %242 : vector<32x3xf32>
    %244 = vector.broadcast %234 : vector<32x1xf32> to vector<32x3xf32>
    %245 = arith.mulf %244, %243 : vector<32x3xf32>
    %246 = arith.addf %154, %245 : vector<32x3xf32>
    %247 = vector.broadcast %4 : vector<32x1xf32> to vector<32x3xf32>
    %248 = arith.mulf %246, %247 : vector<32x3xf32>
    %cst_79 = arith.constant 5.000000e-01 : f32
    %249 = arith.addf %13, %cst_79 : f32
    %250 = vector.broadcast %249 : f32 to vector<32x1xf32>
    %251 = arith.subf %250, %2 : vector<32x1xf32>
    %cst_80 = arith.constant 2.000000e+00 : f32
    %252 = vector.broadcast %cst_80 : f32 to vector<32x1xf32>
    %253 = arith.mulf %251, %252 : vector<32x1xf32>
    %cst_81 = arith.constant 0.000000e+00 : f32
    %cst_82 = arith.constant 1.000000e+00 : f32
    %254 = vector.broadcast %cst_81 : f32 to vector<32x1xf32>
    %255 = arith.maximumf %254, %253 : vector<32x1xf32>
    %256 = vector.broadcast %cst_82 : f32 to vector<32x1xf32>
    %257 = arith.minimumf %256, %255 : vector<32x1xf32>
    %258 = vector.broadcast %249 : f32 to vector<1x32xf32>
    %259 = arith.mulf %258, %59 : vector<1x32xf32>
    %260 = vector.broadcast %259 : vector<1x32xf32> to vector<32x32xf32>
    %261 = arith.addf %57, %260 : vector<32x32xf32>
    %262 = vector.broadcast %257 : vector<32x1xf32> to vector<32x32xf32>
    %263 = vector.broadcast %60 : vector<1x32xf32> to vector<32x32xf32>
    %264 = arith.mulf %262, %263 : vector<32x32xf32>
    %265 = arith.addf %261, %264 : vector<32x32xf32>
    %cst_83 = arith.constant 0.000000e+00 : f32
    %266 = vector.broadcast %cst_83 : f32 to vector<32x32xf32>
    %267 = arith.maximumf %265, %266 : vector<32x32xf32>
    %268 = arith.truncf %267 : vector<32x32xf32> to vector<32x32xbf16>
    %c0_84 = arith.constant 0 : index
    %c0_85 = arith.constant 0 : index
    %269 = vector.load %arg7[%c0_84, %c0_85] : memref<32x32xbf16, #tpu.memory_space<vmem>>, vector<32x32xbf16>
    %cst_86 = arith.constant dense<0.000000e+00> : vector<32x32xf32>
    %270 = tpu.matmul %268, %269, %cst_86 {dimension_numbers = #tpu.dot_dimension_numbers<[1], [0], [0], [1], [0, 0, 1, 1], [], []>} : vector<32x32xbf16>, vector<32x32xbf16>, vector<32x32xf32> -> vector<32x32xf32>
    %271 = arith.truncf %270 : vector<32x32xf32> to vector<32x32xbf16>
    %272 = tpu.transpose %268, [1, 0] : vector<32x32xbf16> -> vector<32x32xbf16>
    %cst_87 = arith.constant dense<0.000000e+00> : vector<32x32xf32>
    %273 = tpu.matmul %271, %272, %cst_87 {dimension_numbers = #tpu.dot_dimension_numbers<[1], [0], [0], [1], [0, 0, 1, 1], [], []>} : vector<32x32xbf16>, vector<32x32xbf16>, vector<32x32xf32> -> vector<32x32xf32>
    %274 = arith.addf %273, %36 : vector<32x32xf32>
    %cst_88 = arith.constant dense<0xFF800000> : vector<32xf32>
    %275 = vector.multi_reduction <maximumf>, %274, %cst_88 [1] : vector<32x32xf32> to vector<32xf32>
    %276 = vector.shape_cast %275 : vector<32xf32> to vector<32x1xf32>
    %277 = vector.broadcast %276 : vector<32x1xf32> to vector<32x32xf32>
    %278 = arith.subf %274, %277 : vector<32x32xf32>
    %279 = math.exp %278 : vector<32x32xf32>
    %cst_89 = arith.constant dense<0.000000e+00> : vector<32xf32>
    %280 = vector.multi_reduction <add>, %279, %cst_89 [1] : vector<32x32xf32> to vector<32xf32>
    %281 = vector.shape_cast %280 : vector<32xf32> to vector<32x1xf32>
    %282 = tpu.reciprocal %281 {approx = true} : vector<32x1xf32> -> vector<32x1xf32>
    %283 = vector.broadcast %282 : vector<32x1xf32> to vector<32x32xf32>
    %284 = arith.mulf %279, %283 : vector<32x32xf32>
    %c0_90 = arith.constant 0 : index
    %c0_91 = arith.constant 0 : index
    %285 = vector.load %arg8[%c0_90, %c0_91] : memref<32x32xbf16, #tpu.memory_space<vmem>>, vector<32x32xbf16>
    %cst_92 = arith.constant dense<0.000000e+00> : vector<32x32xf32>
    %286 = tpu.matmul %268, %285, %cst_92 {dimension_numbers = #tpu.dot_dimension_numbers<[1], [0], [0], [1], [0, 0, 1, 1], [], []>} : vector<32x32xbf16>, vector<32x32xbf16>, vector<32x32xf32> -> vector<32x32xf32>
    %287 = arith.truncf %284 : vector<32x32xf32> to vector<32x32xbf16>
    %288 = arith.truncf %286 : vector<32x32xf32> to vector<32x32xbf16>
    %cst_93 = arith.constant dense<0.000000e+00> : vector<32x32xf32>
    %289 = tpu.matmul %287, %288, %cst_93 {dimension_numbers = #tpu.dot_dimension_numbers<[1], [0], [0], [1], [0, 0, 1, 1], [], []>} : vector<32x32xbf16>, vector<32x32xbf16>, vector<32x32xf32> -> vector<32x32xf32>
    %290 = arith.addf %267, %289 : vector<32x32xf32>
    %291 = arith.truncf %290 : vector<32x32xf32> to vector<32x32xbf16>
    %cst_94 = arith.constant dense<0.000000e+00> : vector<32x32xf32>
    %292 = tpu.matmul %291, %54, %cst_94 {dimension_numbers = #tpu.dot_dimension_numbers<[1], [0], [0], [1], [0, 0, 1, 1], [], []>} : vector<32x32xbf16>, vector<32x32xbf16>, vector<32x32xf32> -> vector<32x32xf32>
    %293 = arith.addf %292, %41 : vector<32x32xf32>
    %cst_95 = arith.constant dense<0xFF800000> : vector<32xf32>
    %294 = vector.multi_reduction <maximumf>, %293, %cst_95 [1] : vector<32x32xf32> to vector<32xf32>
    %295 = vector.shape_cast %294 : vector<32xf32> to vector<32x1xf32>
    %296 = vector.broadcast %295 : vector<32x1xf32> to vector<32x32xf32>
    %297 = arith.subf %293, %296 : vector<32x32xf32>
    %298 = math.exp %297 : vector<32x32xf32>
    %cst_96 = arith.constant dense<0.000000e+00> : vector<32xf32>
    %299 = vector.multi_reduction <add>, %298, %cst_96 [1] : vector<32x32xf32> to vector<32xf32>
    %300 = vector.shape_cast %299 : vector<32xf32> to vector<32x1xf32>
    %301 = tpu.reciprocal %300 {approx = true} : vector<32x1xf32> -> vector<32x1xf32>
    %302 = vector.broadcast %301 : vector<32x1xf32> to vector<32x32xf32>
    %303 = arith.mulf %298, %302 : vector<32x32xf32>
    %304 = arith.truncf %303 : vector<32x32xf32> to vector<32x32xbf16>
    %cst_97 = arith.constant dense<0.000000e+00> : vector<32x32xf32>
    %305 = tpu.matmul %304, %50, %cst_97 {dimension_numbers = #tpu.dot_dimension_numbers<[1], [0], [0], [1], [0, 0, 1, 1], [], []>} : vector<32x32xbf16>, vector<32x32xbf16>, vector<32x32xf32> -> vector<32x32xf32>
    %306 = arith.addf %290, %305 : vector<32x32xf32>
    %307 = vector.broadcast %4 : vector<32x1xf32> to vector<32x32xf32>
    %308 = arith.mulf %306, %307 : vector<32x32xf32>
    %309 = arith.truncf %308 : vector<32x32xf32> to vector<32x32xbf16>
    %c0_98 = arith.constant 0 : index
    %c0_99 = arith.constant 0 : index
    %310 = vector.load %arg12[%c0_98, %c0_99] : memref<32x8xbf16, #tpu.memory_space<vmem>>, vector<32x8xbf16>
    %cst_100 = arith.constant dense<0.000000e+00> : vector<32x8xf32>
    %311 = tpu.matmul %309, %310, %cst_100 {dimension_numbers = #tpu.dot_dimension_numbers<[1], [0], [0], [1], [0, 0, 1, 1], [], []>} : vector<32x32xbf16>, vector<32x8xbf16>, vector<32x8xf32> -> vector<32x8xf32>
    %312 = vector.extract_strided_slice %311 {offsets = [0, 4], sizes = [32, 1], strides = [1, 1]} : vector<32x8xf32> to vector<32x1xf32>
    %313 = arith.negf %312 : vector<32x1xf32>
    %314 = math.exp %313 : vector<32x1xf32>
    %cst_101 = arith.constant 1.000000e+00 : f32
    %315 = vector.broadcast %cst_101 : f32 to vector<32x1xf32>
    %316 = arith.addf %315, %314 : vector<32x1xf32>
    %317 = arith.divf %315, %316 : vector<32x1xf32>
    %cst_102 = arith.constant dense<0.000000e+00> : vector<32x3xf32>
    %318 = tpu.matmul %47, %248, %cst_102 {dimension_numbers = #tpu.dot_dimension_numbers<[1], [0], [0], [1], [0, 0, 1, 1], [], []>} : vector<32x32xf32>, vector<32x3xf32>, vector<32x3xf32> -> vector<32x3xf32>
    %319 = arith.subf %318, %248 : vector<32x3xf32>
    %320 = vector.broadcast %317 : vector<32x1xf32> to vector<32x3xf32>
    %321 = arith.mulf %320, %319 : vector<32x3xf32>
    %322 = arith.addf %248, %321 : vector<32x3xf32>
    %323 = vector.broadcast %4 : vector<32x1xf32> to vector<32x3xf32>
    %324 = arith.mulf %322, %323 : vector<32x3xf32>
    %325 = vector.broadcast %249 : f32 to vector<32x1xf32>
    %326 = arith.cmpf ogt, %3, %325 : vector<32x1xf32>
    %327 = arith.extui %326 : vector<32x1xi1> to vector<32x1xi32>
    %328 = arith.sitofp %327 : vector<32x1xi32> to vector<32x1xf32>
    %329 = vector.broadcast %249 : f32 to vector<32x1xf32>
    %330 = arith.subf %3, %329 : vector<32x1xf32>
    %cst_103 = arith.constant 2.500000e-01 : f32
    %331 = vector.broadcast %cst_103 : f32 to vector<32x1xf32>
    %332 = arith.maximumf %330, %331 : vector<32x1xf32>
    %333 = arith.subf %324, %248 : vector<32x3xf32>
    %cst_104 = arith.constant 2.500000e-01 : f32
    %334 = vector.broadcast %cst_104 : f32 to vector<32x3xf32>
    %335 = arith.mulf %334, %333 : vector<32x3xf32>
    %336 = vector.broadcast %332 : vector<32x1xf32> to vector<32x3xf32>
    %337 = arith.divf %335, %336 : vector<32x3xf32>
    %338 = vector.broadcast %328 : vector<32x1xf32> to vector<32x3xf32>
    %339 = arith.mulf %338, %337 : vector<32x3xf32>
    %340 = arith.addf %248, %339 : vector<32x3xf32>
    %341 = vector.broadcast %4 : vector<32x1xf32> to vector<32x3xf32>
    %342 = arith.mulf %340, %341 : vector<32x3xf32>
    %cst_105 = arith.constant 7.500000e-01 : f32
    %343 = arith.addf %13, %cst_105 : f32
    %344 = vector.broadcast %343 : f32 to vector<32x1xf32>
    %345 = arith.subf %344, %2 : vector<32x1xf32>
    %cst_106 = arith.constant 2.000000e+00 : f32
    %346 = vector.broadcast %cst_106 : f32 to vector<32x1xf32>
    %347 = arith.mulf %345, %346 : vector<32x1xf32>
    %cst_107 = arith.constant 0.000000e+00 : f32
    %cst_108 = arith.constant 1.000000e+00 : f32
    %348 = vector.broadcast %cst_107 : f32 to vector<32x1xf32>
    %349 = arith.maximumf %348, %347 : vector<32x1xf32>
    %350 = vector.broadcast %cst_108 : f32 to vector<32x1xf32>
    %351 = arith.minimumf %350, %349 : vector<32x1xf32>
    %352 = vector.broadcast %343 : f32 to vector<1x32xf32>
    %353 = arith.mulf %352, %59 : vector<1x32xf32>
    %354 = vector.broadcast %353 : vector<1x32xf32> to vector<32x32xf32>
    %355 = arith.addf %57, %354 : vector<32x32xf32>
    %356 = vector.broadcast %351 : vector<32x1xf32> to vector<32x32xf32>
    %357 = vector.broadcast %60 : vector<1x32xf32> to vector<32x32xf32>
    %358 = arith.mulf %356, %357 : vector<32x32xf32>
    %359 = arith.addf %355, %358 : vector<32x32xf32>
    %cst_109 = arith.constant 0.000000e+00 : f32
    %360 = vector.broadcast %cst_109 : f32 to vector<32x32xf32>
    %361 = arith.maximumf %359, %360 : vector<32x32xf32>
    %362 = arith.truncf %361 : vector<32x32xf32> to vector<32x32xbf16>
    %c0_110 = arith.constant 0 : index
    %c0_111 = arith.constant 0 : index
    %363 = vector.load %arg7[%c0_110, %c0_111] : memref<32x32xbf16, #tpu.memory_space<vmem>>, vector<32x32xbf16>
    %cst_112 = arith.constant dense<0.000000e+00> : vector<32x32xf32>
    %364 = tpu.matmul %362, %363, %cst_112 {dimension_numbers = #tpu.dot_dimension_numbers<[1], [0], [0], [1], [0, 0, 1, 1], [], []>} : vector<32x32xbf16>, vector<32x32xbf16>, vector<32x32xf32> -> vector<32x32xf32>
    %365 = arith.truncf %364 : vector<32x32xf32> to vector<32x32xbf16>
    %366 = tpu.transpose %362, [1, 0] : vector<32x32xbf16> -> vector<32x32xbf16>
    %cst_113 = arith.constant dense<0.000000e+00> : vector<32x32xf32>
    %367 = tpu.matmul %365, %366, %cst_113 {dimension_numbers = #tpu.dot_dimension_numbers<[1], [0], [0], [1], [0, 0, 1, 1], [], []>} : vector<32x32xbf16>, vector<32x32xbf16>, vector<32x32xf32> -> vector<32x32xf32>
    %368 = arith.addf %367, %36 : vector<32x32xf32>
    %cst_114 = arith.constant dense<0xFF800000> : vector<32xf32>
    %369 = vector.multi_reduction <maximumf>, %368, %cst_114 [1] : vector<32x32xf32> to vector<32xf32>
    %370 = vector.shape_cast %369 : vector<32xf32> to vector<32x1xf32>
    %371 = vector.broadcast %370 : vector<32x1xf32> to vector<32x32xf32>
    %372 = arith.subf %368, %371 : vector<32x32xf32>
    %373 = math.exp %372 : vector<32x32xf32>
    %cst_115 = arith.constant dense<0.000000e+00> : vector<32xf32>
    %374 = vector.multi_reduction <add>, %373, %cst_115 [1] : vector<32x32xf32> to vector<32xf32>
    %375 = vector.shape_cast %374 : vector<32xf32> to vector<32x1xf32>
    %376 = tpu.reciprocal %375 {approx = true} : vector<32x1xf32> -> vector<32x1xf32>
    %377 = vector.broadcast %376 : vector<32x1xf32> to vector<32x32xf32>
    %378 = arith.mulf %373, %377 : vector<32x32xf32>
    %c0_116 = arith.constant 0 : index
    %c0_117 = arith.constant 0 : index
    %379 = vector.load %arg8[%c0_116, %c0_117] : memref<32x32xbf16, #tpu.memory_space<vmem>>, vector<32x32xbf16>
    %cst_118 = arith.constant dense<0.000000e+00> : vector<32x32xf32>
    %380 = tpu.matmul %362, %379, %cst_118 {dimension_numbers = #tpu.dot_dimension_numbers<[1], [0], [0], [1], [0, 0, 1, 1], [], []>} : vector<32x32xbf16>, vector<32x32xbf16>, vector<32x32xf32> -> vector<32x32xf32>
    %381 = arith.truncf %378 : vector<32x32xf32> to vector<32x32xbf16>
    %382 = arith.truncf %380 : vector<32x32xf32> to vector<32x32xbf16>
    %cst_119 = arith.constant dense<0.000000e+00> : vector<32x32xf32>
    %383 = tpu.matmul %381, %382, %cst_119 {dimension_numbers = #tpu.dot_dimension_numbers<[1], [0], [0], [1], [0, 0, 1, 1], [], []>} : vector<32x32xbf16>, vector<32x32xbf16>, vector<32x32xf32> -> vector<32x32xf32>
    %384 = arith.addf %361, %383 : vector<32x32xf32>
    %385 = arith.truncf %384 : vector<32x32xf32> to vector<32x32xbf16>
    %cst_120 = arith.constant dense<0.000000e+00> : vector<32x32xf32>
    %386 = tpu.matmul %385, %54, %cst_120 {dimension_numbers = #tpu.dot_dimension_numbers<[1], [0], [0], [1], [0, 0, 1, 1], [], []>} : vector<32x32xbf16>, vector<32x32xbf16>, vector<32x32xf32> -> vector<32x32xf32>
    %387 = arith.addf %386, %41 : vector<32x32xf32>
    %cst_121 = arith.constant dense<0xFF800000> : vector<32xf32>
    %388 = vector.multi_reduction <maximumf>, %387, %cst_121 [1] : vector<32x32xf32> to vector<32xf32>
    %389 = vector.shape_cast %388 : vector<32xf32> to vector<32x1xf32>
    %390 = vector.broadcast %389 : vector<32x1xf32> to vector<32x32xf32>
    %391 = arith.subf %387, %390 : vector<32x32xf32>
    %392 = math.exp %391 : vector<32x32xf32>
    %cst_122 = arith.constant dense<0.000000e+00> : vector<32xf32>
    %393 = vector.multi_reduction <add>, %392, %cst_122 [1] : vector<32x32xf32> to vector<32xf32>
    %394 = vector.shape_cast %393 : vector<32xf32> to vector<32x1xf32>
    %395 = tpu.reciprocal %394 {approx = true} : vector<32x1xf32> -> vector<32x1xf32>
    %396 = vector.broadcast %395 : vector<32x1xf32> to vector<32x32xf32>
    %397 = arith.mulf %392, %396 : vector<32x32xf32>
    %398 = arith.truncf %397 : vector<32x32xf32> to vector<32x32xbf16>
    %cst_123 = arith.constant dense<0.000000e+00> : vector<32x32xf32>
    %399 = tpu.matmul %398, %50, %cst_123 {dimension_numbers = #tpu.dot_dimension_numbers<[1], [0], [0], [1], [0, 0, 1, 1], [], []>} : vector<32x32xbf16>, vector<32x32xbf16>, vector<32x32xf32> -> vector<32x32xf32>
    %400 = arith.addf %384, %399 : vector<32x32xf32>
    %401 = vector.broadcast %4 : vector<32x1xf32> to vector<32x32xf32>
    %402 = arith.mulf %400, %401 : vector<32x32xf32>
    %403 = arith.truncf %402 : vector<32x32xf32> to vector<32x32xbf16>
    %c0_124 = arith.constant 0 : index
    %c0_125 = arith.constant 0 : index
    %404 = vector.load %arg11[%c0_124, %c0_125] : memref<32x32xbf16, #tpu.memory_space<vmem>>, vector<32x32xbf16>
    %cst_126 = arith.constant dense<0.000000e+00> : vector<32x32xf32>
    %405 = tpu.matmul %403, %404, %cst_126 {dimension_numbers = #tpu.dot_dimension_numbers<[1], [0], [0], [1], [0, 0, 1, 1], [], []>} : vector<32x32xbf16>, vector<32x32xbf16>, vector<32x32xf32> -> vector<32x32xf32>
    %406 = vector.broadcast %4 : vector<32x1xf32> to vector<32x32xf32>
    %407 = arith.mulf %405, %406 : vector<32x32xf32>
    %c0_127 = arith.constant 0 : index
    %c0_128 = arith.constant 0 : index
    %408 = vector.load %arg12[%c0_127, %c0_128] : memref<32x8xbf16, #tpu.memory_space<vmem>>, vector<32x8xbf16>
    %cst_129 = arith.constant dense<0.000000e+00> : vector<32x8xf32>
    %409 = tpu.matmul %403, %408, %cst_129 {dimension_numbers = #tpu.dot_dimension_numbers<[1], [0], [0], [1], [0, 0, 1, 1], [], []>} : vector<32x32xbf16>, vector<32x8xbf16>, vector<32x8xf32> -> vector<32x8xf32>
    %410 = vector.extract_strided_slice %409 {offsets = [0, 0], sizes = [32, 4], strides = [1, 1]} : vector<32x8xf32> to vector<32x4xf32>
    %411 = vector.extract_strided_slice %409 {offsets = [0, 4], sizes = [32, 1], strides = [1, 1]} : vector<32x8xf32> to vector<32x1xf32>
    %412 = arith.negf %411 : vector<32x1xf32>
    %413 = math.exp %412 : vector<32x1xf32>
    %cst_130 = arith.constant 1.000000e+00 : f32
    %414 = vector.broadcast %cst_130 : f32 to vector<32x1xf32>
    %415 = arith.addf %414, %413 : vector<32x1xf32>
    %416 = arith.divf %414, %415 : vector<32x1xf32>
    %cst_131 = arith.constant dense<0.000000e+00> : vector<32x3xf32>
    %417 = tpu.matmul %47, %342, %cst_131 {dimension_numbers = #tpu.dot_dimension_numbers<[1], [0], [0], [1], [0, 0, 1, 1], [], []>} : vector<32x32xf32>, vector<32x3xf32>, vector<32x3xf32> -> vector<32x3xf32>
    %418 = arith.subf %417, %342 : vector<32x3xf32>
    %419 = vector.broadcast %416 : vector<32x1xf32> to vector<32x3xf32>
    %420 = arith.mulf %419, %418 : vector<32x3xf32>
    %421 = arith.addf %342, %420 : vector<32x3xf32>
    %422 = vector.broadcast %4 : vector<32x1xf32> to vector<32x3xf32>
    %423 = arith.mulf %421, %422 : vector<32x3xf32>
    %424 = vector.broadcast %343 : f32 to vector<32x1xf32>
    %425 = arith.cmpf ogt, %3, %424 : vector<32x1xf32>
    %426 = arith.extui %425 : vector<32x1xi1> to vector<32x1xi32>
    %427 = arith.sitofp %426 : vector<32x1xi32> to vector<32x1xf32>
    %428 = vector.broadcast %343 : f32 to vector<32x1xf32>
    %429 = arith.subf %3, %428 : vector<32x1xf32>
    %cst_132 = arith.constant 2.500000e-01 : f32
    %430 = vector.broadcast %cst_132 : f32 to vector<32x1xf32>
    %431 = arith.maximumf %429, %430 : vector<32x1xf32>
    %432 = arith.subf %423, %342 : vector<32x3xf32>
    %cst_133 = arith.constant 2.500000e-01 : f32
    %433 = vector.broadcast %cst_133 : f32 to vector<32x3xf32>
    %434 = arith.mulf %433, %432 : vector<32x3xf32>
    %435 = vector.broadcast %431 : vector<32x1xf32> to vector<32x3xf32>
    %436 = arith.divf %434, %435 : vector<32x3xf32>
    %437 = vector.broadcast %427 : vector<32x1xf32> to vector<32x3xf32>
    %438 = arith.mulf %437, %436 : vector<32x3xf32>
    %439 = arith.addf %342, %438 : vector<32x3xf32>
    %440 = vector.broadcast %4 : vector<32x1xf32> to vector<32x3xf32>
    %441 = arith.mulf %439, %440 : vector<32x3xf32>
    %cst_134 = arith.constant 0.000000e+00 : f32
    %442 = vector.broadcast %cst_134 : f32 to vector<32x86xf32>
    %443 = tpu.concatenate %441, %423, %410, %407, %442 in 1 : vector<32x3xf32>, vector<32x3xf32>, vector<32x4xf32>, vector<32x32xf32>, vector<32x86xf32> -> vector<32x128xf32>
    %c0_135 = arith.constant 0 : index
    %c0_136 = arith.constant 0 : index
    %444 = vector.load %arg13[%c0_135, %c0_136] : memref<32x128xf32, #tpu.memory_space<vmem>>, vector<32x128xf32>
    tpu.vector_store %arg13[%c0_135, %c0_136], %443 {strides = array<i32>} : memref<32x128xf32, #tpu.memory_space<vmem>>, vector<32x128xf32>,
    return
  }
}

</mosaic_0001>

<llo_original>
// kernel: eq.1
$region0: #{eq.1}
  %s0 = inlined_call_operand.vmem [shape: s32[2,16], index: 0, kind: input, shape index: {}]
  %s1 = inlined_call_operand.vmem [shape: s32[32], index: 1, kind: output, shape index: {}]
  $region1: #{eq.1} parent=0
    #allocation0 [shape = 'u8[4096]{0}', space=vmem, size = 0x1000, scoped, tag = 'scoped mem for output reshape']
    #allocation1 [shape = 'u8[4096]{0}', space=vmem, size = 0x1000, scoped, tag = 'scoped mem for input reshape']
    %s3 = ssub.s32 4, 1
    %v4 = vld [vmem:[%s0] sm:%s3]
    %5 = vst [vmem:[#allocation1] sm:%s3] %v4
    %v6 = vld [vmem:[#allocation1] sm:$0x1]
    %vm7 = vcmask 130048
    %8 = vst.msk [vmem:[#allocation0] sm:$0x1] %vm7, %v6
    %s9 = scalar_lea.vmem [#allocation1], 1
    %v10 = vld [vmem:[%s9] sm:$0x1]
    %11 = vrot.lane.b32.xlu0 %v10, 16
    %v12 = vpop.permute.xlu0 %11
    %vm13 = vcmask 261248
    %14 = vst.msk [vmem:[#allocation0] sm:$0x1] %vm13, %v12
    %s16 = ssub.s32 2, 1
    %v17 = vld [vmem:[#allocation0] sm:%s16]
    %s19 = ssub.s32 2, 1
    %20 = vst [vmem:[%s1] sm:%s19] %v17

// kernel: _cgflow_run_jit.1
$region0: #{_cgflow_run_jit.1}
  #allocation0 [shape = 'u32[]', space=smem, size = 0x4, offset = 0x4, fixed_abs, tag = 'smem constant byte address 0x4 - core index']
  #allocation1 [shape = 'u32[72,128]{1,0:T(1,128)}', space=vmem, size = 0x9000, scoped, tag = 'internal scratch']
  #allocation2 [shape = 'f32[1,1]{1,0:T(1,128)S(6)}', space=smem, size = 0x200, scoped, tag = 'scoped memory for _cgflow_run_jit.1']
  %s0 = inlined_call_operand.<no memory space> [shape: f32[1,1], index: 0, kind: input, shape index: {}]
  %s1 = inlined_call_operand.vmem [shape: f32[32,3], index: 1, kind: input, shape index: {}]
  %s2 = inlined_call_operand.vmem [shape: f32[32,20], index: 2, kind: input, shape index: {}]
  %s3 = inlined_call_operand.vmem [shape: f32[1,128], index: 3, kind: input, shape index: {}]
  %s4 = inlined_call_operand.vmem [shape: bf16[32,32], index: 4, kind: input, shape index: {}]
  %s5 = inlined_call_operand.vmem [shape: bf16[16,32], index: 5, kind: input, shape index: {}]
  %s6 = inlined_call_operand.vmem [shape: f32[2,32], index: 6, kind: input, shape index: {}]
  %s7 = inlined_call_operand.vmem [shape: bf16[32,32], index: 7, kind: input, shape index: {}]
  %s8 = inlined_call_operand.vmem [shape: bf16[32,32], index: 8, kind: input, shape index: {}]
  %s9 = inlined_call_operand.vmem [shape: bf16[32,32], index: 9, kind: input, shape index: {}]
  %s10 = inlined_call_operand.vmem [shape: bf16[32,32], index: 10, kind: input, shape index: {}]
  %s11 = inlined_call_operand.vmem [shape: bf16[32,32], index: 11, kind: input, shape index: {}]
  %s12 = inlined_call_operand.vmem [shape: bf16[32,8], index: 12, kind: input, shape index: {}]
  %s13 = inlined_call_operand.vmem [shape: f32[32,128], index: 13, kind: output, shape index: {}]
  %s14 = sld [smem:[#allocation0]]
  $region62: #{_cgflow_run_jit.1} parent=0
    _
  %s16 = ssub.s32 1, %s14
  %s17 = scalar_select 0, %s16, %s14
  %18 = sst [smem:[#allocation2]] %s0
  // Predicated region
  $region2: #{_cgflow_run_jit.1} parent=0 // pred_check
    _
  $region3: #{_cgflow_run_jit.1} parent=0 // pred_check_branch
    %20 = sbr.rel (0) target = $region5
  $region4: #{_cgflow_run_jit.1} parent=0 // pred_region
    _
  $region5: #{_cgflow_run_jit.1} parent=0 // pred_fallthru
    _
  // Predicated region
  $region6: #{_cgflow_run_jit.1} parent=0 // pred_check
    _
  $region7: #{_cgflow_run_jit.1} parent=0 // pred_check_branch
    %22 = sbr.rel (0) target = $region9
  $region8: #{_cgflow_run_jit.1} parent=0 // pred_region
    _
  $region9: #{_cgflow_run_jit.1} parent=0 // pred_fallthru
    _
  // Predicated region
  $region10: #{_cgflow_run_jit.1} parent=0 // pred_check
    _
  $region11: #{_cgflow_run_jit.1} parent=0 // pred_check_branch
    %24 = sbr.rel (0) target = $region13
  $region12: #{_cgflow_run_jit.1} parent=0 // pred_region
    _
  $region13: #{_cgflow_run_jit.1} parent=0 // pred_fallthru
    _
  // Predicated region
  $region14: #{_cgflow_run_jit.1} parent=0 // pred_check
    _
  $region15: #{_cgflow_run_jit.1} parent=0 // pred_check_branch
    %26 = sbr.rel (0) target = $region17
  $region16: #{_cgflow_run_jit.1} parent=0 // pred_region
    _
  $region17: #{_cgflow_run_jit.1} parent=0 // pred_fallthru
    _
  // Predicated region
  $region18: #{_cgflow_run_jit.1} parent=0 // pred_check
    _
  $region19: #{_cgflow_run_jit.1} parent=0 // pred_check_branch
    %28 = sbr.rel (0) target = $region21
  $region20: #{_cgflow_run_jit.1} parent=0 // pred_region
    _
  $region21: #{_cgflow_run_jit.1} parent=0 // pred_fallthru
    _
  // Predicated region
  $region22: #{_cgflow_run_jit.1} parent=0 // pred_check
    _
  $region23: #{_cgflow_run_jit.1} parent=0 // pred_check_branch
    %30 = sbr.rel (0) target = $region25
  $region24: #{_cgflow_run_jit.1} parent=0 // pred_region
    _
  $region25: #{_cgflow_run_jit.1} parent=0 // pred_fallthru
    _
  // Predicated region
  $region26: #{_cgflow_run_jit.1} parent=0 // pred_check
    _
  $region27: #{_cgflow_run_jit.1} parent=0 // pred_check_branch
    %32 = sbr.rel (0) target = $region29
  $region28: #{_cgflow_run_jit.1} parent=0 // pred_region
    _
  $region29: #{_cgflow_run_jit.1} parent=0 // pred_fallthru
    _
  // Predicated region
  $region30: #{_cgflow_run_jit.1} parent=0 // pred_check
    _
  $region31: #{_cgflow_run_jit.1} parent=0 // pred_check_branch
    %34 = sbr.rel (0) target = $region33
  $region32: #{_cgflow_run_jit.1} parent=0 // pred_region
    _
  $region33: #{_cgflow_run_jit.1} parent=0 // pred_fallthru
    _
  // Predicated region
  $region34: #{_cgflow_run_jit.1} parent=0 // pred_check
    _
  $region35: #{_cgflow_run_jit.1} parent=0 // pred_check_branch
    %36 = sbr.rel (0) target = $region37
  $region36: #{_cgflow_run_jit.1} parent=0 // pred_region
    _
  $region37: #{_cgflow_run_jit.1} parent=0 // pred_fallthru
    _
  // Predicated region
  $region38: #{_cgflow_run_jit.1} parent=0 // pred_check
    _
  $region39: #{_cgflow_run_jit.1} parent=0 // pred_check_branch
    %38 = sbr.rel (0) target = $region41
  $region40: #{_cgflow_run_jit.1} parent=0 // pred_region
    _
  $region41: #{_cgflow_run_jit.1} parent=0 // pred_fallthru
    _
  // Predicated region
  $region42: #{_cgflow_run_jit.1} parent=0 // pred_check
    _
  $region43: #{_cgflow_run_jit.1} parent=0 // pred_check_branch
    %40 = sbr.rel (0) target = $region45
  $region44: #{_cgflow_run_jit.1} parent=0 // pred_region
    _
  $region45: #{_cgflow_run_jit.1} parent=0 // pred_fallthru
    _
  // Predicated region
  $region46: #{_cgflow_run_jit.1} parent=0 // pred_check
    _
  $region47: #{_cgflow_run_jit.1} parent=0 // pred_check_branch
    %42 = sbr.rel (0) target = $region49
  $region48: #{_cgflow_run_jit.1} parent=0 // pred_region
    _
  $region49: #{_cgflow_run_jit.1} parent=0 // pred_fallthru
    _
  // Predicated region
  $region50: #{_cgflow_run_jit.1} parent=0 // pred_check
    _
  $region51: #{_cgflow_run_jit.1} parent=0 // pred_check_branch
    %44 = sbr.rel (0) target = $region53
  $region52: #{_cgflow_run_jit.1} parent=0 // pred_region
    _
  $region53: #{_cgflow_run_jit.1} parent=0 // pred_fallthru
    _
  %v46 = vld [vmem:[%s2] sm:$0xff]
  %v47 = vld [vmem:[%s2 + $0x8] sm:$0xff]
  %v48 = vld [vmem:[%s2 + $0x10] sm:$0xff]
  %v49 = vld [vmem:[%s2 + $0x18] sm:$0xff]
  %v50 = vld [vmem:[%s3] sm:$0x1]
  %v51 = vld [vmem:[%s1] sm:$0xff]
  %v52 = vld [vmem:[%s1 + $0x8] sm:$0xff]
  %v53 = vld [vmem:[%s1 + $0x10] sm:$0xff]
  %v54 = vld [vmem:[%s1 + $0x18] sm:$0xff]
  %v55 = vld [vmem:[%s4] sm:$0xf]
  %v56 = vld [vmem:[%s4 + $0x4] sm:$0xf]
  %v57 = vld [vmem:[%s4 + $0x8] sm:$0xf]
  %v58 = vld [vmem:[%s4 + $0xc] sm:$0xf]
  %s59 = sld [smem:[#allocation2]]
  %61 = vset.pattern.permute.xlu0 18
  %62 = vperm.xlu0 %61, %v46
  %v63 = vpop.permute.xlu0 %62
  %66 = vset.pattern.permute.xlu0 18
  %67 = vperm.xlu0 %66, %v47
  %v68 = vpop.permute.xlu0 %67
  %71 = vset.pattern.permute.xlu0 18
  %72 = vperm.xlu0 %71, %v48
  %v73 = vpop.permute.xlu0 %72
  %76 = vset.pattern.permute.xlu0 18
  %77 = vperm.xlu0 %76, %v49
  %v78 = vpop.permute.xlu0 %77
  %v81 = vperm.slane %v50, 0
  %v83 = vmul.f32 %v63, %v81
  %v84 = vmul.f32 %v68, %v81
  %v85 = vmul.f32 %v73, %v81
  %v86 = vmul.f32 %v78, %v81
  %87 = vset.pattern.permute.xlu0 19
  %88 = vperm.xlu0 %87, %v46
  %v89 = vpop.permute.xlu0 %88
  %91 = vset.pattern.permute.xlu0 19
  %92 = vperm.xlu0 %91, %v47
  %v93 = vpop.permute.xlu0 %92
  %95 = vset.pattern.permute.xlu0 19
  %96 = vperm.xlu0 %95, %v48
  %v97 = vpop.permute.xlu0 %96
  %99 = vset.pattern.permute.xlu0 19
  %100 = vperm.xlu0 %99, %v49
  %v101 = vpop.permute.xlu0 %100
  %vm103 = vcmp.eq.f32.partialorder %v89, %v81
  %vm104 = vcmp.eq.f32.partialorder %v93, %v81
  %vm105 = vcmp.eq.f32.partialorder %v97, %v81
  %vm106 = vcmp.eq.f32.partialorder %v101, %v81
  %v107 = vsel %vm103, 1, 0
  %v108 = vsel %vm104, 1, 0
  %v109 = vsel %vm105, 1, 0
  %v110 = vsel %vm106, 1, 0
  %v111 = vcvt.s32.f32 %v107
  %v112 = vcvt.s32.f32 %v108
  %v113 = vcvt.s32.f32 %v109
  %v114 = vcvt.s32.f32 %v110
  %119 = vrot.lane.b32.xlu0 %v111, 96
  %v120 = vpop.permute.xlu0 %119
  %121 = vrot.lane.b32.xlu0 %v112, 96
  %v122 = vpop.permute.xlu0 %121
  %123 = vrot.lane.b32.xlu0 %v113, 96
  %v124 = vpop.permute.xlu0 %123
  %125 = vrot.lane.b32.xlu0 %v114, 96
  %v126 = vpop.permute.xlu0 %125
  %v131 = vmul.f32 %v83, %v120
  %v132 = vmul.f32 %v84, %v122
  %v133 = vmul.f32 %v85, %v124
  %v134 = vmul.f32 %v86, %v126
  %vm135 = vcmp.gt.f32.partialorder %v131, 0.0
  %vm136 = vcmp.gt.f32.partialorder %v132, 0.0
  %vm137 = vcmp.gt.f32.partialorder %v133, 0.0
  %vm138 = vcmp.gt.f32.partialorder %v134, 0.0
  %v139 = vsel %vm135, 0.0, -1e+09
  %v140 = vsel %vm136, 0.0, -1e+09
  %v141 = vsel %vm137, 0.0, -1e+09
  %v142 = vsel %vm138, 0.0, -1e+09
  %vm143 = vcmask 261120
  %v144 = vsel %vm143, %v131, 0.0
  %145 = vadd.xlane.f32.xlu0 %v144
  %v146 = vpop.xlane.xlu0 %145
  %v147 = vsel %vm143, %v132, 0.0
  %148 = vadd.xlane.f32.xlu0 %v147
  %v149 = vpop.xlane.xlu0 %148
  %v150 = vsel %vm143, %v133, 0.0
  %151 = vadd.xlane.f32.xlu0 %v150
  %v152 = vpop.xlane.xlu0 %151
  %v153 = vsel %vm143, %v134, 0.0
  %154 = vadd.xlane.f32.xlu0 %v153
  %v155 = vpop.xlane.xlu0 %154
  %v156 = vmax.f32 %v146, 1.0
  %v157 = vmax.f32 %v149, 1.0
  %v158 = vmax.f32 %v152, 1.0
  %v159 = vmax.f32 %v155, 1.0
  %v160 = vrcp.pop %v156
  %v161 = vmul.f32 %v156, %v160
  %v162 = vsub.f32 1.0, %v161
  %v163 = vmul.f32 %v160, %v162
  %v164 = vadd.f32 %v160, %v163
  %vm165 = vweird.f32 %v156
  %vm166 = vweird.f32 %v160
  %vm167 = vmor %vm165, %vm166
  %v168 = vsel %vm167, %v160, %v164
  %v169 = vand.u32 2147483647, %v156
  %vm170 = vcmp.eq.f32.partialorder %v169, 8.507059e+37
  %v171 = vand.u32 %v156, 2147483648
  %v172 = vor.u32 1.1754944e-38, %v171
  %v173 = vsel %vm170, %v172, %v168
  %v174 = vmul.f32 %v131, %v173
  %v175 = vrcp.pop %v157
  %v176 = vmul.f32 %v157, %v175
  %v177 = vsub.f32 1.0, %v176
  %v178 = vmul.f32 %v175, %v177
  %v179 = vadd.f32 %v175, %v178
  %vm180 = vweird.f32 %v157
  %vm181 = vweird.f32 %v175
  %vm182 = vmor %vm180, %vm181
  %v183 = vsel %vm182, %v175, %v179
  %v184 = vand.u32 2147483647, %v157
  %vm185 = vcmp.eq.f32.partialorder %v184, 8.507059e+37
  %v186 = vand.u32 %v157, 2147483648
  %v187 = vor.u32 1.1754944e-38, %v186
  %v188 = vsel %vm185, %v187, %v183
  %v189 = vmul.f32 %v132, %v188
  %v190 = vrcp.pop %v158
  %v191 = vmul.f32 %v158, %v190
  %v192 = vsub.f32 1.0, %v191
  %v193 = vmul.f32 %v190, %v192
  %v194 = vadd.f32 %v190, %v193
  %vm195 = vweird.f32 %v158
  %vm196 = vweird.f32 %v190
  %vm197 = vmor %vm195, %vm196
  %v198 = vsel %vm197, %v190, %v194
  %v199 = vand.u32 2147483647, %v158
  %vm200 = vcmp.eq.f32.partialorder %v199, 8.507059e+37
  %v201 = vand.u32 %v158, 2147483648
  %v202 = vor.u32 1.1754944e-38, %v201
  %v203 = vsel %vm200, %v202, %v198
  %v204 = vmul.f32 %v133, %v203
  %v205 = vrcp.pop %v159
  %v206 = vmul.f32 %v159, %v205
  %v207 = vsub.f32 1.0, %v206
  %v208 = vmul.f32 %v205, %v207
  %v209 = vadd.f32 %v205, %v208
  %vm210 = vweird.f32 %v159
  %vm211 = vweird.f32 %v205
  %vm212 = vmor %vm210, %vm211
  %v213 = vsel %vm212, %v205, %v209
  %v214 = vand.u32 2147483647, %v159
  %vm215 = vcmp.eq.f32.partialorder %v214, 8.507059e+37
  %v216 = vand.u32 %v159, 2147483648
  %v217 = vor.u32 1.1754944e-38, %v216
  %v218 = vsel %vm215, %v217, %v213
  %v219 = vmul.f32 %v134, %v218
  %v220 = vld [vmem:[%s10] sm:$0xf]
  %v221 = vld [vmem:[%s10 + $0x4] sm:$0xf]
  %v222 = vld [vmem:[%s10 + $0x8] sm:$0xf]
  %v223 = vld [vmem:[%s10 + $0xc] sm:$0xf]
  %v228 = vunpack.c.l.b16 %v55
  %v229 = vunpack.c.l.b16 %v56
  %v230 = vunpack.c.l.b16 %v57
  %v231 = vunpack.c.l.b16 %v58
  %v232 = vpack.c.b16 %v229, %v228
  %v233 = vpack.c.b16 %v231, %v230
  %v238 = vunpack.c.l.b16 %v220
  %v239 = vunpack.c.l.b16 %v221
  %v240 = vunpack.c.l.b16 %v222
  %v241 = vunpack.c.l.b16 %v223
  %v242 = vpack.c.b16 %v239, %v238
  %v243 = vpack.c.b16 %v241, %v240
  %v247 = vsel %vm143, %v232, 0
  %v250 = vsel %vm143, %v233, 0
  %252 = vmatpush.bf16.msra.mxu0 0
  %253 = vmatpush.bf16.msra.mxu0 0
  %254 = vmatpush.bf16.msra.mxu0 0
  %255 = vmatpush.bf16.msra.mxu0 0
  %256 = vmatpush.bf16.msra.mxu0 0
  %257 = vmatpush.bf16.msra.mxu0 0
  %258 = vmatpush.bf16.msra.mxu0 %v243
  %259 = vmatpush.bf16.msra.mxu0 %v242
  %260 = vmatmul.bf16.gmra.mxu0 %v247
  %v261 = vpop.f32.mrf.mxu0
  %v262 = vadd.f32 0.0, %v261
  %v263 = vpop.f32.mrf.mxu0
  %v264 = vadd.f32 0.0, %v263
  %265 = vmatmul.bf16.gmra.mxu0 %v250
  %v266 = vpop.f32.mrf.mxu0
  %v267 = vadd.f32 0.0, %v266
  %v268 = vpop.f32.mrf.mxu0
  %v269 = vadd.f32 0.0, %v268
  %270 = vdwg.mxu0
  %v271 = vpack.c.bf16 %v264, %v262
  %v272 = vpack.c.bf16 %v269, %v267
  %v273 = vld [vmem:[%s9] sm:$0xf]
  %v274 = vld [vmem:[%s9 + $0x4] sm:$0xf]
  %v275 = vld [vmem:[%s9 + $0x8] sm:$0xf]
  %v276 = vld [vmem:[%s9 + $0xc] sm:$0xf]
  %v281 = vunpack.c.l.b16 %v273
  %v282 = vunpack.c.l.b16 %v274
  %v283 = vunpack.c.l.b16 %v275
  %v284 = vunpack.c.l.b16 %v276
  %v285 = vpack.c.b16 %v282, %v281
  %v286 = vpack.c.b16 %v284, %v283
  %v288 = vsel %vm143, %v285, 0
  %v291 = vsel %vm143, %v286, 0
  %293 = vmatpush.bf16.xpose.msra.mxu0 0
  %294 = vmatpush.bf16.xpose.msra.mxu0 0
  %295 = vmatpush.bf16.xpose.msra.mxu0 0
  %296 = vmatpush.bf16.xpose.msra.mxu0 0
  %297 = vmatpush.bf16.xpose.msra.mxu0 0
  %298 = vmatpush.bf16.xpose.msra.mxu0 0
  %299 = vmatpush.bf16.xpose.msra.mxu0 %v250
  %300 = vmatpush.bf16.xpose.msra.mxu0 %v247
  %301 = vmatmul.bf16.gmra.mxu0 %v288
  %v302 = vpop.f32.mrf.mxu0
  %v303 = vadd.f32 0.0, %v302
  %v304 = vpop.f32.mrf.mxu0
  %v305 = vadd.f32 0.0, %v304
  %306 = vmatmul.bf16.gmra.mxu0 %v291
  %v307 = vpop.f32.mrf.mxu0
  %v308 = vadd.f32 0.0, %v307
  %v309 = vpop.f32.mrf.mxu0
  %v310 = vadd.f32 0.0, %v309
  %311 = vdwg.mxu0
  %v312 = vpack.c.bf16 %v305, %v303
  %v313 = vpack.c.bf16 %v310, %v308
  %v314 = vpack.c.bf16 %v47, %v46
  %v315 = vpack.c.bf16 %v49, %v48
  %v316 = vld [vmem:[%s5] sm:$0xf]
  %v317 = vld [vmem:[%s5 + $0x4] sm:$0xf]
  %v320 = vunpack.c.l.b16 %v316
  %v321 = vunpack.c.l.b16 %v317
  %v322 = vpack.c.b16 %v321, %v320
  %vm324 = vcmask 130048
  %v326 = vsel %vm324, %v314, 0
  %v329 = vsel %vm324, %v315, 0
  %331 = vmatpush.bf16.msra.mxu0 0
  %332 = vmatpush.bf16.msra.mxu0 0
  %333 = vmatpush.bf16.msra.mxu0 0
  %334 = vmatpush.bf16.msra.mxu0 0
  %335 = vmatpush.bf16.msra.mxu0 0
  %336 = vmatpush.bf16.msra.mxu0 0
  %337 = vmatpush.bf16.msra.mxu0 0
  %338 = vmatpush.bf16.msra.mxu0 %v322
  %339 = vmatmul.bf16.gmra.mxu0 %v326
  %v340 = vpop.f32.mrf.mxu0
  %v341 = vadd.f32 0.0, %v340
  %v342 = vpop.f32.mrf.mxu0
  %v343 = vadd.f32 0.0, %v342
  %344 = vmatmul.bf16.gmra.mxu0 %v329
  %v345 = vpop.f32.mrf.mxu0
  %v346 = vadd.f32 0.0, %v345
  %v347 = vpop.f32.mrf.mxu0
  %v348 = vadd.f32 0.0, %v347
  %349 = vdwg.mxu0
  %v350 = vld [vmem:[%s6] sm:$0x3]
  %s351 = sadd.f32 %s59, 0.0
  %v352 = vstv %s351
  %v353 = vsub.f32 %v352, %v46
  %v354 = vsub.f32 %v352, %v47
  %v355 = vsub.f32 %v352, %v48
  %v356 = vsub.f32 %v352, %v49
  %v357 = vmul.f32 %v353, 2.0
  %v358 = vmul.f32 %v354, 2.0
  %v359 = vmul.f32 %v355, 2.0
  %v360 = vmul.f32 %v356, 2.0
  %v361 = vmax.f32 %v357, 0.0
  %v362 = vmax.f32 %v358, 0.0
  %v363 = vmax.f32 %v359, 0.0
  %v364 = vmax.f32 %v360, 0.0
  %v365 = vmin.f32 %v361, 1.0
  %v366 = vmin.f32 %v362, 1.0
  %v367 = vmin.f32 %v363, 1.0
  %v368 = vmin.f32 %v364, 1.0
  %v369 = vmul.f32 %v352, %v350
  %v370 = vperm.slane %v369, 0
  %v371 = vadd.f32 %v341, %v370
  %v372 = vadd.f32 %v343, %v370
  %v373 = vadd.f32 %v346, %v370
  %v374 = vadd.f32 %v348, %v370
  %376 = vset.pattern.permute.xlu0 16
  %377 = vperm.xlu0 %376, %v365
  %v378 = vpop.permute.xlu0 %377
  %381 = vset.pattern.permute.xlu0 16
  %382 = vperm.xlu0 %381, %v366
  %v383 = vpop.permute.xlu0 %382
  %386 = vset.pattern.permute.xlu0 16
  %387 = vperm.xlu0 %386, %v367
  %v388 = vpop.permute.xlu0 %387
  %391 = vset.pattern.permute.xlu0 16
  %392 = vperm.xlu0 %391, %v368
  %v393 = vpop.permute.xlu0 %392
  %v395 = vperm.slane %v350, 1
  %v396 = vmul.f32 %v378, %v395
  %v397 = vmul.f32 %v383, %v395
  %v398 = vmul.f32 %v388, %v395
  %v399 = vmul.f32 %v393, %v395
  %v400 = vadd.f32 %v371, %v396
  %v401 = vadd.f32 %v372, %v397
  %v402 = vadd.f32 %v373, %v398
  %v403 = vadd.f32 %v374, %v399
  %v404 = vmax.f32 %v400, 0.0
  %v405 = vmax.f32 %v401, 0.0
  %v406 = vmax.f32 %v402, 0.0
  %v407 = vmax.f32 %v403, 0.0
  %v408 = vpack.c.bf16 %v405, %v404
  %v409 = vpack.c.bf16 %v407, %v406
  %v410 = vld [vmem:[%s7] sm:$0xf]
  %v411 = vld [vmem:[%s7 + $0x4] sm:$0xf]
  %v412 = vld [vmem:[%s7 + $0x8] sm:$0xf]
  %v413 = vld [vmem:[%s7 + $0xc] sm:$0xf]
  %v418 = vunpack.c.l.b16 %v410
  %v419 = vunpack.c.l.b16 %v411
  %v420 = vunpack.c.l.b16 %v412
  %v421 = vunpack.c.l.b16 %v413
  %v422 = vpack.c.b16 %v419, %v418
  %v423 = vpack.c.b16 %v421, %v420
  %v427 = vsel %vm143, %v408, 0
  %v430 = vsel %vm143, %v409, 0
  %432 = vmatpush.bf16.msra.mxu0 0
  %433 = vmatpush.bf16.msra.mxu0 0
  %434 = vmatpush.bf16.msra.mxu0 0
  %435 = vmatpush.bf16.msra.mxu0 0
  %436 = vmatpush.bf16.msra.mxu0 0
  %437 = vmatpush.bf16.msra.mxu0 0
  %438 = vmatpush.bf16.msra.mxu0 %v423
  %439 = vmatpush.bf16.msra.mxu0 %v422
  %440 = vmatmul.bf16.gmra.mxu0 %v427
  %v441 = vpop.f32.mrf.mxu0
  %v442 = vadd.f32 0.0, %v441
  %v443 = vpop.f32.mrf.mxu0
  %v444 = vadd.f32 0.0, %v443
  %445 = vmatmul.bf16.gmra.mxu0 %v430
  %v446 = vpop.f32.mrf.mxu0
  %v447 = vadd.f32 0.0, %v446
  %v448 = vpop.f32.mrf.mxu0
  %v449 = vadd.f32 0.0, %v448
  %450 = vdwg.mxu0
  %v451 = vpack.c.bf16 %v444, %v442
  %v452 = vpack.c.bf16 %v449, %v447
  %v454 = vsel %vm143, %v451, 0
  %v457 = vsel %vm143, %v452, 0
  %459 = vmatpush.bf16.xpose.msra.mxu0 0
  %460 = vmatpush.bf16.xpose.msra.mxu0 0
  %461 = vmatpush.bf16.xpose.msra.mxu0 0
  %462 = vmatpush.bf16.xpose.msra.mxu0 0
  %463 = vmatpush.bf16.xpose.msra.mxu0 0
  %464 = vmatpush.bf16.xpose.msra.mxu0 0
  %465 = vmatpush.bf16.xpose.msra.mxu0 %v430
  %466 = vmatpush.bf16.xpose.msra.mxu0 %v427
  %467 = vmatmul.bf16.gmra.mxu0 %v454
  %v468 = vpop.f32.mrf.mxu0
  %v469 = vadd.f32 %v139, %v468
  %v470 = vpop.f32.mrf.mxu0
  %v471 = vadd.f32 %v140, %v470
  %472 = vmatmul.bf16.gmra.mxu0 %v457
  %v473 = vpop.f32.mrf.mxu0
  %v474 = vadd.f32 %v141, %v473
  %v475 = vpop.f32.mrf.mxu0
  %v476 = vadd.f32 %v142, %v475
  %477 = vdwg.mxu0
  %v478 = vsel %vm143, %v469, -inf
  %479 = vmax.xlane.f32.xlu0 %v478
  %v480 = vpop.xlane.xlu0 %479
  %v481 = vsel %vm143, %v471, -inf
  %482 = vmax.xlane.f32.xlu0 %v481
  %v483 = vpop.xlane.xlu0 %482
  %v484 = vsel %vm143, %v474, -inf
  %485 = vmax.xlane.f32.xlu0 %v484
  %v486 = vpop.xlane.xlu0 %485
  %v487 = vsel %vm143, %v476, -inf
  %488 = vmax.xlane.f32.xlu0 %v487
  %v489 = vpop.xlane.xlu0 %488
  %v490 = vsub.f32 %v469, %v480
  %v491 = vsub.f32 %v471, %v483
  %v492 = vsub.f32 %v474, %v486
  %v493 = vsub.f32 %v476, %v489
  %v494 = vmul.f32 %v490, 1.442695
  %v495 = vpow.pop %v494
  %v496 = vmul.f32 %v491, 1.442695
  %v497 = vpow.pop %v496
  %v498 = vmul.f32 %v492, 1.442695
  %v499 = vpow.pop %v498
  %v500 = vmul.f32 %v493, 1.442695
  %v501 = vpow.pop %v500
  %v502 = vsel %vm143, %v495, 0.0
  %503 = vadd.xlane.f32.xlu0 %v502
  %v504 = vpop.xlane.xlu0 %503
  %v505 = vsel %vm143, %v497, 0.0
  %506 = vadd.xlane.f32.xlu0 %v505
  %v507 = vpop.xlane.xlu0 %506
  %v508 = vsel %vm143, %v499, 0.0
  %509 = vadd.xlane.f32.xlu0 %v508
  %v510 = vpop.xlane.xlu0 %509
  %v511 = vsel %vm143, %v501, 0.0
  %512 = vadd.xlane.f32.xlu0 %v511
  %v513 = vpop.xlane.xlu0 %512
  %v514 = vrcp.pop %v504
  %v515 = vrcp.pop %v507
  %v516 = vrcp.pop %v510
  %v517 = vrcp.pop %v513
  %v518 = vmul.f32 %v495, %v514
  %v519 = vmul.f32 %v497, %v515
  %v520 = vmul.f32 %v499, %v516
  %v521 = vmul.f32 %v501, %v517
  %v522 = vld [vmem:[%s8] sm:$0xf]
  %v523 = vld [vmem:[%s8 + $0x4] sm:$0xf]
  %v524 = vld [vmem:[%s8 + $0x8] sm:$0xf]
  %v525 = vld [vmem:[%s8 + $0xc] sm:$0xf]
  %v530 = vunpack.c.l.b16 %v522
  %v531 = vunpack.c.l.b16 %v523
  %v532 = vunpack.c.l.b16 %v524
  %v533 = vunpack.c.l.b16 %v525
  %v534 = vpack.c.b16 %v531, %v530
  %v535 = vpack.c.b16 %v533, %v532
  %538 = vmatpush.bf16.msra.mxu0 0
  %539 = vmatpush.bf16.msra.mxu0 0
  %540 = vmatpush.bf16.msra.mxu0 0
  %541 = vmatpush.bf16.msra.mxu0 0
  %542 = vmatpush.bf16.msra.mxu0 0
  %543 = vmatpush.bf16.msra.mxu0 0
  %544 = vmatpush.bf16.msra.mxu0 %v535
  %545 = vmatpush.bf16.msra.mxu0 %v534
  %546 = vmatmul.bf16.gmra.mxu0 %v427
  %v547 = vpop.f32.mrf.mxu0
  %v548 = vadd.f32 0.0, %v547
  %v549 = vpop.f32.mrf.mxu0
  %v550 = vadd.f32 0.0, %v549
  %551 = vmatmul.bf16.gmra.mxu0 %v430
  %v552 = vpop.f32.mrf.mxu0
  %v553 = vadd.f32 0.0, %v552
  %v554 = vpop.f32.mrf.mxu0
  %v555 = vadd.f32 0.0, %v554
  %556 = vdwg.mxu0
  %v557 = vpack.c.bf16 %v519, %v518
  %v558 = vpack.c.bf16 %v521, %v520
  %v559 = vpack.c.bf16 %v550, %v548
  %v560 = vpack.c.bf16 %v555, %v553
  %v562 = vsel %vm143, %v557, 0
  %v565 = vsel %vm143, %v558, 0
  %567 = vmatpush.bf16.msra.mxu0 0
  %568 = vmatpush.bf16.msra.mxu0 0
  %569 = vmatpush.bf16.msra.mxu0 0
  %570 = vmatpush.bf16.msra.mxu0 0
  %571 = vmatpush.bf16.msra.mxu0 0
  %572 = vmatpush.bf16.msra.mxu0 0
  %573 = vmatpush.bf16.msra.mxu0 %v560
  %574 = vmatpush.bf16.msra.mxu0 %v559
  %575 = vmatmul.bf16.gmra.mxu0 %v562
  %v576 = vpop.f32.mrf.mxu0
  %v577 = vadd.f32 0.0, %v576
  %v578 = vpop.f32.mrf.mxu0
  %v579 = vadd.f32 0.0, %v578
  %580 = vmatmul.bf16.gmra.mxu0 %v565
  %v581 = vpop.f32.mrf.mxu0
  %v582 = vadd.f32 0.0, %v581
  %v583 = vpop.f32.mrf.mxu0
  %v584 = vadd.f32 0.0, %v583
  %585 = vdwg.mxu0
  %v586 = vadd.f32 %v404, %v577
  %v587 = vadd.f32 %v405, %v579
  %v588 = vadd.f32 %v406, %v582
  %v589 = vadd.f32 %v407, %v584
  %v590 = vpack.c.bf16 %v587, %v586
  %v591 = vpack.c.bf16 %v589, %v588
  %596 = vrot.lane.b32.xlu0 %v139, 64
  %v597 = vpop.permute.xlu0 %596
  %598 = vrot.lane.b32.xlu0 %v140, 64
  %v599 = vpop.permute.xlu0 %598
  %600 = vrot.lane.b32.xlu0 %v141, 64
  %v601 = vpop.permute.xlu0 %600
  %602 = vrot.lane.b32.xlu0 %v142, 64
  %v603 = vpop.permute.xlu0 %602
  %v609 = vsel %vm143, %v590, 0
  %v612 = vsel %vm143, %v591, 0
  %614 = vmatpush.bf16.msra.mxu0 0
  %615 = vmatpush.bf16.msra.mxu0 0
  %616 = vmatpush.bf16.msra.mxu0 0
  %617 = vmatpush.bf16.msra.mxu0 0
  %618 = vmatpush.bf16.msra.mxu0 0
  %619 = vmatpush.bf16.msra.mxu0 0
  %620 = vmatpush.bf16.msra.mxu0 %v313
  %621 = vmatpush.bf16.msra.mxu0 %v312
  %622 = vmatmul.bf16.gmra.mxu0 %v609
  %v623 = vpop.f32.mrf.mxu0
  %v624 = vadd.f32 %v597, %v623
  %v625 = vpop.f32.mrf.mxu0
  %v626 = vadd.f32 %v599, %v625
  %627 = vmatmul.bf16.gmra.mxu0 %v612
  %v628 = vpop.f32.mrf.mxu0
  %v629 = vadd.f32 %v601, %v628
  %v630 = vpop.f32.mrf.mxu0
  %v631 = vadd.f32 %v603, %v630
  %632 = vdwg.mxu0
  %v633 = vsel %vm143, %v624, -inf
  %634 = vmax.xlane.f32.xlu0 %v633
  %v635 = vpop.xlane.xlu0 %634
  %v636 = vsel %vm143, %v626, -inf
  %637 = vmax.xlane.f32.xlu0 %v636
  %v638 = vpop.xlane.xlu0 %637
  %v639 = vsel %vm143, %v629, -inf
  %640 = vmax.xlane.f32.xlu0 %v639
  %v641 = vpop.xlane.xlu0 %640
  %v642 = vsel %vm143, %v631, -inf
  %643 = vmax.xlane.f32.xlu0 %v642
  %v644 = vpop.xlane.xlu0 %643
  %v645 = vsub.f32 %v624, %v635
  %v646 = vsub.f32 %v626, %v638
  %v647 = vsub.f32 %v629, %v641
  %v648 = vsub.f32 %v631, %v644
  %v649 = vmul.f32 %v645, 1.442695
  %v650 = vpow.pop %v649
  %v651 = vmul.f32 %v646, 1.442695
  %v652 = vpow.pop %v651
  %v653 = vmul.f32 %v647, 1.442695
  %v654 = vpow.pop %v653
  %v655 = vmul.f32 %v648, 1.442695
  %v656 = vpow.pop %v655
  %v657 = vsel %vm143, %v650, 0.0
  %658 = vadd.xlane.f32.xlu0 %v657
  %v659 = vpop.xlane.xlu0 %658
  %v660 = vsel %vm143, %v652, 0.0
  %661 = vadd.xlane.f32.xlu0 %v660
  %v662 = vpop.xlane.xlu0 %661
  %v663 = vsel %vm143, %v654, 0.0
  %664 = vadd.xlane.f32.xlu0 %v663
  %v665 = vpop.xlane.xlu0 %664
  %v666 = vsel %vm143, %v656, 0.0
  %667 = vadd.xlane.f32.xlu0 %v666
  %v668 = vpop.xlane.xlu0 %667
  %v669 = vrcp.pop %v659
  %v670 = vrcp.pop %v662
  %v671 = vrcp.pop %v665
  %v672 = vrcp.pop %v668
  %v673 = vmul.f32 %v650, %v669
  %v674 = vmul.f32 %v652, %v670
  %v675 = vmul.f32 %v654, %v671
  %v676 = vmul.f32 %v656, %v672
  %v677 = vpack.c.bf16 %v674, %v673
  %v678 = vpack.c.bf16 %v676, %v675
  %v680 = vsel %vm143, %v677, 0
  %v683 = vsel %vm143, %v678, 0
  %685 = vmatpush.bf16.msra.mxu0 0
  %686 = vmatpush.bf16.msra.mxu0 0
  %687 = vmatpush.bf16.msra.mxu0 0
  %688 = vmatpush.bf16.msra.mxu0 0
  %689 = vmatpush.bf16.msra.mxu0 0
  %690 = vmatpush.bf16.msra.mxu0 0
  %691 = vmatpush.bf16.msra.mxu0 %v272
  %692 = vmatpush.bf16.msra.mxu0 %v271
  %693 = vmatmul.bf16.gmra.mxu0 %v680
  %v694 = vpop.f32.mrf.mxu0
  %v695 = vadd.f32 0.0, %v694
  %v696 = vpop.f32.mrf.mxu0
  %v697 = vadd.f32 0.0, %v696
  %698 = vmatmul.bf16.gmra.mxu0 %v683
  %v699 = vpop.f32.mrf.mxu0
  %v700 = vadd.f32 0.0, %v699
  %v701 = vpop.f32.mrf.mxu0
  %v702 = vadd.f32 0.0, %v701
  %703 = vdwg.mxu0
  %v704 = vadd.f32 %v586, %v695
  %v705 = vadd.f32 %v587, %v697
  %v706 = vadd.f32 %v588, %v700
  %v707 = vadd.f32 %v589, %v702
  %v708 = vmul.f32 %v704, %v63
  %v709 = vmul.f32 %v705, %v68
  %v710 = vmul.f32 %v706, %v73
  %v711 = vmul.f32 %v707, %v78
  %v712 = vpack.c.bf16 %v709, %v708
  %v713 = vpack.c.bf16 %v711, %v710
  %v714 = vld [vmem:[%s12] sm:$0xf]
  %v715 = vld [vmem:[%s12 + $0x4] sm:$0xf]
  %v716 = vld [vmem:[%s12 + $0x8] sm:$0xf]
  %v717 = vld [vmem:[%s12 + $0xc] sm:$0xf]
  %v722 = vunpack.c.l.b16 %v714
  %v723 = vunpack.c.l.b16 %v715
  %v724 = vunpack.c.l.b16 %v716
  %v725 = vunpack.c.l.b16 %v717
  %v726 = vpack.c.b16 %v723, %v722
  %v727 = vpack.c.b16 %v725, %v724
  %v731 = vsel %vm143, %v712, 0
  %v734 = vsel %vm143, %v713, 0
  %736 = vmatpush.bf16.msra.mxu0 0
  %737 = vmatpush.bf16.msra.mxu0 0
  %738 = vmatpush.bf16.msra.mxu0 0
  %739 = vmatpush.bf16.msra.mxu0 0
  %740 = vmatpush.bf16.msra.mxu0 0
  %741 = vmatpush.bf16.msra.mxu0 0
  %742 = vmatpush.bf16.msra.mxu0 %v727
  %743 = vmatpush.bf16.msra.mxu0 %v726
  %744 = vmatmul.bf16.gmra.mxu0 %v731
  %v745 = vpop.f32.mrf.mxu0
  %v746 = vadd.f32 0.0, %v745
  %v747 = vpop.f32.mrf.mxu0
  %v748 = vadd.f32 0.0, %v747
  %749 = vmatmul.bf16.gmra.mxu0 %v734
  %v750 = vpop.f32.mrf.mxu0
  %v751 = vadd.f32 0.0, %v750
  %v752 = vpop.f32.mrf.mxu0
  %v753 = vadd.f32 0.0, %v752
  %754 = vdwg.mxu0
  %v755 = vxor.u32 %v746, 2147483648
  %v756 = vxor.u32 %v748, 2147483648
  %v757 = vxor.u32 %v751, 2147483648
  %v758 = vxor.u32 %v753, 2147483648
  %v759 = vmul.f32 %v755, 1.442695
  %v760 = vpow.pop %v759
  %v761 = vmul.f32 %v756, 1.442695
  %v762 = vpow.pop %v761
  %v763 = vmul.f32 %v757, 1.442695
  %v764 = vpow.pop %v763
  %v765 = vmul.f32 %v758, 1.442695
  %v766 = vpow.pop %v765
  %v767 = vadd.f32 %v760, 1.0
  %v768 = vadd.f32 %v762, 1.0
  %v769 = vadd.f32 %v764, 1.0
  %v770 = vadd.f32 %v766, 1.0
  %v771 = vrcp.pop %v767
  %v772 = vmul.f32 %v767, %v771
  %v773 = vsub.f32 1.0, %v772
  %v774 = vmul.f32 %v771, %v773
  %v775 = vadd.f32 %v771, %v774
  %vm776 = vweird.f32 %v767
  %vm777 = vweird.f32 %v771
  %vm778 = vmor %vm776, %vm777
  %v779 = vsel %vm778, %v771, %v775
  %v780 = vand.u32 2147483647, %v767
  %vm781 = vcmp.eq.f32.partialorder %v780, 8.507059e+37
  %v782 = vand.u32 %v767, 2147483648
  %v783 = vor.u32 1.1754944e-38, %v782
  %v784 = vsel %vm781, %v783, %v779
  %v785 = vmul.f32 1.0, %v784
  %v786 = vrcp.pop %v768
  %v787 = vmul.f32 %v768, %v786
  %v788 = vsub.f32 1.0, %v787
  %v789 = vmul.f32 %v786, %v788
  %v790 = vadd.f32 %v786, %v789
  %vm791 = vweird.f32 %v768
  %vm792 = vweird.f32 %v786
  %vm793 = vmor %vm791, %vm792
  %v794 = vsel %vm793, %v786, %v790
  %v795 = vand.u32 2147483647, %v768
  %vm796 = vcmp.eq.f32.partialorder %v795, 8.507059e+37
  %v797 = vand.u32 %v768, 2147483648
  %v798 = vor.u32 1.1754944e-38, %v797
  %v799 = vsel %vm796, %v798, %v794
  %v800 = vmul.f32 1.0, %v799
  %v801 = vrcp.pop %v769
  %v802 = vmul.f32 %v769, %v801
  %v803 = vsub.f32 1.0, %v802
  %v804 = vmul.f32 %v801, %v803
  %v805 = vadd.f32 %v801, %v804
  %vm806 = vweird.f32 %v769
  %vm807 = vweird.f32 %v801
  %vm808 = vmor %vm806, %vm807
  %v809 = vsel %vm808, %v801, %v805
  %v810 = vand.u32 2147483647, %v769
  %vm811 = vcmp.eq.f32.partialorder %v810, 8.507059e+37
  %v812 = vand.u32 %v769, 2147483648
  %v813 = vor.u32 1.1754944e-38, %v812
  %v814 = vsel %vm811, %v813, %v809
  %v815 = vmul.f32 1.0, %v814
  %v816 = vrcp.pop %v770
  %v817 = vmul.f32 %v770, %v816
  %v818 = vsub.f32 1.0, %v817
  %v819 = vmul.f32 %v816, %v818
  %v820 = vadd.f32 %v816, %v819
  %vm821 = vweird.f32 %v770
  %vm822 = vweird.f32 %v816
  %vm823 = vmor %vm821, %vm822
  %v824 = vsel %vm823, %v816, %v820
  %v825 = vand.u32 2147483647, %v770
  %vm826 = vcmp.eq.f32.partialorder %v825, 8.507059e+37
  %v827 = vand.u32 %v770, 2147483648
  %v828 = vor.u32 1.1754944e-38, %v827
  %v829 = vsel %vm826, %v828, %v824
  %v830 = vmul.f32 1.0, %v829
  %v832 = vsel %vm143, %v174, 0
  %v835 = vsel %vm143, %v189, 0
  %v838 = vsel %vm143, %v204, 0
  %v841 = vsel %vm143, %v219, 0
  %843 = vmatpush.msra.mxu0 0.0
  %844 = vmatpush.msra.mxu0 0.0
  %845 = vmatpush.msra.mxu0 0.0
  %846 = vmatpush.msra.mxu0 0.0
  %847 = vmatpush.msra.mxu0 0.0
  %848 = vmatpush.msra.mxu0 0.0
  %849 = vmatpush.msra.mxu0 0.0
  %850 = vmatpush.msra.mxu0 0.0
  %851 = vmatpush.msra.mxu0 0.0
  %852 = vmatpush.msra.mxu0 0.0
  %853 = vmatpush.msra.mxu0 0.0
  %854 = vmatpush.msra.mxu0 0.0
  %855 = vmatpush.msra.mxu0 %v54
  %856 = vmatpush.msra.mxu0 %v53
  %857 = vmatpush.msra.mxu0 %v52
  %858 = vmatpush.msra.mxu0 %v51
  %859 = vmatmul.f32.gmra.mxu0 %v832
  %v860 = vpop.f32.mrf.mxu0
  %v861 = vadd.f32 0.0, %v860
  %862 = vmatmul.f32.gmra.mxu0 %v835
  %v863 = vpop.f32.mrf.mxu0
  %v864 = vadd.f32 0.0, %v863
  %865 = vmatmul.f32.gmra.mxu0 %v838
  %v866 = vpop.f32.mrf.mxu0
  %v867 = vadd.f32 0.0, %v866
  %868 = vmatmul.f32.gmra.mxu0 %v841
  %v869 = vpop.f32.mrf.mxu0
  %v870 = vadd.f32 0.0, %v869
  %871 = vdwg.mxu0
  %v872 = vsub.f32 %v861, %v51
  %v873 = vsub.f32 %v864, %v52
  %v874 = vsub.f32 %v867, %v53
  %v875 = vsub.f32 %v870, %v54
  %877 = vset.pattern.permute.xlu0 4
  %878 = vperm.xlu0 %877, %v785
  %v879 = vpop.permute.xlu0 %878
  %882 = vset.pattern.permute.xlu0 4
  %883 = vperm.xlu0 %882, %v800
  %v884 = vpop.permute.xlu0 %883
  %887 = vset.pattern.permute.xlu0 4
  %888 = vperm.xlu0 %887, %v815
  %v889 = vpop.permute.xlu0 %888
  %892 = vset.pattern.permute.xlu0 4
  %893 = vperm.xlu0 %892, %v830
  %v894 = vpop.permute.xlu0 %893
  %v896 = vmul.f32 %v879, %v872
  %v897 = vmul.f32 %v884, %v873
  %v898 = vmul.f32 %v889, %v874
  %v899 = vmul.f32 %v894, %v875
  %v900 = vadd.f32 %v51, %v896
  %v901 = vadd.f32 %v52, %v897
  %v902 = vadd.f32 %v53, %v898
  %v903 = vadd.f32 %v54, %v899
  %v904 = vmul.f32 %v900, %v63
  %v905 = vmul.f32 %v901, %v68
  %v906 = vmul.f32 %v902, %v73
  %v907 = vmul.f32 %v903, %v78
  %vm908 = vcmp.gt.f32.partialorder %v46, %v352
  %vm909 = vcmp.gt.f32.partialorder %v47, %v352
  %vm910 = vcmp.gt.f32.partialorder %v48, %v352
  %vm911 = vcmp.gt.f32.partialorder %v49, %v352
  %v912 = vsel %vm908, 1, 0
  %v913 = vsel %vm909, 1, 0
  %v914 = vsel %vm910, 1, 0
  %v915 = vsel %vm911, 1, 0
  %v916 = vcvt.s32.f32 %v912
  %v917 = vcvt.s32.f32 %v913
  %v918 = vcvt.s32.f32 %v914
  %v919 = vcvt.s32.f32 %v915
  %v920 = vsub.f32 %v46, %v352
  %v921 = vsub.f32 %v47, %v352
  %v922 = vsub.f32 %v48, %v352
  %v923 = vsub.f32 %v49, %v352
  %v924 = vmax.f32 %v920, 0.25
  %v925 = vmax.f32 %v921, 0.25
  %v926 = vmax.f32 %v922, 0.25
  %v927 = vmax.f32 %v923, 0.25
  %v928 = vsub.f32 %v904, %v51
  %v929 = vsub.f32 %v905, %v52
  %v930 = vsub.f32 %v906, %v53
  %v931 = vsub.f32 %v907, %v54
  %v932 = vmul.f32 %v928, 0.25
  %v933 = vmul.f32 %v929, 0.25
  %v934 = vmul.f32 %v930, 0.25
  %v935 = vmul.f32 %v931, 0.25
  %937 = vset.pattern.permute.xlu0 17
  %938 = vperm.xlu0 %937, %v924
  %v939 = vpop.permute.xlu0 %938
  %942 = vset.pattern.permute.xlu0 17
  %943 = vperm.xlu0 %942, %v925
  %v944 = vpop.permute.xlu0 %943
  %947 = vset.pattern.permute.xlu0 17
  %948 = vperm.xlu0 %947, %v926
  %v949 = vpop.permute.xlu0 %948
  %952 = vset.pattern.permute.xlu0 17
  %953 = vperm.xlu0 %952, %v927
  %v954 = vpop.permute.xlu0 %953
  %v956 = vrcp.pop %v939
  %v957 = vmul.f32 %v939, %v956
  %v958 = vsub.f32 1.0, %v957
  %v959 = vmul.f32 %v956, %v958
  %v960 = vadd.f32 %v956, %v959
  %vm961 = vweird.f32 %v939
  %vm962 = vweird.f32 %v956
  %vm963 = vmor %vm961, %vm962
  %v964 = vsel %vm963, %v956, %v960
  %v965 = vand.u32 2147483647, %v939
  %vm966 = vcmp.eq.f32.partialorder %v965, 8.507059e+37
  %v967 = vand.u32 %v939, 2147483648
  %v968 = vor.u32 1.1754944e-38, %v967
  %v969 = vsel %vm966, %v968, %v964
  %v970 = vmul.f32 %v932, %v969
  %v971 = vrcp.pop %v944
  %v972 = vmul.f32 %v944, %v971
  %v973 = vsub.f32 1.0, %v972
  %v974 = vmul.f32 %v971, %v973
  %v975 = vadd.f32 %v971, %v974
  %vm976 = vweird.f32 %v944
  %vm977 = vweird.f32 %v971
  %vm978 = vmor %vm976, %vm977
  %v979 = vsel %vm978, %v971, %v975
  %v980 = vand.u32 2147483647, %v944
  %vm981 = vcmp.eq.f32.partialorder %v980, 8.507059e+37
  %v982 = vand.u32 %v944, 2147483648
  %v983 = vor.u32 1.1754944e-38, %v982
  %v984 = vsel %vm981, %v983, %v979
  %v985 = vmul.f32 %v933, %v984
  %v986 = vrcp.pop %v949
  %v987 = vmul.f32 %v949, %v986
  %v988 = vsub.f32 1.0, %v987
  %v989 = vmul.f32 %v986, %v988
  %v990 = vadd.f32 %v986, %v989
  %vm991 = vweird.f32 %v949
  %vm992 = vweird.f32 %v986
  %vm993 = vmor %vm991, %vm992
  %v994 = vsel %vm993, %v986, %v990
  %v995 = vand.u32 2147483647, %v949
  %vm996 = vcmp.eq.f32.partialorder %v995, 8.507059e+37
  %v997 = vand.u32 %v949, 2147483648
  %v998 = vor.u32 1.1754944e-38, %v997
  %v999 = vsel %vm996, %v998, %v994
  %v1000 = vmul.f32 %v934, %v999
  %v1001 = vrcp.pop %v954
  %v1002 = vmul.f32 %v954, %v1001
  %v1003 = vsub.f32 1.0, %v1002
  %v1004 = vmul.f32 %v1001, %v1003
  %v1005 = vadd.f32 %v1001, %v1004
  %vm1006 = vweird.f32 %v954
  %vm1007 = vweird.f32 %v1001
  %vm1008 = vmor %vm1006, %vm1007
  %v1009 = vsel %vm1008, %v1001, %v1005
  %v1010 = vand.u32 2147483647, %v954
  %vm1011 = vcmp.eq.f32.partialorder %v1010, 8.507059e+37
  %v1012 = vand.u32 %v954, 2147483648
  %v1013 = vor.u32 1.1754944e-38, %v1012
  %v1014 = vsel %vm1011, %v1013, %v1009
  %v1015 = vmul.f32 %v935, %v1014
  %1017 = vset.pattern.permute.xlu0 17
  %1018 = vperm.xlu0 %1017, %v916
  %v1019 = vpop.permute.xlu0 %1018
  %1022 = vset.pattern.permute.xlu0 17
  %1023 = vperm.xlu0 %1022, %v917
  %v1024 = vpop.permute.xlu0 %1023
  %1027 = vset.pattern.permute.xlu0 17
  %1028 = vperm.xlu0 %1027, %v918
  %v1029 = vpop.permute.xlu0 %1028
  %1032 = vset.pattern.permute.xlu0 17
  %1033 = vperm.xlu0 %1032, %v919
  %v1034 = vpop.permute.xlu0 %1033
  %v1036 = vmul.f32 %v1019, %v970
  %v1037 = vmul.f32 %v1024, %v985
  %v1038 = vmul.f32 %v1029, %v1000
  %v1039 = vmul.f32 %v1034, %v1015
  %v1040 = vadd.f32 %v51, %v1036
  %v1041 = vadd.f32 %v52, %v1037
  %v1042 = vadd.f32 %v53, %v1038
  %v1043 = vadd.f32 %v54, %v1039
  %v1044 = vmul.f32 %v1040, %v63
  %v1045 = vmul.f32 %v1041, %v68
  %v1046 = vmul.f32 %v1042, %v73
  %v1047 = vmul.f32 %v1043, %v78
  %s1048 = sadd.f32 %s59, 0.25
  %v1049 = vstv %s1048
  %v1050 = vsub.f32 %v1049, %v46
  %v1051 = vsub.f32 %v1049, %v47
  %v1052 = vsub.f32 %v1049, %v48
  %v1053 = vsub.f32 %v1049, %v49
  %v1054 = vmul.f32 %v1050, 2.0
  %v1055 = vmul.f32 %v1051, 2.0
  %v1056 = vmul.f32 %v1052, 2.0
  %v1057 = vmul.f32 %v1053, 2.0
  %v1058 = vmax.f32 %v1054, 0.0
  %v1059 = vmax.f32 %v1055, 0.0
  %v1060 = vmax.f32 %v1056, 0.0
  %v1061 = vmax.f32 %v1057, 0.0
  %v1062 = vmin.f32 %v1058, 1.0
  %v1063 = vmin.f32 %v1059, 1.0
  %v1064 = vmin.f32 %v1060, 1.0
  %v1065 = vmin.f32 %v1061, 1.0
  %v1066 = vmul.f32 %v1049, %v350
  %v1067 = vperm.slane %v1066, 0
  %v1068 = vadd.f32 %v341, %v1067
  %v1069 = vadd.f32 %v343, %v1067
  %v1070 = vadd.f32 %v346, %v1067
  %v1071 = vadd.f32 %v348, %v1067
  %1073 = vset.pattern.permute.xlu0 16
  %1074 = vperm.xlu0 %1073, %v1062
  %v1075 = vpop.permute.xlu0 %1074
  %1078 = vset.pattern.permute.xlu0 16
  %1079 = vperm.xlu0 %1078, %v1063
  %v1080 = vpop.permute.xlu0 %1079
  %1083 = vset.pattern.permute.xlu0 16
  %1084 = vperm.xlu0 %1083, %v1064
  %v1085 = vpop.permute.xlu0 %1084
  %1088 = vset.pattern.permute.xlu0 16
  %1089 = vperm.xlu0 %1088, %v1065
  %v1090 = vpop.permute.xlu0 %1089
  %v1092 = vmul.f32 %v1075, %v395
  %v1093 = vmul.f32 %v1080, %v395
  %v1094 = vmul.f32 %v1085, %v395
  %v1095 = vmul.f32 %v1090, %v395
  %v1096 = vadd.f32 %v1068, %v1092
  %v1097 = vadd.f32 %v1069, %v1093
  %v1098 = vadd.f32 %v1070, %v1094
  %v1099 = vadd.f32 %v1071, %v1095
  %v1100 = vmax.f32 %v1096, 0.0
  %v1101 = vmax.f32 %v1097, 0.0
  %v1102 = vmax.f32 %v1098, 0.0
  %v1103 = vmax.f32 %v1099, 0.0
  %v1104 = vpack.c.bf16 %v1101, %v1100
  %v1105 = vpack.c.bf16 %v1103, %v1102
  %v1107 = vsel %vm143, %v1104, 0
  %v1110 = vsel %vm143, %v1105, 0
  %1112 = vmatpush.bf16.msra.mxu0 0
  %1113 = vmatpush.bf16.msra.mxu0 0
  %1114 = vmatpush.bf16.msra.mxu0 0
  %1115 = vmatpush.bf16.msra.mxu0 0
  %1116 = vmatpush.bf16.msra.mxu0 0
  %1117 = vmatpush.bf16.msra.mxu0 0
  %1118 = vmatpush.bf16.msra.mxu0 %v423
  %1119 = vmatpush.bf16.msra.mxu0 %v422
  %1120 = vmatmul.bf16.gmra.mxu0 %v1107
  %v1121 = vpop.f32.mrf.mxu0
  %v1122 = vadd.f32 0.0, %v1121
  %v1123 = vpop.f32.mrf.mxu0
  %v1124 = vadd.f32 0.0, %v1123
  %1125 = vmatmul.bf16.gmra.mxu0 %v1110
  %v1126 = vpop.f32.mrf.mxu0
  %v1127 = vadd.f32 0.0, %v1126
  %v1128 = vpop.f32.mrf.mxu0
  %v1129 = vadd.f32 0.0, %v1128
  %1130 = vdwg.mxu0
  %v1131 = vpack.c.bf16 %v1124, %v1122
  %v1132 = vpack.c.bf16 %v1129, %v1127
  %v1134 = vsel %vm143, %v1131, 0
  %v1137 = vsel %vm143, %v1132, 0
  %1139 = vmatpush.bf16.xpose.msra.mxu0 0
  %1140 = vmatpush.bf16.xpose.msra.mxu0 0
  %1141 = vmatpush.bf16.xpose.msra.mxu0 0
  %1142 = vmatpush.bf16.xpose.msra.mxu0 0
  %1143 = vmatpush.bf16.xpose.msra.mxu0 0
  %1144 = vmatpush.bf16.xpose.msra.mxu0 0
  %1145 = vmatpush.bf16.xpose.msra.mxu0 %v1110
  %1146 = vmatpush.bf16.xpose.msra.mxu0 %v1107
  %1147 = vmatmul.bf16.gmra.mxu0 %v1134
  %v1148 = vpop.f32.mrf.mxu0
  %v1149 = vadd.f32 %v139, %v1148
  %v1150 = vpop.f32.mrf.mxu0
  %v1151 = vadd.f32 %v140, %v1150
  %1152 = vmatmul.bf16.gmra.mxu0 %v1137
  %v1153 = vpop.f32.mrf.mxu0
  %v1154 = vadd.f32 %v141, %v1153
  %v1155 = vpop.f32.mrf.mxu0
  %v1156 = vadd.f32 %v142, %v1155
  %1157 = vdwg.mxu0
  %v1158 = vsel %vm143, %v1149, -inf
  %1159 = vmax.xlane.f32.xlu0 %v1158
  %v1160 = vpop.xlane.xlu0 %1159
  %v1161 = vsel %vm143, %v1151, -inf
  %1162 = vmax.xlane.f32.xlu0 %v1161
  %v1163 = vpop.xlane.xlu0 %1162
  %v1164 = vsel %vm143, %v1154, -inf
  %1165 = vmax.xlane.f32.xlu0 %v1164
  %v1166 = vpop.xlane.xlu0 %1165
  %v1167 = vsel %vm143, %v1156, -inf
  %1168 = vmax.xlane.f32.xlu0 %v1167
  %v1169 = vpop.xlane.xlu0 %1168
  %v1170 = vsub.f32 %v1149, %v1160
  %v1171 = vsub.f32 %v1151, %v1163
  %v1172 = vsub.f32 %v1154, %v1166
  %v1173 = vsub.f32 %v1156, %v1169
  %v1174 = vmul.f32 %v1170, 1.442695
  %v1175 = vpow.pop %v1174
  %v1176 = vmul.f32 %v1171, 1.442695
  %v1177 = vpow.pop %v1176
  %v1178 = vmul.f32 %v1172, 1.442695
  %v1179 = vpow.pop %v1178
  %v1180 = vmul.f32 %v1173, 1.442695
  %v1181 = vpow.pop %v1180
  %v1182 = vsel %vm143, %v1175, 0.0
  %1183 = vadd.xlane.f32.xlu0 %v1182
  %v1184 = vpop.xlane.xlu0 %1183
  %v1185 = vsel %vm143, %v1177, 0.0
  %1186 = vadd.xlane.f32.xlu0 %v1185
  %v1187 = vpop.xlane.xlu0 %1186
  %v1188 = vsel %vm143, %v1179, 0.0
  %1189 = vadd.xlane.f32.xlu0 %v1188
  %v1190 = vpop.xlane.xlu0 %1189
  %v1191 = vsel %vm143, %v1181, 0.0
  %1192 = vadd.xlane.f32.xlu0 %v1191
  %v1193 = vpop.xlane.xlu0 %1192
  %v1194 = vrcp.pop %v1184
  %v1195 = vrcp.pop %v1187
  %v1196 = vrcp.pop %v1190
  %v1197 = vrcp.pop %v1193
  %v1198 = vmul.f32 %v1175, %v1194
  %v1199 = vmul.f32 %v1177, %v1195
  %v1200 = vmul.f32 %v1179, %v1196
  %v1201 = vmul.f32 %v1181, %v1197
  %1202 = vmatpush.bf16.msra.mxu0 0
  %1203 = vmatpush.bf16.msra.mxu0 0
  %1204 = vmatpush.bf16.msra.mxu0 0
  %1205 = vmatpush.bf16.msra.mxu0 0
  %1206 = vmatpush.bf16.msra.mxu0 0
  %1207 = vmatpush.bf16.msra.mxu0 0
  %1208 = vmatpush.bf16.msra.mxu0 %v535
  %1209 = vmatpush.bf16.msra.mxu0 %v534
  %1210 = vmatmul.bf16.gmra.mxu0 %v1107
  %v1211 = vpop.f32.mrf.mxu0
  %v1212 = vadd.f32 0.0, %v1211
  %v1213 = vpop.f32.mrf.mxu0
  %v1214 = vadd.f32 0.0, %v1213
  %1215 = vmatmul.bf16.gmra.mxu0 %v1110
  %v1216 = vpop.f32.mrf.mxu0
  %v1217 = vadd.f32 0.0, %v1216
  %v1218 = vpop.f32.mrf.mxu0
  %v1219 = vadd.f32 0.0, %v1218
  %1220 = vdwg.mxu0
  %v1221 = vpack.c.bf16 %v1199, %v1198
  %v1222 = vpack.c.bf16 %v1201, %v1200
  %v1223 = vpack.c.bf16 %v1214, %v1212
  %v1224 = vpack.c.bf16 %v1219, %v1217
  %v1226 = vsel %vm143, %v1221, 0
  %v1229 = vsel %vm143, %v1222, 0
  %1231 = vmatpush.bf16.msra.mxu0 0
  %1232 = vmatpush.bf16.msra.mxu0 0
  %1233 = vmatpush.bf16.msra.mxu0 0
  %1234 = vmatpush.bf16.msra.mxu0 0
  %1235 = vmatpush.bf16.msra.mxu0 0
  %1236 = vmatpush.bf16.msra.mxu0 0
  %1237 = vmatpush.bf16.msra.mxu0 %v1224
  %1238 = vmatpush.bf16.msra.mxu0 %v1223
  %1239 = vmatmul.bf16.gmra.mxu0 %v1226
  %v1240 = vpop.f32.mrf.mxu0
  %v1241 = vadd.f32 0.0, %v1240
  %v1242 = vpop.f32.mrf.mxu0
  %v1243 = vadd.f32 0.0, %v1242
  %1244 = vmatmul.bf16.gmra.mxu0 %v1229
  %v1245 = vpop.f32.mrf.mxu0
  %v1246 = vadd.f32 0.0, %v1245
  %v1247 = vpop.f32.mrf.mxu0
  %v1248 = vadd.f32 0.0, %v1247
  %1249 = vdwg.mxu0
  %v1250 = vadd.f32 %v1100, %v1241
  %v1251 = vadd.f32 %v1101, %v1243
  %v1252 = vadd.f32 %v1102, %v1246
  %v1253 = vadd.f32 %v1103, %v1248
  %v1254 = vpack.c.bf16 %v1251, %v1250
  %v1255 = vpack.c.bf16 %v1253, %v1252
  %v1257 = vsel %vm143, %v1254, 0
  %v1260 = vsel %vm143, %v1255, 0
  %1262 = vmatpush.bf16.msra.mxu0 0
  %1263 = vmatpush.bf16.msra.mxu0 0
  %1264 = vmatpush.bf16.msra.mxu0 0
  %1265 = vmatpush.bf16.msra.mxu0 0
  %1266 = vmatpush.bf16.msra.mxu0 0
  %1267 = vmatpush.bf16.msra.mxu0 0
  %1268 = vmatpush.bf16.msra.mxu0 %v313
  %1269 = vmatpush.bf16.msra.mxu0 %v312
  %1270 = vmatmul.bf16.gmra.mxu0 %v1257
  %v1271 = vpop.f32.mrf.mxu0
  %v1272 = vadd.f32 %v597, %v1271
  %v1273 = vpop.f32.mrf.mxu0
  %v1274 = vadd.f32 %v599, %v1273
  %1275 = vmatmul.bf16.gmra.mxu0 %v1260
  %v1276 = vpop.f32.mrf.mxu0
  %v1277 = vadd.f32 %v601, %v1276
  %v1278 = vpop.f32.mrf.mxu0
  %v1279 = vadd.f32 %v603, %v1278
  %1280 = vdwg.mxu0
  %v1281 = vsel %vm143, %v1272, -inf
  %1282 = vmax.xlane.f32.xlu0 %v1281
  %v1283 = vpop.xlane.xlu0 %1282
  %v1284 = vsel %vm143, %v1274, -inf
  %1285 = vmax.xlane.f32.xlu0 %v1284
  %v1286 = vpop.xlane.xlu0 %1285
  %v1287 = vsel %vm143, %v1277, -inf
  %1288 = vmax.xlane.f32.xlu0 %v1287
  %v1289 = vpop.xlane.xlu0 %1288
  %v1290 = vsel %vm143, %v1279, -inf
  %1291 = vmax.xlane.f32.xlu0 %v1290
  %v1292 = vpop.xlane.xlu0 %1291
  %v1293 = vsub.f32 %v1272, %v1283
  %v1294 = vsub.f32 %v1274, %v1286
  %v1295 = vsub.f32 %v1277, %v1289
  %v1296 = vsub.f32 %v1279, %v1292
  %v1297 = vmul.f32 %v1293, 1.442695
  %v1298 = vpow.pop %v1297
  %v1299 = vmul.f32 %v1294, 1.442695
  %v1300 = vpow.pop %v1299
  %v1301 = vmul.f32 %v1295, 1.442695
  %v1302 = vpow.pop %v1301
  %v1303 = vmul.f32 %v1296, 1.442695
  %v1304 = vpow.pop %v1303
  %v1305 = vsel %vm143, %v1298, 0.0
  %1306 = vadd.xlane.f32.xlu0 %v1305
  %v1307 = vpop.xlane.xlu0 %1306
  %v1308 = vsel %vm143, %v1300, 0.0
  %1309 = vadd.xlane.f32.xlu0 %v1308
  %v1310 = vpop.xlane.xlu0 %1309
  %v1311 = vsel %vm143, %v1302, 0.0
  %1312 = vadd.xlane.f32.xlu0 %v1311
  %v1313 = vpop.xlane.xlu0 %1312
  %v1314 = vsel %vm143, %v1304, 0.0
  %1315 = vadd.xlane.f32.xlu0 %v1314
  %v1316 = vpop.xlane.xlu0 %1315
  %v1317 = vrcp.pop %v1307
  %v1318 = vrcp.pop %v1310
  %v1319 = vrcp.pop %v1313
  %v1320 = vrcp.pop %v1316
  %v1321 = vmul.f32 %v1298, %v1317
  %v1322 = vmul.f32 %v1300, %v1318
  %v1323 = vmul.f32 %v1302, %v1319
  %v1324 = vmul.f32 %v1304, %v1320
  %v1325 = vpack.c.bf16 %v1322, %v1321
  %v1326 = vpack.c.bf16 %v1324, %v1323
  %v1328 = vsel %vm143, %v1325, 0
  %v1331 = vsel %vm143, %v1326, 0
  %1333 = vmatpush.bf16.msra.mxu0 0
  %1334 = vmatpush.bf16.msra.mxu0 0
  %1335 = vmatpush.bf16.msra.mxu0 0
  %1336 = vmatpush.bf16.msra.mxu0 0
  %1337 = vmatpush.bf16.msra.mxu0 0
  %1338 = vmatpush.bf16.msra.mxu0 0
  %1339 = vmatpush.bf16.msra.mxu0 %v272
  %1340 = vmatpush.bf16.msra.mxu0 %v271
  %1341 = vmatmul.bf16.gmra.mxu0 %v1328
  %v1342 = vpop.f32.mrf.mxu0
  %v1343 = vadd.f32 0.0, %v1342
  %v1344 = vpop.f32.mrf.mxu0
  %v1345 = vadd.f32 0.0, %v1344
  %1346 = vmatmul.bf16.gmra.mxu0 %v1331
  %v1347 = vpop.f32.mrf.mxu0
  %v1348 = vadd.f32 0.0, %v1347
  %v1349 = vpop.f32.mrf.mxu0
  %v1350 = vadd.f32 0.0, %v1349
  %1351 = vdwg.mxu0
  %v1352 = vadd.f32 %v1250, %v1343
  %v1353 = vadd.f32 %v1251, %v1345
  %v1354 = vadd.f32 %v1252, %v1348
  %v1355 = vadd.f32 %v1253, %v1350
  %v1356 = vmul.f32 %v1352, %v63
  %v1357 = vmul.f32 %v1353, %v68
  %v1358 = vmul.f32 %v1354, %v73
  %v1359 = vmul.f32 %v1355, %v78
  %v1360 = vpack.c.bf16 %v1357, %v1356
  %v1361 = vpack.c.bf16 %v1359, %v1358
  %v1363 = vsel %vm143, %v1360, 0
  %v1366 = vsel %vm143, %v1361, 0
  %1368 = vmatpush.bf16.msra.mxu0 0
  %1369 = vmatpush.bf16.msra.mxu0 0
  %1370 = vmatpush.bf16.msra.mxu0 0
  %1371 = vmatpush.bf16.msra.mxu0 0
  %1372 = vmatpush.bf16.msra.mxu0 0
  %1373 = vmatpush.bf16.msra.mxu0 0
  %1374 = vmatpush.bf16.msra.mxu0 %v727
  %1375 = vmatpush.bf16.msra.mxu0 %v726
  %1376 = vmatmul.bf16.gmra.mxu0 %v1363
  %v1377 = vpop.f32.mrf.mxu0
  %v1378 = vadd.f32 0.0, %v1377
  %v1379 = vpop.f32.mrf.mxu0
  %v1380 = vadd.f32 0.0, %v1379
  %1381 = vmatmul.bf16.gmra.mxu0 %v1366
  %v1382 = vpop.f32.mrf.mxu0
  %v1383 = vadd.f32 0.0, %v1382
  %v1384 = vpop.f32.mrf.mxu0
  %v1385 = vadd.f32 0.0, %v1384
  %1386 = vdwg.mxu0
  %v1387 = vxor.u32 %v1378, 2147483648
  %v1388 = vxor.u32 %v1380, 2147483648
  %v1389 = vxor.u32 %v1383, 2147483648
  %v1390 = vxor.u32 %v1385, 2147483648
  %v1391 = vmul.f32 %v1387, 1.442695
  %v1392 = vpow.pop %v1391
  %v1393 = vmul.f32 %v1388, 1.442695
  %v1394 = vpow.pop %v1393
  %v1395 = vmul.f32 %v1389, 1.442695
  %v1396 = vpow.pop %v1395
  %v1397 = vmul.f32 %v1390, 1.442695
  %v1398 = vpow.pop %v1397
  %v1399 = vadd.f32 %v1392, 1.0
  %v1400 = vadd.f32 %v1394, 1.0
  %v1401 = vadd.f32 %v1396, 1.0
  %v1402 = vadd.f32 %v1398, 1.0
  %v1403 = vrcp.pop %v1399
  %v1404 = vmul.f32 %v1399, %v1403
  %v1405 = vsub.f32 1.0, %v1404
  %v1406 = vmul.f32 %v1403, %v1405
  %v1407 = vadd.f32 %v1403, %v1406
  %vm1408 = vweird.f32 %v1399
  %vm1409 = vweird.f32 %v1403
  %vm1410 = vmor %vm1408, %vm1409
  %v1411 = vsel %vm1410, %v1403, %v1407
  %v1412 = vand.u32 2147483647, %v1399
  %vm1413 = vcmp.eq.f32.partialorder %v1412, 8.507059e+37
  %v1414 = vand.u32 %v1399, 2147483648
  %v1415 = vor.u32 1.1754944e-38, %v1414
  %v1416 = vsel %vm1413, %v1415, %v1411
  %v1417 = vmul.f32 1.0, %v1416
  %v1418 = vrcp.pop %v1400
  %v1419 = vmul.f32 %v1400, %v1418
  %v1420 = vsub.f32 1.0, %v1419
  %v1421 = vmul.f32 %v1418, %v1420
  %v1422 = vadd.f32 %v1418, %v1421
  %vm1423 = vweird.f32 %v1400
  %vm1424 = vweird.f32 %v1418
  %vm1425 = vmor %vm1423, %vm1424
  %v1426 = vsel %vm1425, %v1418, %v1422
  %v1427 = vand.u32 2147483647, %v1400
  %vm1428 = vcmp.eq.f32.partialorder %v1427, 8.507059e+37
  %v1429 = vand.u32 %v1400, 2147483648
  %v1430 = vor.u32 1.1754944e-38, %v1429
  %v1431 = vsel %vm1428, %v1430, %v1426
  %v1432 = vmul.f32 1.0, %v1431
  %v1433 = vrcp.pop %v1401
  %v1434 = vmul.f32 %v1401, %v1433
  %v1435 = vsub.f32 1.0, %v1434
  %v1436 = vmul.f32 %v1433, %v1435
  %v1437 = vadd.f32 %v1433, %v1436
  %vm1438 = vweird.f32 %v1401
  %vm1439 = vweird.f32 %v1433
  %vm1440 = vmor %vm1438, %vm1439
  %v1441 = vsel %vm1440, %v1433, %v1437
  %v1442 = vand.u32 2147483647, %v1401
  %vm1443 = vcmp.eq.f32.partialorder %v1442, 8.507059e+37
  %v1444 = vand.u32 %v1401, 2147483648
  %v1445 = vor.u32 1.1754944e-38, %v1444
  %v1446 = vsel %vm1443, %v1445, %v1441
  %v1447 = vmul.f32 1.0, %v1446
  %v1448 = vrcp.pop %v1402
  %v1449 = vmul.f32 %v1402, %v1448
  %v1450 = vsub.f32 1.0, %v1449
  %v1451 = vmul.f32 %v1448, %v1450
  %v1452 = vadd.f32 %v1448, %v1451
  %vm1453 = vweird.f32 %v1402
  %vm1454 = vweird.f32 %v1448
  %vm1455 = vmor %vm1453, %vm1454
  %v1456 = vsel %vm1455, %v1448, %v1452
  %v1457 = vand.u32 2147483647, %v1402
  %vm1458 = vcmp.eq.f32.partialorder %v1457, 8.507059e+37
  %v1459 = vand.u32 %v1402, 2147483648
  %v1460 = vor.u32 1.1754944e-38, %v1459
  %v1461 = vsel %vm1458, %v1460, %v1456
  %v1462 = vmul.f32 1.0, %v1461
  %1463 = vmatpush.msra.mxu0 0.0
  %1464 = vmatpush.msra.mxu0 0.0
  %1465 = vmatpush.msra.mxu0 0.0
  %1466 = vmatpush.msra.mxu0 0.0
  %1467 = vmatpush.msra.mxu0 0.0
  %1468 = vmatpush.msra.mxu0 0.0
  %1469 = vmatpush.msra.mxu0 0.0
  %1470 = vmatpush.msra.mxu0 0.0
  %1471 = vmatpush.msra.mxu0 0.0
  %1472 = vmatpush.msra.mxu0 0.0
  %1473 = vmatpush.msra.mxu0 0.0
  %1474 = vmatpush.msra.mxu0 0.0
  %1475 = vmatpush.msra.mxu0 %v1047
  %1476 = vmatpush.msra.mxu0 %v1046
  %1477 = vmatpush.msra.mxu0 %v1045
  %1478 = vmatpush.msra.mxu0 %v1044
  %1479 = vmatmul.f32.gmra.mxu0 %v832
  %v1480 = vpop.f32.mrf.mxu0
  %v1481 = vadd.f32 0.0, %v1480
  %1482 = vmatmul.f32.gmra.mxu0 %v835
  %v1483 = vpop.f32.mrf.mxu0
  %v1484 = vadd.f32 0.0, %v1483
  %1485 = vmatmul.f32.gmra.mxu0 %v838
  %v1486 = vpop.f32.mrf.mxu0
  %v1487 = vadd.f32 0.0, %v1486
  %1488 = vmatmul.f32.gmra.mxu0 %v841
  %v1489 = vpop.f32.mrf.mxu0
  %v1490 = vadd.f32 0.0, %v1489
  %1491 = vdwg.mxu0
  %v1492 = vsub.f32 %v1481, %v1044
  %v1493 = vsub.f32 %v1484, %v1045
  %v1494 = vsub.f32 %v1487, %v1046
  %v1495 = vsub.f32 %v1490, %v1047
  %1497 = vset.pattern.permute.xlu0 4
  %1498 = vperm.xlu0 %1497, %v1417
  %v1499 = vpop.permute.xlu0 %1498
  %1502 = vset.pattern.permute.xlu0 4
  %1503 = vperm.xlu0 %1502, %v1432
  %v1504 = vpop.permute.xlu0 %1503
  %1507 = vset.pattern.permute.xlu0 4
  %1508 = vperm.xlu0 %1507, %v1447
  %v1509 = vpop.permute.xlu0 %1508
  %1512 = vset.pattern.permute.xlu0 4
  %1513 = vperm.xlu0 %1512, %v1462
  %v1514 = vpop.permute.xlu0 %1513
  %v1516 = vmul.f32 %v1499, %v1492
  %v1517 = vmul.f32 %v1504, %v1493
  %v1518 = vmul.f32 %v1509, %v1494
  %v1519 = vmul.f32 %v1514, %v1495
  %v1520 = vadd.f32 %v1044, %v1516
  %v1521 = vadd.f32 %v1045, %v1517
  %v1522 = vadd.f32 %v1046, %v1518
  %v1523 = vadd.f32 %v1047, %v1519
  %v1524 = vmul.f32 %v1520, %v63
  %v1525 = vmul.f32 %v1521, %v68
  %v1526 = vmul.f32 %v1522, %v73
  %v1527 = vmul.f32 %v1523, %v78
  %vm1528 = vcmp.gt.f32.partialorder %v46, %v1049
  %vm1529 = vcmp.gt.f32.partialorder %v47, %v1049
  %vm1530 = vcmp.gt.f32.partialorder %v48, %v1049
  %vm1531 = vcmp.gt.f32.partialorder %v49, %v1049
  %v1532 = vsel %vm1528, 1, 0
  %v1533 = vsel %vm1529, 1, 0
  %v1534 = vsel %vm1530, 1, 0
  %v1535 = vsel %vm1531, 1, 0
  %v1536 = vcvt.s32.f32 %v1532
  %v1537 = vcvt.s32.f32 %v1533
  %v1538 = vcvt.s32.f32 %v1534
  %v1539 = vcvt.s32.f32 %v1535
  %v1540 = vsub.f32 %v46, %v1049
  %v1541 = vsub.f32 %v47, %v1049
  %v1542 = vsub.f32 %v48, %v1049
  %v1543 = vsub.f32 %v49, %v1049
  %v1544 = vmax.f32 %v1540, 0.25
  %v1545 = vmax.f32 %v1541, 0.25
  %v1546 = vmax.f32 %v1542, 0.25
  %v1547 = vmax.f32 %v1543, 0.25
  %v1548 = vsub.f32 %v1524, %v1044
  %v1549 = vsub.f32 %v1525, %v1045
  %v1550 = vsub.f32 %v1526, %v1046
  %v1551 = vsub.f32 %v1527, %v1047
  %v1552 = vmul.f32 %v1548, 0.25
  %v1553 = vmul.f32 %v1549, 0.25
  %v1554 = vmul.f32 %v1550, 0.25
  %v1555 = vmul.f32 %v1551, 0.25
  %1557 = vset.pattern.permute.xlu0 17
  %1558 = vperm.xlu0 %1557, %v1544
  %v1559 = vpop.permute.xlu0 %1558
  %1562 = vset.pattern.permute.xlu0 17
  %1563 = vperm.xlu0 %1562, %v1545
  %v1564 = vpop.permute.xlu0 %1563
  %1567 = vset.pattern.permute.xlu0 17
  %1568 = vperm.xlu0 %1567, %v1546
  %v1569 = vpop.permute.xlu0 %1568
  %1572 = vset.pattern.permute.xlu0 17
  %1573 = vperm.xlu0 %1572, %v1547
  %v1574 = vpop.permute.xlu0 %1573
  %v1576 = vrcp.pop %v1559
  %v1577 = vmul.f32 %v1559, %v1576
  %v1578 = vsub.f32 1.0, %v1577
  %v1579 = vmul.f32 %v1576, %v1578
  %v1580 = vadd.f32 %v1576, %v1579
  %vm1581 = vweird.f32 %v1559
  %vm1582 = vweird.f32 %v1576
  %vm1583 = vmor %vm1581, %vm1582
  %v1584 = vsel %vm1583, %v1576, %v1580
  %v1585 = vand.u32 2147483647, %v1559
  %vm1586 = vcmp.eq.f32.partialorder %v1585, 8.507059e+37
  %v1587 = vand.u32 %v1559, 2147483648
  %v1588 = vor.u32 1.1754944e-38, %v1587
  %v1589 = vsel %vm1586, %v1588, %v1584
  %v1590 = vmul.f32 %v1552, %v1589
  %v1591 = vrcp.pop %v1564
  %v1592 = vmul.f32 %v1564, %v1591
  %v1593 = vsub.f32 1.0, %v1592
  %v1594 = vmul.f32 %v1591, %v1593
  %v1595 = vadd.f32 %v1591, %v1594
  %vm1596 = vweird.f32 %v1564
  %vm1597 = vweird.f32 %v1591
  %vm1598 = vmor %vm1596, %vm1597
  %v1599 = vsel %vm1598, %v1591, %v1595
  %v1600 = vand.u32 2147483647, %v1564
  %vm1601 = vcmp.eq.f32.partialorder %v1600, 8.507059e+37
  %v1602 = vand.u32 %v1564, 2147483648
  %v1603 = vor.u32 1.1754944e-38, %v1602
  %v1604 = vsel %vm1601, %v1603, %v1599
  %v1605 = vmul.f32 %v1553, %v1604
  %v1606 = vrcp.pop %v1569
  %v1607 = vmul.f32 %v1569, %v1606
  %v1608 = vsub.f32 1.0, %v1607
  %v1609 = vmul.f32 %v1606, %v1608
  %v1610 = vadd.f32 %v1606, %v1609
  %vm1611 = vweird.f32 %v1569
  %vm1612 = vweird.f32 %v1606
  %vm1613 = vmor %vm1611, %vm1612
  %v1614 = vsel %vm1613, %v1606, %v1610
  %v1615 = vand.u32 2147483647, %v1569
  %vm1616 = vcmp.eq.f32.partialorder %v1615, 8.507059e+37
  %v1617 = vand.u32 %v1569, 2147483648
  %v1618 = vor.u32 1.1754944e-38, %v1617
  %v1619 = vsel %vm1616, %v1618, %v1614
  %v1620 = vmul.f32 %v1554, %v1619
  %v1621 = vrcp.pop %v1574
  %v1622 = vmul.f32 %v1574, %v1621
  %v1623 = vsub.f32 1.0, %v1622
  %v1624 = vmul.f32 %v1621, %v1623
  %v1625 = vadd.f32 %v1621, %v1624
  %vm1626 = vweird.f32 %v1574
  %vm1627 = vweird.f32 %v1621
  %vm1628 = vmor %vm1626, %vm1627
  %v1629 = vsel %vm1628, %v1621, %v1625
  %v1630 = vand.u32 2147483647, %v1574
  %vm1631 = vcmp.eq.f32.partialorder %v1630, 8.507059e+37
  %v1632 = vand.u32 %v1574, 2147483648
  %v1633 = vor.u32 1.1754944e-38, %v1632
  %v1634 = vsel %vm1631, %v1633, %v1629
  %v1635 = vmul.f32 %v1555, %v1634
  %1637 = vset.pattern.permute.xlu0 17
  %1638 = vperm.xlu0 %1637, %v1536
  %v1639 = vpop.permute.xlu0 %1638
  %1642 = vset.pattern.permute.xlu0 17
  %1643 = vperm.xlu0 %1642, %v1537
  %v1644 = vpop.permute.xlu0 %1643
  %1647 = vset.pattern.permute.xlu0 17
  %1648 = vperm.xlu0 %1647, %v1538
  %v1649 = vpop.permute.xlu0 %1648
  %1652 = vset.pattern.permute.xlu0 17
  %1653 = vperm.xlu0 %1652, %v1539
  %v1654 = vpop.permute.xlu0 %1653
  %v1656 = vmul.f32 %v1639, %v1590
  %v1657 = vmul.f32 %v1644, %v1605
  %v1658 = vmul.f32 %v1649, %v1620
  %v1659 = vmul.f32 %v1654, %v1635
  %v1660 = vadd.f32 %v1044, %v1656
  %v1661 = vadd.f32 %v1045, %v1657
  %v1662 = vadd.f32 %v1046, %v1658
  %v1663 = vadd.f32 %v1047, %v1659
  %v1664 = vmul.f32 %v1660, %v63
  %v1665 = vmul.f32 %v1661, %v68
  %v1666 = vmul.f32 %v1662, %v73
  %v1667 = vmul.f32 %v1663, %v78
  %s1668 = sadd.f32 %s59, 0.5
  %v1669 = vstv %s1668
  %v1670 = vsub.f32 %v1669, %v46
  %v1671 = vsub.f32 %v1669, %v47
  %v1672 = vsub.f32 %v1669, %v48
  %v1673 = vsub.f32 %v1669, %v49
  %v1674 = vmul.f32 %v1670, 2.0
  %v1675 = vmul.f32 %v1671, 2.0
  %v1676 = vmul.f32 %v1672, 2.0
  %v1677 = vmul.f32 %v1673, 2.0
  %v1678 = vmax.f32 %v1674, 0.0
  %v1679 = vmax.f32 %v1675, 0.0
  %v1680 = vmax.f32 %v1676, 0.0
  %v1681 = vmax.f32 %v1677, 0.0
  %v1682 = vmin.f32 %v1678, 1.0
  %v1683 = vmin.f32 %v1679, 1.0
  %v1684 = vmin.f32 %v1680, 1.0
  %v1685 = vmin.f32 %v1681, 1.0
  %v1686 = vmul.f32 %v1669, %v350
  %v1687 = vperm.slane %v1686, 0
  %v1688 = vadd.f32 %v341, %v1687
  %v1689 = vadd.f32 %v343, %v1687
  %v1690 = vadd.f32 %v346, %v1687
  %v1691 = vadd.f32 %v348, %v1687
  %1693 = vset.pattern.permute.xlu0 16
  %1694 = vperm.xlu0 %1693, %v1682
  %v1695 = vpop.permute.xlu0 %1694
  %1698 = vset.pattern.permute.xlu0 16
  %1699 = vperm.xlu0 %1698, %v1683
  %v1700 = vpop.permute.xlu0 %1699
  %1703 = vset.pattern.permute.xlu0 16
  %1704 = vperm.xlu0 %1703, %v1684
  %v1705 = vpop.permute.xlu0 %1704
  %1708 = vset.pattern.permute.xlu0 16
  %1709 = vperm.xlu0 %1708, %v1685
  %v1710 = vpop.permute.xlu0 %1709
  %v1712 = vmul.f32 %v1695, %v395
  %v1713 = vmul.f32 %v1700, %v395
  %v1714 = vmul.f32 %v1705, %v395
  %v1715 = vmul.f32 %v1710, %v395
  %v1716 = vadd.f32 %v1688, %v1712
  %v1717 = vadd.f32 %v1689, %v1713
  %v1718 = vadd.f32 %v1690, %v1714
  %v1719 = vadd.f32 %v1691, %v1715
  %v1720 = vmax.f32 %v1716, 0.0
  %v1721 = vmax.f32 %v1717, 0.0
  %v1722 = vmax.f32 %v1718, 0.0
  %v1723 = vmax.f32 %v1719, 0.0
  %v1724 = vpack.c.bf16 %v1721, %v1720
  %v1725 = vpack.c.bf16 %v1723, %v1722
  %v1727 = vsel %vm143, %v1724, 0
  %v1730 = vsel %vm143, %v1725, 0
  %1732 = vmatpush.bf16.msra.mxu0 0
  %1733 = vmatpush.bf16.msra.mxu0 0
  %1734 = vmatpush.bf16.msra.mxu0 0
  %1735 = vmatpush.bf16.msra.mxu0 0
  %1736 = vmatpush.bf16.msra.mxu0 0
  %1737 = vmatpush.bf16.msra.mxu0 0
  %1738 = vmatpush.bf16.msra.mxu0 %v423
  %1739 = vmatpush.bf16.msra.mxu0 %v422
  %1740 = vmatmul.bf16.gmra.mxu0 %v1727
  %v1741 = vpop.f32.mrf.mxu0
  %v1742 = vadd.f32 0.0, %v1741
  %v1743 = vpop.f32.mrf.mxu0
  %v1744 = vadd.f32 0.0, %v1743
  %1745 = vmatmul.bf16.gmra.mxu0 %v1730
  %v1746 = vpop.f32.mrf.mxu0
  %v1747 = vadd.f32 0.0, %v1746
  %v1748 = vpop.f32.mrf.mxu0
  %v1749 = vadd.f32 0.0, %v1748
  %1750 = vdwg.mxu0
  %v1751 = vpack.c.bf16 %v1744, %v1742
  %v1752 = vpack.c.bf16 %v1749, %v1747
  %v1754 = vsel %vm143, %v1751, 0
  %v1757 = vsel %vm143, %v1752, 0
  %1759 = vmatpush.bf16.xpose.msra.mxu0 0
  %1760 = vmatpush.bf16.xpose.msra.mxu0 0
  %1761 = vmatpush.bf16.xpose.msra.mxu0 0
  %1762 = vmatpush.bf16.xpose.msra.mxu0 0
  %1763 = vmatpush.bf16.xpose.msra.mxu0 0
  %1764 = vmatpush.bf16.xpose.msra.mxu0 0
  %1765 = vmatpush.bf16.xpose.msra.mxu0 %v1730
  %1766 = vmatpush.bf16.xpose.msra.mxu0 %v1727
  %1767 = vmatmul.bf16.gmra.mxu0 %v1754
  %v1768 = vpop.f32.mrf.mxu0
  %v1769 = vadd.f32 %v139, %v1768
  %v1770 = vpop.f32.mrf.mxu0
  %v1771 = vadd.f32 %v140, %v1770
  %1772 = vmatmul.bf16.gmra.mxu0 %v1757
  %v1773 = vpop.f32.mrf.mxu0
  %v1774 = vadd.f32 %v141, %v1773
  %v1775 = vpop.f32.mrf.mxu0
  %v1776 = vadd.f32 %v142, %v1775
  %1777 = vdwg.mxu0
  %v1778 = vsel %vm143, %v1769, -inf
  %1779 = vmax.xlane.f32.xlu0 %v1778
  %v1780 = vpop.xlane.xlu0 %1779
  %v1781 = vsel %vm143, %v1771, -inf
  %1782 = vmax.xlane.f32.xlu0 %v1781
  %v1783 = vpop.xlane.xlu0 %1782
  %v1784 = vsel %vm143, %v1774, -inf
  %1785 = vmax.xlane.f32.xlu0 %v1784
  %v1786 = vpop.xlane.xlu0 %1785
  %v1787 = vsel %vm143, %v1776, -inf
  %1788 = vmax.xlane.f32.xlu0 %v1787
  %v1789 = vpop.xlane.xlu0 %1788
  %v1790 = vsub.f32 %v1769, %v1780
  %v1791 = vsub.f32 %v1771, %v1783
  %v1792 = vsub.f32 %v1774, %v1786
  %v1793 = vsub.f32 %v1776, %v1789
  %v1794 = vmul.f32 %v1790, 1.442695
  %v1795 = vpow.pop %v1794
  %v1796 = vmul.f32 %v1791, 1.442695
  %v1797 = vpow.pop %v1796
  %v1798 = vmul.f32 %v1792, 1.442695
  %v1799 = vpow.pop %v1798
  %v1800 = vmul.f32 %v1793, 1.442695
  %v1801 = vpow.pop %v1800
  %v1802 = vsel %vm143, %v1795, 0.0
  %1803 = vadd.xlane.f32.xlu0 %v1802
  %v1804 = vpop.xlane.xlu0 %1803
  %v1805 = vsel %vm143, %v1797, 0.0
  %1806 = vadd.xlane.f32.xlu0 %v1805
  %v1807 = vpop.xlane.xlu0 %1806
  %v1808 = vsel %vm143, %v1799, 0.0
  %1809 = vadd.xlane.f32.xlu0 %v1808
  %v1810 = vpop.xlane.xlu0 %1809
  %v1811 = vsel %vm143, %v1801, 0.0
  %1812 = vadd.xlane.f32.xlu0 %v1811
  %v1813 = vpop.xlane.xlu0 %1812
  %v1814 = vrcp.pop %v1804
  %v1815 = vrcp.pop %v1807
  %v1816 = vrcp.pop %v1810
  %v1817 = vrcp.pop %v1813
  %v1818 = vmul.f32 %v1795, %v1814
  %v1819 = vmul.f32 %v1797, %v1815
  %v1820 = vmul.f32 %v1799, %v1816
  %v1821 = vmul.f32 %v1801, %v1817
  %1822 = vmatpush.bf16.msra.mxu0 0
  %1823 = vmatpush.bf16.msra.mxu0 0
  %1824 = vmatpush.bf16.msra.mxu0 0
  %1825 = vmatpush.bf16.msra.mxu0 0
  %1826 = vmatpush.bf16.msra.mxu0 0
  %1827 = vmatpush.bf16.msra.mxu0 0
  %1828 = vmatpush.bf16.msra.mxu0 %v535
  %1829 = vmatpush.bf16.msra.mxu0 %v534
  %1830 = vmatmul.bf16.gmra.mxu0 %v1727
  %v1831 = vpop.f32.mrf.mxu0
  %v1832 = vadd.f32 0.0, %v1831
  %v1833 = vpop.f32.mrf.mxu0
  %v1834 = vadd.f32 0.0, %v1833
  %1835 = vmatmul.bf16.gmra.mxu0 %v1730
  %v1836 = vpop.f32.mrf.mxu0
  %v1837 = vadd.f32 0.0, %v1836
  %v1838 = vpop.f32.mrf.mxu0
  %v1839 = vadd.f32 0.0, %v1838
  %1840 = vdwg.mxu0
  %v1841 = vpack.c.bf16 %v1819, %v1818
  %v1842 = vpack.c.bf16 %v1821, %v1820
  %v1843 = vpack.c.bf16 %v1834, %v1832
  %v1844 = vpack.c.bf16 %v1839, %v1837
  %v1846 = vsel %vm143, %v1841, 0
  %v1849 = vsel %vm143, %v1842, 0
  %1851 = vmatpush.bf16.msra.mxu0 0
  %1852 = vmatpush.bf16.msra.mxu0 0
  %1853 = vmatpush.bf16.msra.mxu0 0
  %1854 = vmatpush.bf16.msra.mxu0 0
  %1855 = vmatpush.bf16.msra.mxu0 0
  %1856 = vmatpush.bf16.msra.mxu0 0
  %1857 = vmatpush.bf16.msra.mxu0 %v1844
  %1858 = vmatpush.bf16.msra.mxu0 %v1843
  %1859 = vmatmul.bf16.gmra.mxu0 %v1846
  %v1860 = vpop.f32.mrf.mxu0
  %v1861 = vadd.f32 0.0, %v1860
  %v1862 = vpop.f32.mrf.mxu0
  %v1863 = vadd.f32 0.0, %v1862
  %1864 = vmatmul.bf16.gmra.mxu0 %v1849
  %v1865 = vpop.f32.mrf.mxu0
  %v1866 = vadd.f32 0.0, %v1865
  %v1867 = vpop.f32.mrf.mxu0
  %v1868 = vadd.f32 0.0, %v1867
  %1869 = vdwg.mxu0
  %v1870 = vadd.f32 %v1720, %v1861
  %v1871 = vadd.f32 %v1721, %v1863
  %v1872 = vadd.f32 %v1722, %v1866
  %v1873 = vadd.f32 %v1723, %v1868
  %v1874 = vpack.c.bf16 %v1871, %v1870
  %v1875 = vpack.c.bf16 %v1873, %v1872
  %v1877 = vsel %vm143, %v1874, 0
  %v1880 = vsel %vm143, %v1875, 0
  %1882 = vmatpush.bf16.msra.mxu0 0
  %1883 = vmatpush.bf16.msra.mxu0 0
  %1884 = vmatpush.bf16.msra.mxu0 0
  %1885 = vmatpush.bf16.msra.mxu0 0
  %1886 = vmatpush.bf16.msra.mxu0 0
  %1887 = vmatpush.bf16.msra.mxu0 0
  %1888 = vmatpush.bf16.msra.mxu0 %v313
  %1889 = vmatpush.bf16.msra.mxu0 %v312
  %1890 = vmatmul.bf16.gmra.mxu0 %v1877
  %v1891 = vpop.f32.mrf.mxu0
  %v1892 = vadd.f32 %v597, %v1891
  %v1893 = vpop.f32.mrf.mxu0
  %v1894 = vadd.f32 %v599, %v1893
  %1895 = vmatmul.bf16.gmra.mxu0 %v1880
  %v1896 = vpop.f32.mrf.mxu0
  %v1897 = vadd.f32 %v601, %v1896
  %v1898 = vpop.f32.mrf.mxu0
  %v1899 = vadd.f32 %v603, %v1898
  %1900 = vdwg.mxu0
  %v1901 = vsel %vm143, %v1892, -inf
  %1902 = vmax.xlane.f32.xlu0 %v1901
  %v1903 = vpop.xlane.xlu0 %1902
  %v1904 = vsel %vm143, %v1894, -inf
  %1905 = vmax.xlane.f32.xlu0 %v1904
  %v1906 = vpop.xlane.xlu0 %1905
  %v1907 = vsel %vm143, %v1897, -inf
  %1908 = vmax.xlane.f32.xlu0 %v1907
  %v1909 = vpop.xlane.xlu0 %1908
  %v1910 = vsel %vm143, %v1899, -inf
  %1911 = vmax.xlane.f32.xlu0 %v1910
  %v1912 = vpop.xlane.xlu0 %1911
  %v1913 = vsub.f32 %v1892, %v1903
  %v1914 = vsub.f32 %v1894, %v1906
  %v1915 = vsub.f32 %v1897, %v1909
  %v1916 = vsub.f32 %v1899, %v1912
  %v1917 = vmul.f32 %v1913, 1.442695
  %v1918 = vpow.pop %v1917
  %v1919 = vmul.f32 %v1914, 1.442695
  %v1920 = vpow.pop %v1919
  %v1921 = vmul.f32 %v1915, 1.442695
  %v1922 = vpow.pop %v1921
  %v1923 = vmul.f32 %v1916, 1.442695
  %v1924 = vpow.pop %v1923
  %v1925 = vsel %vm143, %v1918, 0.0
  %1926 = vadd.xlane.f32.xlu0 %v1925
  %v1927 = vpop.xlane.xlu0 %1926
  %v1928 = vsel %vm143, %v1920, 0.0
  %1929 = vadd.xlane.f32.xlu0 %v1928
  %v1930 = vpop.xlane.xlu0 %1929
  %v1931 = vsel %vm143, %v1922, 0.0
  %1932 = vadd.xlane.f32.xlu0 %v1931
  %v1933 = vpop.xlane.xlu0 %1932
  %v1934 = vsel %vm143, %v1924, 0.0
  %1935 = vadd.xlane.f32.xlu0 %v1934
  %v1936 = vpop.xlane.xlu0 %1935
  %v1937 = vrcp.pop %v1927
  %v1938 = vrcp.pop %v1930
  %v1939 = vrcp.pop %v1933
  %v1940 = vrcp.pop %v1936
  %v1941 = vmul.f32 %v1918, %v1937
  %v1942 = vmul.f32 %v1920, %v1938
  %v1943 = vmul.f32 %v1922, %v1939
  %v1944 = vmul.f32 %v1924, %v1940
  %v1945 = vpack.c.bf16 %v1942, %v1941
  %v1946 = vpack.c.bf16 %v1944, %v1943
  %v1948 = vsel %vm143, %v1945, 0
  %v1951 = vsel %vm143, %v1946, 0
  %1953 = vmatpush.bf16.msra.mxu0 0
  %1954 = vmatpush.bf16.msra.mxu0 0
  %1955 = vmatpush.bf16.msra.mxu0 0
  %1956 = vmatpush.bf16.msra.mxu0 0
  %1957 = vmatpush.bf16.msra.mxu0 0
  %1958 = vmatpush.bf16.msra.mxu0 0
  %1959 = vmatpush.bf16.msra.mxu0 %v272
  %1960 = vmatpush.bf16.msra.mxu0 %v271
  %1961 = vmatmul.bf16.gmra.mxu0 %v1948
  %v1962 = vpop.f32.mrf.mxu0
  %v1963 = vadd.f32 0.0, %v1962
  %v1964 = vpop.f32.mrf.mxu0
  %v1965 = vadd.f32 0.0, %v1964
  %1966 = vmatmul.bf16.gmra.mxu0 %v1951
  %v1967 = vpop.f32.mrf.mxu0
  %v1968 = vadd.f32 0.0, %v1967
  %v1969 = vpop.f32.mrf.mxu0
  %v1970 = vadd.f32 0.0, %v1969
  %1971 = vdwg.mxu0
  %v1972 = vadd.f32 %v1870, %v1963
  %v1973 = vadd.f32 %v1871, %v1965
  %v1974 = vadd.f32 %v1872, %v1968
  %v1975 = vadd.f32 %v1873, %v1970
  %v1976 = vmul.f32 %v1972, %v63
  %v1977 = vmul.f32 %v1973, %v68
  %v1978 = vmul.f32 %v1974, %v73
  %v1979 = vmul.f32 %v1975, %v78
  %v1980 = vpack.c.bf16 %v1977, %v1976
  %v1981 = vpack.c.bf16 %v1979, %v1978
  %v1983 = vsel %vm143, %v1980, 0
  %v1986 = vsel %vm143, %v1981, 0
  %1988 = vmatpush.bf16.msra.mxu0 0
  %1989 = vmatpush.bf16.msra.mxu0 0
  %1990 = vmatpush.bf16.msra.mxu0 0
  %1991 = vmatpush.bf16.msra.mxu0 0
  %1992 = vmatpush.bf16.msra.mxu0 0
  %1993 = vmatpush.bf16.msra.mxu0 0
  %1994 = vmatpush.bf16.msra.mxu0 %v727
  %1995 = vmatpush.bf16.msra.mxu0 %v726
  %1996 = vmatmul.bf16.gmra.mxu0 %v1983
  %v1997 = vpop.f32.mrf.mxu0
  %v1998 = vadd.f32 0.0, %v1997
  %v1999 = vpop.f32.mrf.mxu0
  %v2000 = vadd.f32 0.0, %v1999
  %2001 = vmatmul.bf16.gmra.mxu0 %v1986
  %v2002 = vpop.f32.mrf.mxu0
  %v2003 = vadd.f32 0.0, %v2002
  %v2004 = vpop.f32.mrf.mxu0
  %v2005 = vadd.f32 0.0, %v2004
  %2006 = vdwg.mxu0
  %v2007 = vxor.u32 %v1998, 2147483648
  %v2008 = vxor.u32 %v2000, 2147483648
  %v2009 = vxor.u32 %v2003, 2147483648
  %v2010 = vxor.u32 %v2005, 2147483648
  %v2011 = vmul.f32 %v2007, 1.442695
  %v2012 = vpow.pop %v2011
  %v2013 = vmul.f32 %v2008, 1.442695
  %v2014 = vpow.pop %v2013
  %v2015 = vmul.f32 %v2009, 1.442695
  %v2016 = vpow.pop %v2015
  %v2017 = vmul.f32 %v2010, 1.442695
  %v2018 = vpow.pop %v2017
  %v2019 = vadd.f32 %v2012, 1.0
  %v2020 = vadd.f32 %v2014, 1.0
  %v2021 = vadd.f32 %v2016, 1.0
  %v2022 = vadd.f32 %v2018, 1.0
  %v2023 = vrcp.pop %v2019
  %v2024 = vmul.f32 %v2019, %v2023
  %v2025 = vsub.f32 1.0, %v2024
  %v2026 = vmul.f32 %v2023, %v2025
  %v2027 = vadd.f32 %v2023, %v2026
  %vm2028 = vweird.f32 %v2019
  %vm2029 = vweird.f32 %v2023
  %vm2030 = vmor %vm2028, %vm2029
  %v2031 = vsel %vm2030, %v2023, %v2027
  %v2032 = vand.u32 2147483647, %v2019
  %vm2033 = vcmp.eq.f32.partialorder %v2032, 8.507059e+37
  %v2034 = vand.u32 %v2019, 2147483648
  %v2035 = vor.u32 1.1754944e-38, %v2034
  %v2036 = vsel %vm2033, %v2035, %v2031
  %v2037 = vmul.f32 1.0, %v2036
  %v2038 = vrcp.pop %v2020
  %v2039 = vmul.f32 %v2020, %v2038
  %v2040 = vsub.f32 1.0, %v2039
  %v2041 = vmul.f32 %v2038, %v2040
  %v2042 = vadd.f32 %v2038, %v2041
  %vm2043 = vweird.f32 %v2020
  %vm2044 = vweird.f32 %v2038
  %vm2045 = vmor %vm2043, %vm2044
  %v2046 = vsel %vm2045, %v2038, %v2042
  %v2047 = vand.u32 2147483647, %v2020
  %vm2048 = vcmp.eq.f32.partialorder %v2047, 8.507059e+37
  %v2049 = vand.u32 %v2020, 2147483648
  %v2050 = vor.u32 1.1754944e-38, %v2049
  %v2051 = vsel %vm2048, %v2050, %v2046
  %v2052 = vmul.f32 1.0, %v2051
  %v2053 = vrcp.pop %v2021
  %v2054 = vmul.f32 %v2021, %v2053
  %v2055 = vsub.f32 1.0, %v2054
  %v2056 = vmul.f32 %v2053, %v2055
  %v2057 = vadd.f32 %v2053, %v2056
  %vm2058 = vweird.f32 %v2021
  %vm2059 = vweird.f32 %v2053
  %vm2060 = vmor %vm2058, %vm2059
  %v2061 = vsel %vm2060, %v2053, %v2057
  %v2062 = vand.u32 2147483647, %v2021
  %vm2063 = vcmp.eq.f32.partialorder %v2062, 8.507059e+37
  %v2064 = vand.u32 %v2021, 2147483648
  %v2065 = vor.u32 1.1754944e-38, %v2064
  %v2066 = vsel %vm2063, %v2065, %v2061
  %v2067 = vmul.f32 1.0, %v2066
  %v2068 = vrcp.pop %v2022
  %v2069 = vmul.f32 %v2022, %v2068
  %v2070 = vsub.f32 1.0, %v2069
  %v2071 = vmul.f32 %v2068, %v2070
  %v2072 = vadd.f32 %v2068, %v2071
  %vm2073 = vweird.f32 %v2022
  %vm2074 = vweird.f32 %v2068
  %vm2075 = vmor %vm2073, %vm2074
  %v2076 = vsel %vm2075, %v2068, %v2072
  %v2077 = vand.u32 2147483647, %v2022
  %vm2078 = vcmp.eq.f32.partialorder %v2077, 8.507059e+37
  %v2079 = vand.u32 %v2022, 2147483648
  %v2080 = vor.u32 1.1754944e-38, %v2079
  %v2081 = vsel %vm2078, %v2080, %v2076
  %v2082 = vmul.f32 1.0, %v2081
  %2083 = vmatpush.msra.mxu0 0.0
  %2084 = vmatpush.msra.mxu0 0.0
  %2085 = vmatpush.msra.mxu0 0.0
  %2086 = vmatpush.msra.mxu0 0.0
  %2087 = vmatpush.msra.mxu0 0.0
  %2088 = vmatpush.msra.mxu0 0.0
  %2089 = vmatpush.msra.mxu0 0.0
  %2090 = vmatpush.msra.mxu0 0.0
  %2091 = vmatpush.msra.mxu0 0.0
  %2092 = vmatpush.msra.mxu0 0.0
  %2093 = vmatpush.msra.mxu0 0.0
  %2094 = vmatpush.msra.mxu0 0.0
  %2095 = vmatpush.msra.mxu0 %v1667
  %2096 = vmatpush.msra.mxu0 %v1666
  %2097 = vmatpush.msra.mxu0 %v1665
  %2098 = vmatpush.msra.mxu0 %v1664
  %2099 = vmatmul.f32.gmra.mxu0 %v832
  %v2100 = vpop.f32.mrf.mxu0
  %v2101 = vadd.f32 0.0, %v2100
  %2102 = vmatmul.f32.gmra.mxu0 %v835
  %v2103 = vpop.f32.mrf.mxu0
  %v2104 = vadd.f32 0.0, %v2103
  %2105 = vmatmul.f32.gmra.mxu0 %v838
  %v2106 = vpop.f32.mrf.mxu0
  %v2107 = vadd.f32 0.0, %v2106
  %2108 = vmatmul.f32.gmra.mxu0 %v841
  %v2109 = vpop.f32.mrf.mxu0
  %v2110 = vadd.f32 0.0, %v2109
  %2111 = vdwg.mxu0
  %v2112 = vsub.f32 %v2101, %v1664
  %v2113 = vsub.f32 %v2104, %v1665
  %v2114 = vsub.f32 %v2107, %v1666
  %v2115 = vsub.f32 %v2110, %v1667
  %2117 = vset.pattern.permute.xlu0 4
  %2118 = vperm.xlu0 %2117, %v2037
  %v2119 = vpop.permute.xlu0 %2118
  %2122 = vset.pattern.permute.xlu0 4
  %2123 = vperm.xlu0 %2122, %v2052
  %v2124 = vpop.permute.xlu0 %2123
  %2127 = vset.pattern.permute.xlu0 4
  %2128 = vperm.xlu0 %2127, %v2067
  %v2129 = vpop.permute.xlu0 %2128
  %2132 = vset.pattern.permute.xlu0 4
  %2133 = vperm.xlu0 %2132, %v2082
  %v2134 = vpop.permute.xlu0 %2133
  %v2136 = vmul.f32 %v2119, %v2112
  %v2137 = vmul.f32 %v2124, %v2113
  %v2138 = vmul.f32 %v2129, %v2114
  %v2139 = vmul.f32 %v2134, %v2115
  %v2140 = vadd.f32 %v1664, %v2136
  %v2141 = vadd.f32 %v1665, %v2137
  %v2142 = vadd.f32 %v1666, %v2138
  %v2143 = vadd.f32 %v1667, %v2139
  %v2144 = vmul.f32 %v2140, %v63
  %v2145 = vmul.f32 %v2141, %v68
  %v2146 = vmul.f32 %v2142, %v73
  %v2147 = vmul.f32 %v2143, %v78
  %vm2148 = vcmp.gt.f32.partialorder %v46, %v1669
  %vm2149 = vcmp.gt.f32.partialorder %v47, %v1669
  %vm2150 = vcmp.gt.f32.partialorder %v48, %v1669
  %vm2151 = vcmp.gt.f32.partialorder %v49, %v1669
  %v2152 = vsel %vm2148, 1, 0
  %v2153 = vsel %vm2149, 1, 0
  %v2154 = vsel %vm2150, 1, 0
  %v2155 = vsel %vm2151, 1, 0
  %v2156 = vcvt.s32.f32 %v2152
  %v2157 = vcvt.s32.f32 %v2153
  %v2158 = vcvt.s32.f32 %v2154
  %v2159 = vcvt.s32.f32 %v2155
  %v2160 = vsub.f32 %v46, %v1669
  %v2161 = vsub.f32 %v47, %v1669
  %v2162 = vsub.f32 %v48, %v1669
  %v2163 = vsub.f32 %v49, %v1669
  %v2164 = vmax.f32 %v2160, 0.25
  %v2165 = vmax.f32 %v2161, 0.25
  %v2166 = vmax.f32 %v2162, 0.25
  %v2167 = vmax.f32 %v2163, 0.25
  %v2168 = vsub.f32 %v2144, %v1664
  %v2169 = vsub.f32 %v2145, %v1665
  %v2170 = vsub.f32 %v2146, %v1666
  %v2171 = vsub.f32 %v2147, %v1667
  %v2172 = vmul.f32 %v2168, 0.25
  %v2173 = vmul.f32 %v2169, 0.25
  %v2174 = vmul.f32 %v2170, 0.25
  %v2175 = vmul.f32 %v2171, 0.25
  %2177 = vset.pattern.permute.xlu0 17
  %2178 = vperm.xlu0 %2177, %v2164
  %v2179 = vpop.permute.xlu0 %2178
  %2182 = vset.pattern.permute.xlu0 17
  %2183 = vperm.xlu0 %2182, %v2165
  %v2184 = vpop.permute.xlu0 %2183
  %2187 = vset.pattern.permute.xlu0 17
  %2188 = vperm.xlu0 %2187, %v2166
  %v2189 = vpop.permute.xlu0 %2188
  %2192 = vset.pattern.permute.xlu0 17
  %2193 = vperm.xlu0 %2192, %v2167
  %v2194 = vpop.permute.xlu0 %2193
  %v2196 = vrcp.pop %v2179
  %v2197 = vmul.f32 %v2179, %v2196
  %v2198 = vsub.f32 1.0, %v2197
  %v2199 = vmul.f32 %v2196, %v2198
  %v2200 = vadd.f32 %v2196, %v2199
  %vm2201 = vweird.f32 %v2179
  %vm2202 = vweird.f32 %v2196
  %vm2203 = vmor %vm2201, %vm2202
  %v2204 = vsel %vm2203, %v2196, %v2200
  %v2205 = vand.u32 2147483647, %v2179
  %vm2206 = vcmp.eq.f32.partialorder %v2205, 8.507059e+37
  %v2207 = vand.u32 %v2179, 2147483648
  %v2208 = vor.u32 1.1754944e-38, %v2207
  %v2209 = vsel %vm2206, %v2208, %v2204
  %v2210 = vmul.f32 %v2172, %v2209
  %v2211 = vrcp.pop %v2184
  %v2212 = vmul.f32 %v2184, %v2211
  %v2213 = vsub.f32 1.0, %v2212
  %v2214 = vmul.f32 %v2211, %v2213
  %v2215 = vadd.f32 %v2211, %v2214
  %vm2216 = vweird.f32 %v2184
  %vm2217 = vweird.f32 %v2211
  %vm2218 = vmor %vm2216, %vm2217
  %v2219 = vsel %vm2218, %v2211, %v2215
  %v2220 = vand.u32 2147483647, %v2184
  %vm2221 = vcmp.eq.f32.partialorder %v2220, 8.507059e+37
  %v2222 = vand.u32 %v2184, 2147483648
  %v2223 = vor.u32 1.1754944e-38, %v2222
  %v2224 = vsel %vm2221, %v2223, %v2219
  %v2225 = vmul.f32 %v2173, %v2224
  %v2226 = vrcp.pop %v2189
  %v2227 = vmul.f32 %v2189, %v2226
  %v2228 = vsub.f32 1.0, %v2227
  %v2229 = vmul.f32 %v2226, %v2228
  %v2230 = vadd.f32 %v2226, %v2229
  %vm2231 = vweird.f32 %v2189
  %vm2232 = vweird.f32 %v2226
  %vm2233 = vmor %vm2231, %vm2232
  %v2234 = vsel %vm2233, %v2226, %v2230
  %v2235 = vand.u32 2147483647, %v2189
  %vm2236 = vcmp.eq.f32.partialorder %v2235, 8.507059e+37
  %v2237 = vand.u32 %v2189, 2147483648
  %v2238 = vor.u32 1.1754944e-38, %v2237
  %v2239 = vsel %vm2236, %v2238, %v2234
  %v2240 = vmul.f32 %v2174, %v2239
  %v2241 = vrcp.pop %v2194
  %v2242 = vmul.f32 %v2194, %v2241
  %v2243 = vsub.f32 1.0, %v2242
  %v2244 = vmul.f32 %v2241, %v2243
  %v2245 = vadd.f32 %v2241, %v2244
  %vm2246 = vweird.f32 %v2194
  %vm2247 = vweird.f32 %v2241
  %vm2248 = vmor %vm2246, %vm2247
  %v2249 = vsel %vm2248, %v2241, %v2245
  %v2250 = vand.u32 2147483647, %v2194
  %vm2251 = vcmp.eq.f32.partialorder %v2250, 8.507059e+37
  %v2252 = vand.u32 %v2194, 2147483648
  %v2253 = vor.u32 1.1754944e-38, %v2252
  %v2254 = vsel %vm2251, %v2253, %v2249
  %v2255 = vmul.f32 %v2175, %v2254
  %2257 = vset.pattern.permute.xlu0 17
  %2258 = vperm.xlu0 %2257, %v2156
  %v2259 = vpop.permute.xlu0 %2258
  %2262 = vset.pattern.permute.xlu0 17
  %2263 = vperm.xlu0 %2262, %v2157
  %v2264 = vpop.permute.xlu0 %2263
  %2267 = vset.pattern.permute.xlu0 17
  %2268 = vperm.xlu0 %2267, %v2158
  %v2269 = vpop.permute.xlu0 %2268
  %2272 = vset.pattern.permute.xlu0 17
  %2273 = vperm.xlu0 %2272, %v2159
  %v2274 = vpop.permute.xlu0 %2273
  %v2276 = vmul.f32 %v2259, %v2210
  %v2277 = vmul.f32 %v2264, %v2225
  %v2278 = vmul.f32 %v2269, %v2240
  %v2279 = vmul.f32 %v2274, %v2255
  %v2280 = vadd.f32 %v1664, %v2276
  %v2281 = vadd.f32 %v1665, %v2277
  %v2282 = vadd.f32 %v1666, %v2278
  %v2283 = vadd.f32 %v1667, %v2279
  %v2284 = vmul.f32 %v2280, %v63
  %v2285 = vmul.f32 %v2281, %v68
  %v2286 = vmul.f32 %v2282, %v73
  %v2287 = vmul.f32 %v2283, %v78
  %s2288 = sadd.f32 %s59, 0.75
  %v2289 = vstv %s2288
  %v2290 = vsub.f32 %v2289, %v46
  %v2291 = vsub.f32 %v2289, %v47
  %v2292 = vsub.f32 %v2289, %v48
  %v2293 = vsub.f32 %v2289, %v49
  %v2294 = vmul.f32 %v2290, 2.0
  %v2295 = vmul.f32 %v2291, 2.0
  %v2296 = vmul.f32 %v2292, 2.0
  %v2297 = vmul.f32 %v2293, 2.0
  %v2298 = vmax.f32 %v2294, 0.0
  %v2299 = vmax.f32 %v2295, 0.0
  %v2300 = vmax.f32 %v2296, 0.0
  %v2301 = vmax.f32 %v2297, 0.0
  %v2302 = vmin.f32 %v2298, 1.0
  %v2303 = vmin.f32 %v2299, 1.0
  %v2304 = vmin.f32 %v2300, 1.0
  %v2305 = vmin.f32 %v2301, 1.0
  %v2306 = vmul.f32 %v2289, %v350
  %v2307 = vperm.slane %v2306, 0
  %v2308 = vadd.f32 %v341, %v2307
  %v2309 = vadd.f32 %v343, %v2307
  %v2310 = vadd.f32 %v346, %v2307
  %v2311 = vadd.f32 %v348, %v2307
  %2313 = vset.pattern.permute.xlu0 16
  %2314 = vperm.xlu0 %2313, %v2302
  %v2315 = vpop.permute.xlu0 %2314
  %2318 = vset.pattern.permute.xlu0 16
  %2319 = vperm.xlu0 %2318, %v2303
  %v2320 = vpop.permute.xlu0 %2319
  %2323 = vset.pattern.permute.xlu0 16
  %2324 = vperm.xlu0 %2323, %v2304
  %v2325 = vpop.permute.xlu0 %2324
  %2328 = vset.pattern.permute.xlu0 16
  %2329 = vperm.xlu0 %2328, %v2305
  %v2330 = vpop.permute.xlu0 %2329
  %v2332 = vmul.f32 %v2315, %v395
  %v2333 = vmul.f32 %v2320, %v395
  %v2334 = vmul.f32 %v2325, %v395
  %v2335 = vmul.f32 %v2330, %v395
  %v2336 = vadd.f32 %v2308, %v2332
  %v2337 = vadd.f32 %v2309, %v2333
  %v2338 = vadd.f32 %v2310, %v2334
  %v2339 = vadd.f32 %v2311, %v2335
  %v2340 = vmax.f32 %v2336, 0.0
  %v2341 = vmax.f32 %v2337, 0.0
  %v2342 = vmax.f32 %v2338, 0.0
  %v2343 = vmax.f32 %v2339, 0.0
  %v2344 = vpack.c.bf16 %v2341, %v2340
  %v2345 = vpack.c.bf16 %v2343, %v2342
  %v2347 = vsel %vm143, %v2344, 0
  %v2350 = vsel %vm143, %v2345, 0
  %2352 = vmatpush.bf16.msra.mxu0 0
  %2353 = vmatpush.bf16.msra.mxu0 0
  %2354 = vmatpush.bf16.msra.mxu0 0
  %2355 = vmatpush.bf16.msra.mxu0 0
  %2356 = vmatpush.bf16.msra.mxu0 0
  %2357 = vmatpush.bf16.msra.mxu0 0
  %2358 = vmatpush.bf16.msra.mxu0 %v423
  %2359 = vmatpush.bf16.msra.mxu0 %v422
  %2360 = vmatmul.bf16.gmra.mxu0 %v2347
  %v2361 = vpop.f32.mrf.mxu0
  %v2362 = vadd.f32 0.0, %v2361
  %v2363 = vpop.f32.mrf.mxu0
  %v2364 = vadd.f32 0.0, %v2363
  %2365 = vmatmul.bf16.gmra.mxu0 %v2350
  %v2366 = vpop.f32.mrf.mxu0
  %v2367 = vadd.f32 0.0, %v2366
  %v2368 = vpop.f32.mrf.mxu0
  %v2369 = vadd.f32 0.0, %v2368
  %2370 = vdwg.mxu0
  %v2371 = vpack.c.bf16 %v2364, %v2362
  %v2372 = vpack.c.bf16 %v2369, %v2367
  %v2374 = vsel %vm143, %v2371, 0
  %v2377 = vsel %vm143, %v2372, 0
  %2379 = vmatpush.bf16.xpose.msra.mxu0 0
  %2380 = vmatpush.bf16.xpose.msra.mxu0 0
  %2381 = vmatpush.bf16.xpose.msra.mxu0 0
  %2382 = vmatpush.bf16.xpose.msra.mxu0 0
  %2383 = vmatpush.bf16.xpose.msra.mxu0 0
  %2384 = vmatpush.bf16.xpose.msra.mxu0 0
  %2385 = vmatpush.bf16.xpose.msra.mxu0 %v2350
  %2386 = vmatpush.bf16.xpose.msra.mxu0 %v2347
  %2387 = vmatmul.bf16.gmra.mxu0 %v2374
  %v2388 = vpop.f32.mrf.mxu0
  %v2389 = vadd.f32 %v139, %v2388
  %v2390 = vpop.f32.mrf.mxu0
  %v2391 = vadd.f32 %v140, %v2390
  %2392 = vmatmul.bf16.gmra.mxu0 %v2377
  %v2393 = vpop.f32.mrf.mxu0
  %v2394 = vadd.f32 %v141, %v2393
  %v2395 = vpop.f32.mrf.mxu0
  %v2396 = vadd.f32 %v142, %v2395
  %2397 = vdwg.mxu0
  %v2398 = vsel %vm143, %v2389, -inf
  %2399 = vmax.xlane.f32.xlu0 %v2398
  %v2400 = vpop.xlane.xlu0 %2399
  %v2401 = vsel %vm143, %v2391, -inf
  %2402 = vmax.xlane.f32.xlu0 %v2401
  %v2403 = vpop.xlane.xlu0 %2402
  %v2404 = vsel %vm143, %v2394, -inf
  %2405 = vmax.xlane.f32.xlu0 %v2404
  %v2406 = vpop.xlane.xlu0 %2405
  %v2407 = vsel %vm143, %v2396, -inf
  %2408 = vmax.xlane.f32.xlu0 %v2407
  %v2409 = vpop.xlane.xlu0 %2408
  %v2410 = vsub.f32 %v2389, %v2400
  %v2411 = vsub.f32 %v2391, %v2403
  %v2412 = vsub.f32 %v2394, %v2406
  %v2413 = vsub.f32 %v2396, %v2409
  %v2414 = vmul.f32 %v2410, 1.442695
  %v2415 = vpow.pop %v2414
  %v2416 = vmul.f32 %v2411, 1.442695
  %v2417 = vpow.pop %v2416
  %v2418 = vmul.f32 %v2412, 1.442695
  %v2419 = vpow.pop %v2418
  %v2420 = vmul.f32 %v2413, 1.442695
  %v2421 = vpow.pop %v2420
  %v2422 = vsel %vm143, %v2415, 0.0
  %2423 = vadd.xlane.f32.xlu0 %v2422
  %v2424 = vpop.xlane.xlu0 %2423
  %v2425 = vsel %vm143, %v2417, 0.0
  %2426 = vadd.xlane.f32.xlu0 %v2425
  %v2427 = vpop.xlane.xlu0 %2426
  %v2428 = vsel %vm143, %v2419, 0.0
  %2429 = vadd.xlane.f32.xlu0 %v2428
  %v2430 = vpop.xlane.xlu0 %2429
  %v2431 = vsel %vm143, %v2421, 0.0
  %2432 = vadd.xlane.f32.xlu0 %v2431
  %v2433 = vpop.xlane.xlu0 %2432
  %v2434 = vrcp.pop %v2424
  %v2435 = vrcp.pop %v2427
  %v2436 = vrcp.pop %v2430
  %v2437 = vrcp.pop %v2433
  %v2438 = vmul.f32 %v2415, %v2434
  %v2439 = vmul.f32 %v2417, %v2435
  %v2440 = vmul.f32 %v2419, %v2436
  %v2441 = vmul.f32 %v2421, %v2437
  %2442 = vmatpush.bf16.msra.mxu0 0
  %2443 = vmatpush.bf16.msra.mxu0 0
  %2444 = vmatpush.bf16.msra.mxu0 0
  %2445 = vmatpush.bf16.msra.mxu0 0
  %2446 = vmatpush.bf16.msra.mxu0 0
  %2447 = vmatpush.bf16.msra.mxu0 0
  %2448 = vmatpush.bf16.msra.mxu0 %v535
  %2449 = vmatpush.bf16.msra.mxu0 %v534
  %2450 = vmatmul.bf16.gmra.mxu0 %v2347
  %v2451 = vpop.f32.mrf.mxu0
  %v2452 = vadd.f32 0.0, %v2451
  %v2453 = vpop.f32.mrf.mxu0
  %v2454 = vadd.f32 0.0, %v2453
  %2455 = vmatmul.bf16.gmra.mxu0 %v2350
  %v2456 = vpop.f32.mrf.mxu0
  %v2457 = vadd.f32 0.0, %v2456
  %v2458 = vpop.f32.mrf.mxu0
  %v2459 = vadd.f32 0.0, %v2458
  %2460 = vdwg.mxu0
  %v2461 = vpack.c.bf16 %v2439, %v2438
  %v2462 = vpack.c.bf16 %v2441, %v2440
  %v2463 = vpack.c.bf16 %v2454, %v2452
  %v2464 = vpack.c.bf16 %v2459, %v2457
  %v2466 = vsel %vm143, %v2461, 0
  %v2469 = vsel %vm143, %v2462, 0
  %2471 = vmatpush.bf16.msra.mxu0 0
  %2472 = vmatpush.bf16.msra.mxu0 0
  %2473 = vmatpush.bf16.msra.mxu0 0
  %2474 = vmatpush.bf16.msra.mxu0 0
  %2475 = vmatpush.bf16.msra.mxu0 0
  %2476 = vmatpush.bf16.msra.mxu0 0
  %2477 = vmatpush.bf16.msra.mxu0 %v2464
  %2478 = vmatpush.bf16.msra.mxu0 %v2463
  %2479 = vmatmul.bf16.gmra.mxu0 %v2466
  %v2480 = vpop.f32.mrf.mxu0
  %v2481 = vadd.f32 0.0, %v2480
  %v2482 = vpop.f32.mrf.mxu0
  %v2483 = vadd.f32 0.0, %v2482
  %2484 = vmatmul.bf16.gmra.mxu0 %v2469
  %v2485 = vpop.f32.mrf.mxu0
  %v2486 = vadd.f32 0.0, %v2485
  %v2487 = vpop.f32.mrf.mxu0
  %v2488 = vadd.f32 0.0, %v2487
  %2489 = vdwg.mxu0
  %v2490 = vadd.f32 %v2340, %v2481
  %v2491 = vadd.f32 %v2341, %v2483
  %v2492 = vadd.f32 %v2342, %v2486
  %v2493 = vadd.f32 %v2343, %v2488
  %v2494 = vpack.c.bf16 %v2491, %v2490
  %v2495 = vpack.c.bf16 %v2493, %v2492
  %v2497 = vsel %vm143, %v2494, 0
  %v2500 = vsel %vm143, %v2495, 0
  %2502 = vmatpush.bf16.msra.mxu0 0
  %2503 = vmatpush.bf16.msra.mxu0 0
  %2504 = vmatpush.bf16.msra.mxu0 0
  %2505 = vmatpush.bf16.msra.mxu0 0
  %2506 = vmatpush.bf16.msra.mxu0 0
  %2507 = vmatpush.bf16.msra.mxu0 0
  %2508 = vmatpush.bf16.msra.mxu0 %v313
  %2509 = vmatpush.bf16.msra.mxu0 %v312
  %2510 = vmatmul.bf16.gmra.mxu0 %v2497
  %v2511 = vpop.f32.mrf.mxu0
  %v2512 = vadd.f32 %v597, %v2511
  %v2513 = vpop.f32.mrf.mxu0
  %v2514 = vadd.f32 %v599, %v2513
  %2515 = vmatmul.bf16.gmra.mxu0 %v2500
  %v2516 = vpop.f32.mrf.mxu0
  %v2517 = vadd.f32 %v601, %v2516
  %v2518 = vpop.f32.mrf.mxu0
  %v2519 = vadd.f32 %v603, %v2518
  %2520 = vdwg.mxu0
  %v2521 = vsel %vm143, %v2512, -inf
  %2522 = vmax.xlane.f32.xlu0 %v2521
  %v2523 = vpop.xlane.xlu0 %2522
  %v2524 = vsel %vm143, %v2514, -inf
  %2525 = vmax.xlane.f32.xlu0 %v2524
  %v2526 = vpop.xlane.xlu0 %2525
  %v2527 = vsel %vm143, %v2517, -inf
  %2528 = vmax.xlane.f32.xlu0 %v2527
  %v2529 = vpop.xlane.xlu0 %2528
  %v2530 = vsel %vm143, %v2519, -inf
  %2531 = vmax.xlane.f32.xlu0 %v2530
  %v2532 = vpop.xlane.xlu0 %2531
  %v2533 = vsub.f32 %v2512, %v2523
  %v2534 = vsub.f32 %v2514, %v2526
  %v2535 = vsub.f32 %v2517, %v2529
  %v2536 = vsub.f32 %v2519, %v2532
  %v2537 = vmul.f32 %v2533, 1.442695
  %v2538 = vpow.pop %v2537
  %v2539 = vmul.f32 %v2534, 1.442695
  %v2540 = vpow.pop %v2539
  %v2541 = vmul.f32 %v2535, 1.442695
  %v2542 = vpow.pop %v2541
  %v2543 = vmul.f32 %v2536, 1.442695
  %v2544 = vpow.pop %v2543
  %v2545 = vsel %vm143, %v2538, 0.0
  %2546 = vadd.xlane.f32.xlu0 %v2545
  %v2547 = vpop.xlane.xlu0 %2546
  %v2548 = vsel %vm143, %v2540, 0.0
  %2549 = vadd.xlane.f32.xlu0 %v2548
  %v2550 = vpop.xlane.xlu0 %2549
  %v2551 = vsel %vm143, %v2542, 0.0
  %2552 = vadd.xlane.f32.xlu0 %v2551
  %v2553 = vpop.xlane.xlu0 %2552
  %v2554 = vsel %vm143, %v2544, 0.0
  %2555 = vadd.xlane.f32.xlu0 %v2554
  %v2556 = vpop.xlane.xlu0 %2555
  %v2557 = vrcp.pop %v2547
  %v2558 = vrcp.pop %v2550
  %v2559 = vrcp.pop %v2553
  %v2560 = vrcp.pop %v2556
  %v2561 = vmul.f32 %v2538, %v2557
  %v2562 = vmul.f32 %v2540, %v2558
  %v2563 = vmul.f32 %v2542, %v2559
  %v2564 = vmul.f32 %v2544, %v2560
  %v2565 = vpack.c.bf16 %v2562, %v2561
  %v2566 = vpack.c.bf16 %v2564, %v2563
  %v2568 = vsel %vm143, %v2565, 0
  %v2571 = vsel %vm143, %v2566, 0
  %2573 = vmatpush.bf16.msra.mxu0 0
  %2574 = vmatpush.bf16.msra.mxu0 0
  %2575 = vmatpush.bf16.msra.mxu0 0
  %2576 = vmatpush.bf16.msra.mxu0 0
  %2577 = vmatpush.bf16.msra.mxu0 0
  %2578 = vmatpush.bf16.msra.mxu0 0
  %2579 = vmatpush.bf16.msra.mxu0 %v272
  %2580 = vmatpush.bf16.msra.mxu0 %v271
  %2581 = vmatmul.bf16.gmra.mxu0 %v2568
  %v2582 = vpop.f32.mrf.mxu0
  %v2583 = vadd.f32 0.0, %v2582
  %v2584 = vpop.f32.mrf.mxu0
  %v2585 = vadd.f32 0.0, %v2584
  %2586 = vmatmul.bf16.gmra.mxu0 %v2571
  %v2587 = vpop.f32.mrf.mxu0
  %v2588 = vadd.f32 0.0, %v2587
  %v2589 = vpop.f32.mrf.mxu0
  %v2590 = vadd.f32 0.0, %v2589
  %2591 = vdwg.mxu0
  %v2592 = vadd.f32 %v2490, %v2583
  %v2593 = vadd.f32 %v2491, %v2585
  %v2594 = vadd.f32 %v2492, %v2588
  %v2595 = vadd.f32 %v2493, %v2590
  %v2596 = vmul.f32 %v2592, %v63
  %v2597 = vmul.f32 %v2593, %v68
  %v2598 = vmul.f32 %v2594, %v73
  %v2599 = vmul.f32 %v2595, %v78
  %v2600 = vpack.c.bf16 %v2597, %v2596
  %v2601 = vpack.c.bf16 %v2599, %v2598
  %v2602 = vld [vmem:[%s11] sm:$0xf]
  %v2603 = vld [vmem:[%s11 + $0x4] sm:$0xf]
  %v2604 = vld [vmem:[%s11 + $0x8] sm:$0xf]
  %v2605 = vld [vmem:[%s11 + $0xc] sm:$0xf]
  %v2610 = vunpack.c.l.b16 %v2602
  %v2611 = vunpack.c.l.b16 %v2603
  %v2612 = vunpack.c.l.b16 %v2604
  %v2613 = vunpack.c.l.b16 %v2605
  %v2614 = vpack.c.b16 %v2611, %v2610
  %v2615 = vpack.c.b16 %v2613, %v2612
  %v2619 = vsel %vm143, %v2600, 0
  %v2622 = vsel %vm143, %v2601, 0
  %2624 = vmatpush.bf16.msra.mxu0 0
  %2625 = vmatpush.bf16.msra.mxu0 0
  %2626 = vmatpush.bf16.msra.mxu0 0
  %2627 = vmatpush.bf16.msra.mxu0 0
  %2628 = vmatpush.bf16.msra.mxu0 0
  %2629 = vmatpush.bf16.msra.mxu0 0
  %2630 = vmatpush.bf16.msra.mxu0 %v2615
  %2631 = vmatpush.bf16.msra.mxu0 %v2614
  %2632 = vmatmul.bf16.gmra.mxu0 %v2619
  %v2633 = vpop.f32.mrf.mxu0
  %v2634 = vadd.f32 0.0, %v2633
  %v2635 = vpop.f32.mrf.mxu0
  %v2636 = vadd.f32 0.0, %v2635
  %2637 = vmatmul.bf16.gmra.mxu0 %v2622
  %v2638 = vpop.f32.mrf.mxu0
  %v2639 = vadd.f32 0.0, %v2638
  %v2640 = vpop.f32.mrf.mxu0
  %v2641 = vadd.f32 0.0, %v2640
  %2642 = vdwg.mxu0
  %v2643 = vmul.f32 %v2634, %v63
  %v2644 = vmul.f32 %v2636, %v68
  %v2645 = vmul.f32 %v2639, %v73
  %v2646 = vmul.f32 %v2641, %v78
  %2647 = vmatpush.bf16.msra.mxu0 0
  %2648 = vmatpush.bf16.msra.mxu0 0
  %2649 = vmatpush.bf16.msra.mxu0 0
  %2650 = vmatpush.bf16.msra.mxu0 0
  %2651 = vmatpush.bf16.msra.mxu0 0
  %2652 = vmatpush.bf16.msra.mxu0 0
  %2653 = vmatpush.bf16.msra.mxu0 %v727
  %2654 = vmatpush.bf16.msra.mxu0 %v726
  %2655 = vmatmul.bf16.gmra.mxu0 %v2619
  %v2656 = vpop.f32.mrf.mxu0
  %v2657 = vadd.f32 0.0, %v2656
  %v2658 = vpop.f32.mrf.mxu0
  %v2659 = vadd.f32 0.0, %v2658
  %2660 = vmatmul.bf16.gmra.mxu0 %v2622
  %v2661 = vpop.f32.mrf.mxu0
  %v2662 = vadd.f32 0.0, %v2661
  %v2663 = vpop.f32.mrf.mxu0
  %v2664 = vadd.f32 0.0, %v2663
  %2665 = vdwg.mxu0
  %v2666 = vxor.u32 %v2657, 2147483648
  %v2667 = vxor.u32 %v2659, 2147483648
  %v2668 = vxor.u32 %v2662, 2147483648
  %v2669 = vxor.u32 %v2664, 2147483648
  %v2670 = vmul.f32 %v2666, 1.442695
  %v2671 = vpow.pop %v2670
  %v2672 = vmul.f32 %v2667, 1.442695
  %v2673 = vpow.pop %v2672
  %v2674 = vmul.f32 %v2668, 1.442695
  %v2675 = vpow.pop %v2674
  %v2676 = vmul.f32 %v2669, 1.442695
  %v2677 = vpow.pop %v2676
  %v2678 = vadd.f32 %v2671, 1.0
  %v2679 = vadd.f32 %v2673, 1.0
  %v2680 = vadd.f32 %v2675, 1.0
  %v2681 = vadd.f32 %v2677, 1.0
  %v2682 = vrcp.pop %v2678
  %v2683 = vmul.f32 %v2678, %v2682
  %v2684 = vsub.f32 1.0, %v2683
  %v2685 = vmul.f32 %v2682, %v2684
  %v2686 = vadd.f32 %v2682, %v2685
  %vm2687 = vweird.f32 %v2678
  %vm2688 = vweird.f32 %v2682
  %vm2689 = vmor %vm2687, %vm2688
  %v2690 = vsel %vm2689, %v2682, %v2686
  %v2691 = vand.u32 2147483647, %v2678
  %vm2692 = vcmp.eq.f32.partialorder %v2691, 8.507059e+37
  %v2693 = vand.u32 %v2678, 2147483648
  %v2694 = vor.u32 1.1754944e-38, %v2693
  %v2695 = vsel %vm2692, %v2694, %v2690
  %v2696 = vmul.f32 1.0, %v2695
  %v2697 = vrcp.pop %v2679
  %v2698 = vmul.f32 %v2679, %v2697
  %v2699 = vsub.f32 1.0, %v2698
  %v2700 = vmul.f32 %v2697, %v2699
  %v2701 = vadd.f32 %v2697, %v2700
  %vm2702 = vweird.f32 %v2679
  %vm2703 = vweird.f32 %v2697
  %vm2704 = vmor %vm2702, %vm2703
  %v2705 = vsel %vm2704, %v2697, %v2701
  %v2706 = vand.u32 2147483647, %v2679
  %vm2707 = vcmp.eq.f32.partialorder %v2706, 8.507059e+37
  %v2708 = vand.u32 %v2679, 2147483648
  %v2709 = vor.u32 1.1754944e-38, %v2708
  %v2710 = vsel %vm2707, %v2709, %v2705
  %v2711 = vmul.f32 1.0, %v2710
  %v2712 = vrcp.pop %v2680
  %v2713 = vmul.f32 %v2680, %v2712
  %v2714 = vsub.f32 1.0, %v2713
  %v2715 = vmul.f32 %v2712, %v2714
  %v2716 = vadd.f32 %v2712, %v2715
  %vm2717 = vweird.f32 %v2680
  %vm2718 = vweird.f32 %v2712
  %vm2719 = vmor %vm2717, %vm2718
  %v2720 = vsel %vm2719, %v2712, %v2716
  %v2721 = vand.u32 2147483647, %v2680
  %vm2722 = vcmp.eq.f32.partialorder %v2721, 8.507059e+37
  %v2723 = vand.u32 %v2680, 2147483648
  %v2724 = vor.u32 1.1754944e-38, %v2723
  %v2725 = vsel %vm2722, %v2724, %v2720
  %v2726 = vmul.f32 1.0, %v2725
  %v2727 = vrcp.pop %v2681
  %v2728 = vmul.f32 %v2681, %v2727
  %v2729 = vsub.f32 1.0, %v2728
  %v2730 = vmul.f32 %v2727, %v2729
  %v2731 = vadd.f32 %v2727, %v2730
  %vm2732 = vweird.f32 %v2681
  %vm2733 = vweird.f32 %v2727
  %vm2734 = vmor %vm2732, %vm2733
  %v2735 = vsel %vm2734, %v2727, %v2731
  %v2736 = vand.u32 2147483647, %v2681
  %vm2737 = vcmp.eq.f32.partialorder %v2736, 8.507059e+37
  %v2738 = vand.u32 %v2681, 2147483648
  %v2739 = vor.u32 1.1754944e-38, %v2738
  %v2740 = vsel %vm2737, %v2739, %v2735
  %v2741 = vmul.f32 1.0, %v2740
  %2742 = vmatpush.msra.mxu0 0.0
  %2743 = vmatpush.msra.mxu0 0.0
  %2744 = vmatpush.msra.mxu0 0.0
  %2745 = vmatpush.msra.mxu0 0.0
  %2746 = vmatpush.msra.mxu0 0.0
  %2747 = vmatpush.msra.mxu0 0.0
  %2748 = vmatpush.msra.mxu0 0.0
  %2749 = vmatpush.msra.mxu0 0.0
  %2750 = vmatpush.msra.mxu0 0.0
  %2751 = vmatpush.msra.mxu0 0.0
  %2752 = vmatpush.msra.mxu0 0.0
  %2753 = vmatpush.msra.mxu0 0.0
  %2754 = vmatpush.msra.mxu0 %v2287
  %2755 = vmatpush.msra.mxu0 %v2286
  %2756 = vmatpush.msra.mxu0 %v2285
  %2757 = vmatpush.msra.mxu0 %v2284
  %2758 = vmatmul.f32.gmra.mxu0 %v832
  %v2759 = vpop.f32.mrf.mxu0
  %v2760 = vadd.f32 0.0, %v2759
  %2761 = vmatmul.f32.gmra.mxu0 %v835
  %v2762 = vpop.f32.mrf.mxu0
  %v2763 = vadd.f32 0.0, %v2762
  %2764 = vmatmul.f32.gmra.mxu0 %v838
  %v2765 = vpop.f32.mrf.mxu0
  %v2766 = vadd.f32 0.0, %v2765
  %2767 = vmatmul.f32.gmra.mxu0 %v841
  %v2768 = vpop.f32.mrf.mxu0
  %v2769 = vadd.f32 0.0, %v2768
  %2770 = vdwg.mxu0
  %v2771 = vsub.f32 %v2760, %v2284
  %v2772 = vsub.f32 %v2763, %v2285
  %v2773 = vsub.f32 %v2766, %v2286
  %v2774 = vsub.f32 %v2769, %v2287
  %2776 = vset.pattern.permute.xlu0 4
  %2777 = vperm.xlu0 %2776, %v2696
  %v2778 = vpop.permute.xlu0 %2777
  %2781 = vset.pattern.permute.xlu0 4
  %2782 = vperm.xlu0 %2781, %v2711
  %v2783 = vpop.permute.xlu0 %2782
  %2786 = vset.pattern.permute.xlu0 4
  %2787 = vperm.xlu0 %2786, %v2726
  %v2788 = vpop.permute.xlu0 %2787
  %2791 = vset.pattern.permute.xlu0 4
  %2792 = vperm.xlu0 %2791, %v2741
  %v2793 = vpop.permute.xlu0 %2792
  %v2795 = vmul.f32 %v2778, %v2771
  %v2796 = vmul.f32 %v2783, %v2772
  %v2797 = vmul.f32 %v2788, %v2773
  %v2798 = vmul.f32 %v2793, %v2774
  %v2799 = vadd.f32 %v2284, %v2795
  %v2800 = vadd.f32 %v2285, %v2796
  %v2801 = vadd.f32 %v2286, %v2797
  %v2802 = vadd.f32 %v2287, %v2798
  %v2803 = vmul.f32 %v2799, %v63
  %v2804 = vmul.f32 %v2800, %v68
  %v2805 = vmul.f32 %v2801, %v73
  %v2806 = vmul.f32 %v2802, %v78
  %vm2807 = vcmp.gt.f32.partialorder %v46, %v2289
  %vm2808 = vcmp.gt.f32.partialorder %v47, %v2289
  %vm2809 = vcmp.gt.f32.partialorder %v48, %v2289
  %vm2810 = vcmp.gt.f32.partialorder %v49, %v2289
  %v2811 = vsel %vm2807, 1, 0
  %v2812 = vsel %vm2808, 1, 0
  %v2813 = vsel %vm2809, 1, 0
  %v2814 = vsel %vm2810, 1, 0
  %v2815 = vcvt.s32.f32 %v2811
  %v2816 = vcvt.s32.f32 %v2812
  %v2817 = vcvt.s32.f32 %v2813
  %v2818 = vcvt.s32.f32 %v2814
  %v2819 = vsub.f32 %v46, %v2289
  %v2820 = vsub.f32 %v47, %v2289
  %v2821 = vsub.f32 %v48, %v2289
  %v2822 = vsub.f32 %v49, %v2289
  %v2823 = vmax.f32 %v2819, 0.25
  %v2824 = vmax.f32 %v2820, 0.25
  %v2825 = vmax.f32 %v2821, 0.25
  %v2826 = vmax.f32 %v2822, 0.25
  %v2827 = vsub.f32 %v2803, %v2284
  %v2828 = vsub.f32 %v2804, %v2285
  %v2829 = vsub.f32 %v2805, %v2286
  %v2830 = vsub.f32 %v2806, %v2287
  %v2831 = vmul.f32 %v2827, 0.25
  %v2832 = vmul.f32 %v2828, 0.25
  %v2833 = vmul.f32 %v2829, 0.25
  %v2834 = vmul.f32 %v2830, 0.25
  %2836 = vset.pattern.permute.xlu0 17
  %2837 = vperm.xlu0 %2836, %v2823
  %v2838 = vpop.permute.xlu0 %2837
  %2841 = vset.pattern.permute.xlu0 17
  %2842 = vperm.xlu0 %2841, %v2824
  %v2843 = vpop.permute.xlu0 %2842
  %2846 = vset.pattern.permute.xlu0 17
  %2847 = vperm.xlu0 %2846, %v2825
  %v2848 = vpop.permute.xlu0 %2847
  %2851 = vset.pattern.permute.xlu0 17
  %2852 = vperm.xlu0 %2851, %v2826
  %v2853 = vpop.permute.xlu0 %2852
  %v2855 = vrcp.pop %v2838
  %v2856 = vmul.f32 %v2838, %v2855
  %v2857 = vsub.f32 1.0, %v2856
  %v2858 = vmul.f32 %v2855, %v2857
  %v2859 = vadd.f32 %v2855, %v2858
  %vm2860 = vweird.f32 %v2838
  %vm2861 = vweird.f32 %v2855
  %vm2862 = vmor %vm2860, %vm2861
  %v2863 = vsel %vm2862, %v2855, %v2859
  %v2864 = vand.u32 2147483647, %v2838
  %vm2865 = vcmp.eq.f32.partialorder %v2864, 8.507059e+37
  %v2866 = vand.u32 %v2838, 2147483648
  %v2867 = vor.u32 1.1754944e-38, %v2866
  %v2868 = vsel %vm2865, %v2867, %v2863
  %v2869 = vmul.f32 %v2831, %v2868
  %v2870 = vrcp.pop %v2843
  %v2871 = vmul.f32 %v2843, %v2870
  %v2872 = vsub.f32 1.0, %v2871
  %v2873 = vmul.f32 %v2870, %v2872
  %v2874 = vadd.f32 %v2870, %v2873
  %vm2875 = vweird.f32 %v2843
  %vm2876 = vweird.f32 %v2870
  %vm2877 = vmor %vm2875, %vm2876
  %v2878 = vsel %vm2877, %v2870, %v2874
  %v2879 = vand.u32 2147483647, %v2843
  %vm2880 = vcmp.eq.f32.partialorder %v2879, 8.507059e+37
  %v2881 = vand.u32 %v2843, 2147483648
  %v2882 = vor.u32 1.1754944e-38, %v2881
  %v2883 = vsel %vm2880, %v2882, %v2878
  %v2884 = vmul.f32 %v2832, %v2883
  %v2885 = vrcp.pop %v2848
  %v2886 = vmul.f32 %v2848, %v2885
  %v2887 = vsub.f32 1.0, %v2886
  %v2888 = vmul.f32 %v2885, %v2887
  %v2889 = vadd.f32 %v2885, %v2888
  %vm2890 = vweird.f32 %v2848
  %vm2891 = vweird.f32 %v2885
  %vm2892 = vmor %vm2890, %vm2891
  %v2893 = vsel %vm2892, %v2885, %v2889
  %v2894 = vand.u32 2147483647, %v2848
  %vm2895 = vcmp.eq.f32.partialorder %v2894, 8.507059e+37
  %v2896 = vand.u32 %v2848, 2147483648
  %v2897 = vor.u32 1.1754944e-38, %v2896
  %v2898 = vsel %vm2895, %v2897, %v2893
  %v2899 = vmul.f32 %v2833, %v2898
  %v2900 = vrcp.pop %v2853
  %v2901 = vmul.f32 %v2853, %v2900
  %v2902 = vsub.f32 1.0, %v2901
  %v2903 = vmul.f32 %v2900, %v2902
  %v2904 = vadd.f32 %v2900, %v2903
  %vm2905 = vweird.f32 %v2853
  %vm2906 = vweird.f32 %v2900
  %vm2907 = vmor %vm2905, %vm2906
  %v2908 = vsel %vm2907, %v2900, %v2904
  %v2909 = vand.u32 2147483647, %v2853
  %vm2910 = vcmp.eq.f32.partialorder %v2909, 8.507059e+37
  %v2911 = vand.u32 %v2853, 2147483648
  %v2912 = vor.u32 1.1754944e-38, %v2911
  %v2913 = vsel %vm2910, %v2912, %v2908
  %v2914 = vmul.f32 %v2834, %v2913
  %2916 = vset.pattern.permute.xlu0 17
  %2917 = vperm.xlu0 %2916, %v2815
  %v2918 = vpop.permute.xlu0 %2917
  %2921 = vset.pattern.permute.xlu0 17
  %2922 = vperm.xlu0 %2921, %v2816
  %v2923 = vpop.permute.xlu0 %2922
  %2926 = vset.pattern.permute.xlu0 17
  %2927 = vperm.xlu0 %2926, %v2817
  %v2928 = vpop.permute.xlu0 %2927
  %2931 = vset.pattern.permute.xlu0 17
  %2932 = vperm.xlu0 %2931, %v2818
  %v2933 = vpop.permute.xlu0 %2932
  %v2935 = vmul.f32 %v2918, %v2869
  %v2936 = vmul.f32 %v2923, %v2884
  %v2937 = vmul.f32 %v2928, %v2899
  %v2938 = vmul.f32 %v2933, %v2914
  %v2939 = vadd.f32 %v2284, %v2935
  %v2940 = vadd.f32 %v2285, %v2936
  %v2941 = vadd.f32 %v2286, %v2937
  %v2942 = vadd.f32 %v2287, %v2938
  %v2943 = vmul.f32 %v2939, %v63
  %v2944 = vmul.f32 %v2940, %v68
  %v2945 = vmul.f32 %v2941, %v73
  %v2946 = vmul.f32 %v2942, %v78
  %2951 = vrot.lane.b32.xlu0 %v2803, 3
  %v2952 = vpop.permute.xlu0 %2951
  %2953 = vrot.lane.b32.xlu0 %v2804, 3
  %v2954 = vpop.permute.xlu0 %2953
  %2955 = vrot.lane.b32.xlu0 %v2805, 3
  %v2956 = vpop.permute.xlu0 %2955
  %2957 = vrot.lane.b32.xlu0 %v2806, 3
  %v2958 = vpop.permute.xlu0 %2957
  %2967 = vrot.lane.b32.xlu0 %v2657, 6
  %v2968 = vpop.permute.xlu0 %2967
  %2969 = vrot.lane.b32.xlu0 %v2659, 6
  %v2970 = vpop.permute.xlu0 %2969
  %2971 = vrot.lane.b32.xlu0 %v2662, 6
  %v2972 = vpop.permute.xlu0 %2971
  %2973 = vrot.lane.b32.xlu0 %v2664, 6
  %v2974 = vpop.permute.xlu0 %2973
  %2983 = vrot.lane.b32.xlu0 %v2643, 10
  %v2984 = vpop.permute.xlu0 %2983
  %2985 = vrot.lane.b32.xlu0 %v2644, 10
  %v2986 = vpop.permute.xlu0 %2985
  %2987 = vrot.lane.b32.xlu0 %v2645, 10
  %v2988 = vpop.permute.xlu0 %2987
  %2989 = vrot.lane.b32.xlu0 %v2646, 10
  %v2990 = vpop.permute.xlu0 %2989
  %vm2995 = vcmask 23552
  %v2996 = vsel %vm2995, %v2943, %v2952
  %v2997 = vsel %vm2995, %v2944, %v2954
  %v2998 = vsel %vm2995, %v2945, %v2956
  %v2999 = vsel %vm2995, %v2946, %v2958
  %vm3000 = vcmask 48128
  %v3001 = vsel %vm3000, %v2996, %v2968
  %v3002 = vsel %vm3000, %v2997, %v2970
  %v3003 = vsel %vm3000, %v2998, %v2972
  %v3004 = vsel %vm3000, %v2999, %v2974
  %vm3005 = vcmask 80896
  %v3006 = vsel %vm3005, %v3001, %v2984
  %v3007 = vsel %vm3005, %v3002, %v2986
  %v3008 = vsel %vm3005, %v3003, %v2988
  %v3009 = vsel %vm3005, %v3004, %v2990
  %vm3010 = vcmask 343040
  %v3011 = vsel %vm3010, %v3006, 0.0
  %v3012 = vsel %vm3010, %v3007, 0.0
  %v3013 = vsel %vm3010, %v3008, 0.0
  %v3014 = vsel %vm3010, %v3009, 0.0
  %3015 = vst [vmem:[%s13] sm:$0xff] %v3011
  %3016 = vst [vmem:[%s13 + $0x8] sm:$0xff] %v3012
  %3017 = vst [vmem:[%s13 + $0x10] sm:$0xff] %v3013
  %3018 = vst [vmem:[%s13 + $0x18] sm:$0xff] %v3014
  // Predicated region
  $region54: #{_cgflow_run_jit.1} parent=0 // pred_check
    _
  $region55: #{_cgflow_run_jit.1} parent=0 // pred_check_branch
    %3020 = sbr.rel (0) target = $region57
  $region56: #{_cgflow_run_jit.1} parent=0 // pred_region
    _
  $region57: #{_cgflow_run_jit.1} parent=0 // pred_fallthru
    _
  // Predicated region
  $region58: #{_cgflow_run_jit.1} parent=0 // pred_check
    _
  $region59: #{_cgflow_run_jit.1} parent=0 // pred_check_branch
    %3022 = sbr.rel (0) target = $region61
  $region60: #{_cgflow_run_jit.1} parent=0 // pred_region
    _
  $region61: #{_cgflow_run_jit.1} parent=0 // pred_fallthru
    _

</llo_original>
